<compile_context>
chip_gen: v5e
topology: v5e:2x2
jax: 0.10.0
libtpu: 0.0.40
codegen_flags: <defaults>
</compile_context>

<pallas_src>
import functools

import jax
import jax.numpy as jnp
from jax.experimental import pallas as pl
from jax.experimental.pallas import tpu as pltpu

_LANE = 128
_SUBLANE = 8


def _round_up(n, m):
    return ((n + m - 1) // m) * m


def _sigmoid(z):
    # Exact sigmoid via a single EUP tanh (EUP slot is far from saturated here).
    return 0.5 * (jnp.tanh(0.5 * z) + 1.0)


def _mlp_chain(h, wb_refs):
    """Linear(+bias)/ReLU chain; no ReLU after the last layer.

    Dot operands are cast to the weight dtype (bf16 by default); accumulation,
    bias-add and ReLU stay in f32.
    """
    n = len(wb_refs)
    for i, (w_ref, b_ref) in enumerate(wb_refs):
        w = w_ref[...]
        h = jnp.dot(h.astype(w.dtype), w, preferred_element_type=jnp.float32)
        h = h + b_ref[...]
        if i < n - 1:
            h = jnp.maximum(h, 0.0)
    return h


def autoencoder_kernel(lat_lb, lat_range, n_enc, n_dec, has_out_bounds, *refs):
    x_ref = refs[0]
    pos = 1
    enc_refs = [(refs[pos + 2 * i], refs[pos + 2 * i + 1]) for i in range(n_enc)]
    pos += 2 * n_enc
    dec_refs = [(refs[pos + 2 * i], refs[pos + 2 * i + 1]) for i in range(n_dec)]
    pos += 2 * n_dec
    if has_out_bounds:
        out_lb_ref, out_ub_ref = refs[pos], refs[pos + 1]
        pos += 2
    o_ref = refs[pos]

    # ---- Encoder ----  (Dropout(0.2) is an inference-mode no-op)
    z = _mlp_chain(x_ref[...], enc_refs)
    z = lat_lb + lat_range * _sigmoid(z)          # latent range scaling

    # ---- Decoder ----
    y = _mlp_chain(z, dec_refs)
    if has_out_bounds:
        lb = out_lb_ref[...]
        ub = out_ub_ref[...]
        y = lb + (ub - lb) * _sigmoid(y)

    o_ref[...] = y.astype(o_ref.dtype)


def autoencoder_forward(x, enc_params, dec_params, lat_lb=0.0, lat_ub=1.0,
                        out_lb=None, out_ub=None, *, block_batch=2048,
                        compute_dtype=jnp.bfloat16, out_dtype=jnp.float32,
                        single_buffer_weights=True):
    """Fused Autoencoder forward.

    x: (B, input_dim).  enc_params / dec_params: lists of (W, b) with W (in, out).
    out_lb / out_ub: optional per-feature output bounds (Decoder `bounds`).
    """
    B, input_dim = x.shape
    output_dim = dec_params[-1][0].shape[1]
    has_out_bounds = out_lb is not None and out_ub is not None

    # Feature padding of x: only when input_dim already spans >= one lane group
    # (padding a tiny input_dim like 32 would inflate x HBM traffic 4x).
    K0 = _round_up(input_dim, _LANE) if input_dim >= _LANE else input_dim
    N_out_pad = _round_up(output_dim, _LANE)

    # ---- Batch tiling ----
    # >= 2 grid steps whenever the batch allows it so "parallel" actually
    # shards across both TensorCores on v7x; TB is a multiple of 8 sublanes.
    half = _round_up(max(1, -(-B // 2)), _SUBLANE)
    TB = max(_SUBLANE, min(_round_up(block_batch, _SUBLANE), half))

    # Cap TB so the per-step footprint (double-buffered x/out tiles + a few
    # live f32 intermediates at the widest layer) stays well inside the scoped
    # VMEM budget of every generation (v5e 16 MiB / v7x 32 MiB defaults).
    widest = _round_up(max(w.shape[1] for (w, _) in enc_params + dec_params), _LANE)

    def _step_bytes(tb):
        return (2 * tb * K0 * x.dtype.itemsize
                + 2 * tb * N_out_pad * jnp.dtype(out_dtype).itemsize
                + 4 * tb * widest * 4)

    while TB > _SUBLANE and _step_bytes(TB) > (24 << 20):
        TB = _round_up(TB // 2, _SUBLANE)

    B_pad = _round_up(B, TB)

    # ---- Input prep: skip the extra HBM pass when no padding is needed; the
    # kernel casts activations to the weight dtype on the fly. ----
    x_p = x
    if B_pad != B or K0 != input_dim:
        x_p = jnp.pad(x, ((0, B_pad - B), (0, K0 - input_dim)))

    # ---- Pack weights: pad every layer's N (and the next layer's K rows) to
    # a multiple of 128 lanes with zeros -> dense MXU tiles, unmasked vregs. ----
    def pack(params, k_in):
        flat, k = [], k_in
        for w, b in params:
            n = w.shape[1]
            n_pad = _round_up(n, _LANE)
            w = w.astype(compute_dtype)
            b = b.reshape(1, -1).astype(jnp.float32)
            if w.shape[0] != k or n_pad != n:
                w = jnp.pad(w, ((0, k - w.shape[0]), (0, n_pad - n)))
            if n_pad != n:
                b = jnp.pad(b, ((0, 0), (0, n_pad - n)))
            flat += [w, b]
            k = n_pad
        return flat, k

    enc_flat, lat_pad = pack(enc_params, K0)
    dec_flat, _ = pack(dec_params, lat_pad)
    flat = enc_flat + dec_flat
    if has_out_bounds:
        pad = ((0, 0), (0, N_out_pad - output_dim))
        flat.append(jnp.pad(out_lb.reshape(1, -1).astype(jnp.float32), pad))
        flat.append(jnp.pad(out_ub.reshape(1, -1).astype(jnp.float32), pad))

    grid = (B_pad // TB,)
    x_spec = pl.BlockSpec((TB, K0), lambda i: (i, 0))
    out_spec = pl.BlockSpec((TB, N_out_pad), lambda i: (i, 0))

    # Advisory cost estimate for the XLA scheduler (padded shapes = real work).
    weight_elems = sum(a.size for a in flat if a.shape[0] > 1)     # weights only
    flops = 2 * B_pad * weight_elems
    transcendentals = B_pad * (lat_pad + (N_out_pad if has_out_bounds else 0))
    bytes_accessed = int(x_p.size * x_p.dtype.itemsize
                         + sum(a.size * a.dtype.itemsize for a in flat)
                         + B_pad * N_out_pad * jnp.dtype(out_dtype).itemsize)

    kernel = functools.partial(
        autoencoder_kernel, float(lat_lb), float(lat_ub) - float(lat_lb),
        len(enc_params), len(dec_params), has_out_bounds)

    def call(weight_pipeline_mode):
        def wspec(a):
            if weight_pipeline_mode is None:
                return pl.BlockSpec(a.shape, lambda i: (0, 0))
            return pl.BlockSpec(a.shape, lambda i: (0, 0),
                                pipeline_mode=weight_pipeline_mode)
        return pl.pallas_call(
            kernel,
            out_shape=jax.ShapeDtypeStruct((B_pad, N_out_pad), out_dtype),
            grid=grid,
            in_specs=[x_spec] + [wspec(a) for a in flat],
            out_specs=out_spec,
            compiler_params=pltpu.CompilerParams(
                dimension_semantics=("parallel",),
                vmem_limit_bytes=64 * 1024 * 1024),
            cost_estimate=pl.CostEstimate(flops=int(flops),
                                          transcendentals=int(transcendentals),
                                          bytes_accessed=int(bytes_accessed)),
        )(x_p, *flat)

    if single_buffer_weights:
        try:
            # Constant-index weights/biases gain nothing from double-buffering;
            # Buffered(1) halves their VMEM footprint (v7x has only 64 MiB).
            y_full = call(pl.Buffered(1))
        except Exception:
            # Fallback for JAX builds that reject single buffering on the main
            # grid pipeline; weights then keep the default double-buffering.
            y_full = call(None)
    else:
        y_full = call(None)

    if B_pad == B and N_out_pad == output_dim:
        return y_full
    return y_full[:B, :output_dim]


def init_mlp_params(key, dims):
    """PyTorch-nn.Linear-style U(-1/sqrt(fan_in), 1/sqrt(fan_in)); W stored (in, out)."""
    params = []
    for i in range(len(dims) - 1):
        key, kw, kb = jax.random.split(key, 3)
        bound = 1.0 / (dims[i] ** 0.5)
        w = jax.random.uniform(kw, (dims[i], dims[i + 1]), jnp.float32,
                               minval=-bound, maxval=bound)
        b = jax.random.uniform(kb, (dims[i + 1],), jnp.float32,
                               minval=-bound, maxval=bound)
        params.append((w, b))
    return params


def reference_forward(x, enc_params, dec_params, lat_lb=0.0, lat_ub=1.0,
                      out_lb=None, out_ub=None, compute_dtype=jnp.float32):
    def mlp(h, params):
        n = len(params)
        for i, (w, b) in enumerate(params):
            h = jnp.dot(h.astype(compute_dtype), w.astype(compute_dtype),
                        preferred_element_type=jnp.float32,
                        precision=jax.lax.Precision.HIGHEST) + b
            if i < n - 1:
                h = jnp.maximum(h, 0.0)
        return h

    z = mlp(x, enc_params)
    z = lat_lb + (lat_ub - lat_lb) * jax.nn.sigmoid(z)
    y = mlp(z, dec_params)
    if out_lb is not None and out_ub is not None:
        y = out_lb + (out_ub - out_lb) * jax.nn.sigmoid(y)
    return y


if __name__ == "__main__":
    key = jax.random.PRNGKey(0)
    batch, input_dim, latent_dim = 32, 32, 8
    lat_lb, lat_ub = 0.0, 1.0

    kx, ke, kd = jax.random.split(key, 3)
    x = jax.random.normal(kx, (batch, input_dim), jnp.float32)
    enc_params = init_mlp_params(ke, [input_dim, 256, 128, 64, 32, latent_dim])
    dec_params = init_mlp_params(kd, [latent_dim, 32, 64, 128, 256, input_dim])

    # --- Run 1: f32 matmul operands, default Autoencoder (out_bounds=None).
    # batch=32 -> TB=16 -> a 2-step grid, exercising the tiled, resident-weight,
    # parallel-batch path.
    y = autoencoder_forward(x, enc_params, dec_params, lat_lb, lat_ub,
                            compute_dtype=jnp.float32)
    y = jax.block_until_ready(y)
    y_ref = reference_forward(x, enc_params, dec_params, lat_lb, lat_ub,
                              compute_dtype=jnp.float32)
    assert y.shape == (batch, input_dim)
    # Exact tanh-based sigmoid -> tighter tolerance than the old approx path.
    assert jnp.allclose(y, y_ref, atol=2e-3, rtol=2e-3), "f32 mismatch vs reference"

    # --- Run 2: default bf16 matmul operands (f32 accumulation) + per-feature
    # output bounds.
    out_lb = jnp.linspace(-2.0, -1.0, input_dim, dtype=jnp.float32)
    out_ub = jnp.linspace(1.0, 3.0, input_dim, dtype=jnp.float32)
    y2 = autoencoder_forward(x, enc_params, dec_params, lat_lb, lat_ub,
                             out_lb, out_ub)
    y2 = jax.block_until_ready(y2)
    y2_ref = reference_forward(x, enc_params, dec_params, lat_lb, lat_ub,
                               out_lb, out_ub, compute_dtype=jnp.bfloat16)
    assert y2.shape == (batch, input_dim)
    assert jnp.allclose(y2, y2_ref, atol=5e-2, rtol=5e-2), "bf16 mismatch vs reference"

    print("KERNEL_OK")
</pallas_src>

<mosaic_0001>
module attributes {stable_mosaic.version = 11 : i64} {
  func.func @autoencoder_kernel(%arg0: i32, %arg1: memref<16x32xf32, #tpu.memory_space<vmem>>, %arg2: memref<32x256xf32, #tpu.memory_space<vmem>>, %arg3: memref<1x256xf32, #tpu.memory_space<vmem>>, %arg4: memref<256x128xf32, #tpu.memory_space<vmem>>, %arg5: memref<1x128xf32, #tpu.memory_space<vmem>>, %arg6: memref<128x128xf32, #tpu.memory_space<vmem>>, %arg7: memref<1x128xf32, #tpu.memory_space<vmem>>, %arg8: memref<128x128xf32, #tpu.memory_space<vmem>>, %arg9: memref<1x128xf32, #tpu.memory_space<vmem>>, %arg10: memref<128x128xf32, #tpu.memory_space<vmem>>, %arg11: memref<1x128xf32, #tpu.memory_space<vmem>>, %arg12: memref<128x128xf32, #tpu.memory_space<vmem>>, %arg13: memref<1x128xf32, #tpu.memory_space<vmem>>, %arg14: memref<128x128xf32, #tpu.memory_space<vmem>>, %arg15: memref<1x128xf32, #tpu.memory_space<vmem>>, %arg16: memref<128x128xf32, #tpu.memory_space<vmem>>, %arg17: memref<1x128xf32, #tpu.memory_space<vmem>>, %arg18: memref<128x256xf32, #tpu.memory_space<vmem>>, %arg19: memref<1x256xf32, #tpu.memory_space<vmem>>, %arg20: memref<256x128xf32, #tpu.memory_space<vmem>>, %arg21: memref<1x128xf32, #tpu.memory_space<vmem>>, %arg22: memref<16x128xf32, #tpu.memory_space<vmem>>) attributes {dimension_semantics = [#tpu.dimension_semantics<parallel>], iteration_bounds = array<i64: 2>, scalar_prefetch = 0 : i64, scratch_operands = 0 : i64, tpu.core_type = #tpu.core_type<tc>, window_params = [{transform_indices = @transform_0, window_bounds = array<i64: 16, 32>}, {pipeline_mode = #tpu.pipeline_mode<synchronous>, transform_indices = @transform_1, window_bounds = array<i64: 32, 256>}, {pipeline_mode = #tpu.pipeline_mode<synchronous>, transform_indices = @transform_2, window_bounds = array<i64: 1, 256>}, {pipeline_mode = #tpu.pipeline_mode<synchronous>, transform_indices = @transform_3, window_bounds = array<i64: 256, 128>}, {pipeline_mode = #tpu.pipeline_mode<synchronous>, transform_indices = @transform_4, window_bounds = array<i64: 1, 128>}, {pipeline_mode = #tpu.pipeline_mode<synchronous>, transform_indices = @transform_5, window_bounds = array<i64: 128, 128>}, {pipeline_mode = #tpu.pipeline_mode<synchronous>, transform_indices = @transform_6, window_bounds = array<i64: 1, 128>}, {pipeline_mode = #tpu.pipeline_mode<synchronous>, transform_indices = @transform_7, window_bounds = array<i64: 128, 128>}, {pipeline_mode = #tpu.pipeline_mode<synchronous>, transform_indices = @transform_8, window_bounds = array<i64: 1, 128>}, {pipeline_mode = #tpu.pipeline_mode<synchronous>, transform_indices = @transform_9, window_bounds = array<i64: 128, 128>}, {pipeline_mode = #tpu.pipeline_mode<synchronous>, transform_indices = @transform_10, window_bounds = array<i64: 1, 128>}, {pipeline_mode = #tpu.pipeline_mode<synchronous>, transform_indices = @transform_11, window_bounds = array<i64: 128, 128>}, {pipeline_mode = #tpu.pipeline_mode<synchronous>, transform_indices = @transform_12, window_bounds = array<i64: 1, 128>}, {pipeline_mode = #tpu.pipeline_mode<synchronous>, transform_indices = @transform_13, window_bounds = array<i64: 128, 128>}, {pipeline_mode = #tpu.pipeline_mode<synchronous>, transform_indices = @transform_14, window_bounds = array<i64: 1, 128>}, {pipeline_mode = #tpu.pipeline_mode<synchronous>, transform_indices = @transform_15, window_bounds = array<i64: 128, 128>}, {pipeline_mode = #tpu.pipeline_mode<synchronous>, transform_indices = @transform_16, window_bounds = array<i64: 1, 128>}, {pipeline_mode = #tpu.pipeline_mode<synchronous>, transform_indices = @transform_17, window_bounds = array<i64: 128, 256>}, {pipeline_mode = #tpu.pipeline_mode<synchronous>, transform_indices = @transform_18, window_bounds = array<i64: 1, 256>}, {pipeline_mode = #tpu.pipeline_mode<synchronous>, transform_indices = @transform_19, window_bounds = array<i64: 256, 128>}, {pipeline_mode = #tpu.pipeline_mode<synchronous>, transform_indices = @transform_20, window_bounds = array<i64: 1, 128>}, {transform_indices = @transform_21, window_bounds = array<i64: 16, 128>}]} {
    %c0 = arith.constant 0 : index
    %c0_0 = arith.constant 0 : index
    %0 = vector.load %arg1[%c0, %c0_0] : memref<16x32xf32, #tpu.memory_space<vmem>>, vector<16x32xf32>
    %c0_1 = arith.constant 0 : index
    %c0_2 = arith.constant 0 : index
    %1 = vector.load %arg2[%c0_1, %c0_2] : memref<32x256xf32, #tpu.memory_space<vmem>>, vector<32x256xf32>
    %cst = arith.constant dense<0.000000e+00> : vector<16x256xf32>
    %2 = tpu.matmul %0, %1, %cst {dimension_numbers = #tpu.dot_dimension_numbers<[1], [0], [0], [1], [0, 0, 1, 1], [], []>} : vector<16x32xf32>, vector<32x256xf32>, vector<16x256xf32> -> vector<16x256xf32>
    %c0_3 = arith.constant 0 : index
    %c0_4 = arith.constant 0 : index
    %3 = vector.load %arg3[%c0_3, %c0_4] : memref<1x256xf32, #tpu.memory_space<vmem>>, vector<1x256xf32>
    %4 = vector.broadcast %3 : vector<1x256xf32> to vector<16x256xf32>
    %5 = arith.addf %2, %4 : vector<16x256xf32>
    %cst_5 = arith.constant 0.000000e+00 : f32
    %6 = vector.broadcast %cst_5 : f32 to vector<16x256xf32>
    %7 = arith.maximumf %5, %6 : vector<16x256xf32>
    %c0_6 = arith.constant 0 : index
    %c0_7 = arith.constant 0 : index
    %8 = vector.load %arg4[%c0_6, %c0_7] : memref<256x128xf32, #tpu.memory_space<vmem>>, vector<256x128xf32>
    %cst_8 = arith.constant dense<0.000000e+00> : vector<16x128xf32>
    %9 = tpu.matmul %7, %8, %cst_8 {dimension_numbers = #tpu.dot_dimension_numbers<[1], [0], [0], [1], [0, 0, 1, 1], [], []>} : vector<16x256xf32>, vector<256x128xf32>, vector<16x128xf32> -> vector<16x128xf32>
    %c0_9 = arith.constant 0 : index
    %c0_10 = arith.constant 0 : index
    %10 = vector.load %arg5[%c0_9, %c0_10] : memref<1x128xf32, #tpu.memory_space<vmem>>, vector<1x128xf32>
    %11 = vector.broadcast %10 : vector<1x128xf32> to vector<16x128xf32>
    %12 = arith.addf %9, %11 : vector<16x128xf32>
    %cst_11 = arith.constant 0.000000e+00 : f32
    %13 = vector.broadcast %cst_11 : f32 to vector<16x128xf32>
    %14 = arith.maximumf %12, %13 : vector<16x128xf32>
    %c0_12 = arith.constant 0 : index
    %c0_13 = arith.constant 0 : index
    %15 = vector.load %arg6[%c0_12, %c0_13] : memref<128x128xf32, #tpu.memory_space<vmem>>, vector<128x128xf32>
    %cst_14 = arith.constant dense<0.000000e+00> : vector<16x128xf32>
    %16 = tpu.matmul %14, %15, %cst_14 {dimension_numbers = #tpu.dot_dimension_numbers<[1], [0], [0], [1], [0, 0, 1, 1], [], []>} : vector<16x128xf32>, vector<128x128xf32>, vector<16x128xf32> -> vector<16x128xf32>
    %c0_15 = arith.constant 0 : index
    %c0_16 = arith.constant 0 : index
    %17 = vector.load %arg7[%c0_15, %c0_16] : memref<1x128xf32, #tpu.memory_space<vmem>>, vector<1x128xf32>
    %18 = vector.broadcast %17 : vector<1x128xf32> to vector<16x128xf32>
    %19 = arith.addf %16, %18 : vector<16x128xf32>
    %cst_17 = arith.constant 0.000000e+00 : f32
    %20 = vector.broadcast %cst_17 : f32 to vector<16x128xf32>
    %21 = arith.maximumf %19, %20 : vector<16x128xf32>
    %c0_18 = arith.constant 0 : index
    %c0_19 = arith.constant 0 : index
    %22 = vector.load %arg8[%c0_18, %c0_19] : memref<128x128xf32, #tpu.memory_space<vmem>>, vector<128x128xf32>
    %cst_20 = arith.constant dense<0.000000e+00> : vector<16x128xf32>
    %23 = tpu.matmul %21, %22, %cst_20 {dimension_numbers = #tpu.dot_dimension_numbers<[1], [0], [0], [1], [0, 0, 1, 1], [], []>} : vector<16x128xf32>, vector<128x128xf32>, vector<16x128xf32> -> vector<16x128xf32>
    %c0_21 = arith.constant 0 : index
    %c0_22 = arith.constant 0 : index
    %24 = vector.load %arg9[%c0_21, %c0_22] : memref<1x128xf32, #tpu.memory_space<vmem>>, vector<1x128xf32>
    %25 = vector.broadcast %24 : vector<1x128xf32> to vector<16x128xf32>
    %26 = arith.addf %23, %25 : vector<16x128xf32>
    %cst_23 = arith.constant 0.000000e+00 : f32
    %27 = vector.broadcast %cst_23 : f32 to vector<16x128xf32>
    %28 = arith.maximumf %26, %27 : vector<16x128xf32>
    %c0_24 = arith.constant 0 : index
    %c0_25 = arith.constant 0 : index
    %29 = vector.load %arg10[%c0_24, %c0_25] : memref<128x128xf32, #tpu.memory_space<vmem>>, vector<128x128xf32>
    %cst_26 = arith.constant dense<0.000000e+00> : vector<16x128xf32>
    %30 = tpu.matmul %28, %29, %cst_26 {dimension_numbers = #tpu.dot_dimension_numbers<[1], [0], [0], [1], [0, 0, 1, 1], [], []>} : vector<16x128xf32>, vector<128x128xf32>, vector<16x128xf32> -> vector<16x128xf32>
    %c0_27 = arith.constant 0 : index
    %c0_28 = arith.constant 0 : index
    %31 = vector.load %arg11[%c0_27, %c0_28] : memref<1x128xf32, #tpu.memory_space<vmem>>, vector<1x128xf32>
    %32 = vector.broadcast %31 : vector<1x128xf32> to vector<16x128xf32>
    %33 = arith.addf %30, %32 : vector<16x128xf32>
    %cst_29 = arith.constant 5.000000e-01 : f32
    %34 = vector.broadcast %cst_29 : f32 to vector<16x128xf32>
    %35 = arith.mulf %34, %33 : vector<16x128xf32>
    %36 = math.tanh %35 : vector<16x128xf32>
    %cst_30 = arith.constant 1.000000e+00 : f32
    %37 = vector.broadcast %cst_30 : f32 to vector<16x128xf32>
    %38 = arith.addf %36, %37 : vector<16x128xf32>
    %cst_31 = arith.constant 5.000000e-01 : f32
    %39 = vector.broadcast %cst_31 : f32 to vector<16x128xf32>
    %40 = arith.mulf %39, %38 : vector<16x128xf32>
    %cst_32 = arith.constant 1.000000e+00 : f32
    %41 = vector.broadcast %cst_32 : f32 to vector<16x128xf32>
    %42 = arith.mulf %41, %40 : vector<16x128xf32>
    %cst_33 = arith.constant 0.000000e+00 : f32
    %43 = vector.broadcast %cst_33 : f32 to vector<16x128xf32>
    %44 = arith.addf %43, %42 : vector<16x128xf32>
    %c0_34 = arith.constant 0 : index
    %c0_35 = arith.constant 0 : index
    %45 = vector.load %arg12[%c0_34, %c0_35] : memref<128x128xf32, #tpu.memory_space<vmem>>, vector<128x128xf32>
    %cst_36 = arith.constant dense<0.000000e+00> : vector<16x128xf32>
    %46 = tpu.matmul %44, %45, %cst_36 {dimension_numbers = #tpu.dot_dimension_numbers<[1], [0], [0], [1], [0, 0, 1, 1], [], []>} : vector<16x128xf32>, vector<128x128xf32>, vector<16x128xf32> -> vector<16x128xf32>
    %c0_37 = arith.constant 0 : index
    %c0_38 = arith.constant 0 : index
    %47 = vector.load %arg13[%c0_37, %c0_38] : memref<1x128xf32, #tpu.memory_space<vmem>>, vector<1x128xf32>
    %48 = vector.broadcast %47 : vector<1x128xf32> to vector<16x128xf32>
    %49 = arith.addf %46, %48 : vector<16x128xf32>
    %cst_39 = arith.constant 0.000000e+00 : f32
    %50 = vector.broadcast %cst_39 : f32 to vector<16x128xf32>
    %51 = arith.maximumf %49, %50 : vector<16x128xf32>
    %c0_40 = arith.constant 0 : index
    %c0_41 = arith.constant 0 : index
    %52 = vector.load %arg14[%c0_40, %c0_41] : memref<128x128xf32, #tpu.memory_space<vmem>>, vector<128x128xf32>
    %cst_42 = arith.constant dense<0.000000e+00> : vector<16x128xf32>
    %53 = tpu.matmul %51, %52, %cst_42 {dimension_numbers = #tpu.dot_dimension_numbers<[1], [0], [0], [1], [0, 0, 1, 1], [], []>} : vector<16x128xf32>, vector<128x128xf32>, vector<16x128xf32> -> vector<16x128xf32>
    %c0_43 = arith.constant 0 : index
    %c0_44 = arith.constant 0 : index
    %54 = vector.load %arg15[%c0_43, %c0_44] : memref<1x128xf32, #tpu.memory_space<vmem>>, vector<1x128xf32>
    %55 = vector.broadcast %54 : vector<1x128xf32> to vector<16x128xf32>
    %56 = arith.addf %53, %55 : vector<16x128xf32>
    %cst_45 = arith.constant 0.000000e+00 : f32
    %57 = vector.broadcast %cst_45 : f32 to vector<16x128xf32>
    %58 = arith.maximumf %56, %57 : vector<16x128xf32>
    %c0_46 = arith.constant 0 : index
    %c0_47 = arith.constant 0 : index
    %59 = vector.load %arg16[%c0_46, %c0_47] : memref<128x128xf32, #tpu.memory_space<vmem>>, vector<128x128xf32>
    %cst_48 = arith.constant dense<0.000000e+00> : vector<16x128xf32>
    %60 = tpu.matmul %58, %59, %cst_48 {dimension_numbers = #tpu.dot_dimension_numbers<[1], [0], [0], [1], [0, 0, 1, 1], [], []>} : vector<16x128xf32>, vector<128x128xf32>, vector<16x128xf32> -> vector<16x128xf32>
    %c0_49 = arith.constant 0 : index
    %c0_50 = arith.constant 0 : index
    %61 = vector.load %arg17[%c0_49, %c0_50] : memref<1x128xf32, #tpu.memory_space<vmem>>, vector<1x128xf32>
    %62 = vector.broadcast %61 : vector<1x128xf32> to vector<16x128xf32>
    %63 = arith.addf %60, %62 : vector<16x128xf32>
    %cst_51 = arith.constant 0.000000e+00 : f32
    %64 = vector.broadcast %cst_51 : f32 to vector<16x128xf32>
    %65 = arith.maximumf %63, %64 : vector<16x128xf32>
    %c0_52 = arith.constant 0 : index
    %c0_53 = arith.constant 0 : index
    %66 = vector.load %arg18[%c0_52, %c0_53] : memref<128x256xf32, #tpu.memory_space<vmem>>, vector<128x256xf32>
    %cst_54 = arith.constant dense<0.000000e+00> : vector<16x256xf32>
    %67 = tpu.matmul %65, %66, %cst_54 {dimension_numbers = #tpu.dot_dimension_numbers<[1], [0], [0], [1], [0, 0, 1, 1], [], []>} : vector<16x128xf32>, vector<128x256xf32>, vector<16x256xf32> -> vector<16x256xf32>
    %c0_55 = arith.constant 0 : index
    %c0_56 = arith.constant 0 : index
    %68 = vector.load %arg19[%c0_55, %c0_56] : memref<1x256xf32, #tpu.memory_space<vmem>>, vector<1x256xf32>
    %69 = vector.broadcast %68 : vector<1x256xf32> to vector<16x256xf32>
    %70 = arith.addf %67, %69 : vector<16x256xf32>
    %cst_57 = arith.constant 0.000000e+00 : f32
    %71 = vector.broadcast %cst_57 : f32 to vector<16x256xf32>
    %72 = arith.maximumf %70, %71 : vector<16x256xf32>
    %c0_58 = arith.constant 0 : index
    %c0_59 = arith.constant 0 : index
    %73 = vector.load %arg20[%c0_58, %c0_59] : memref<256x128xf32, #tpu.memory_space<vmem>>, vector<256x128xf32>
    %cst_60 = arith.constant dense<0.000000e+00> : vector<16x128xf32>
    %74 = tpu.matmul %72, %73, %cst_60 {dimension_numbers = #tpu.dot_dimension_numbers<[1], [0], [0], [1], [0, 0, 1, 1], [], []>} : vector<16x256xf32>, vector<256x128xf32>, vector<16x128xf32> -> vector<16x128xf32>
    %c0_61 = arith.constant 0 : index
    %c0_62 = arith.constant 0 : index
    %75 = vector.load %arg21[%c0_61, %c0_62] : memref<1x128xf32, #tpu.memory_space<vmem>>, vector<1x128xf32>
    %76 = vector.broadcast %75 : vector<1x128xf32> to vector<16x128xf32>
    %77 = arith.addf %74, %76 : vector<16x128xf32>
    %c0_63 = arith.constant 0 : index
    %c0_64 = arith.constant 0 : index
    %78 = vector.load %arg22[%c0_63, %c0_64] : memref<16x128xf32, #tpu.memory_space<vmem>>, vector<16x128xf32>
    tpu.vector_store %arg22[%c0_63, %c0_64], %77 {strides = array<i32>} : memref<16x128xf32, #tpu.memory_space<vmem>>, vector<16x128xf32>,
    return
  }
  func.func @transform_0(%arg0: i32) -> (i32, i32) {
    %c0_i32 = arith.constant 0 : i32
    %c0_i32_0 = arith.constant 0 : i32
    return %arg0, %c0_i32 : i32, i32
  }
  func.func @transform_1(%arg0: i32) -> (i32, i32) {
    %c0_i32 = arith.constant 0 : i32
    %c0_i32_0 = arith.constant 0 : i32
    %c0_i32_1 = arith.constant 0 : i32
    return %c0_i32, %c0_i32_0 : i32, i32
  }
  func.func @transform_2(%arg0: i32) -> (i32, i32) {
    %c0_i32 = arith.constant 0 : i32
    %c0_i32_0 = arith.constant 0 : i32
    %c0_i32_1 = arith.constant 0 : i32
    return %c0_i32, %c0_i32_0 : i32, i32
  }
  func.func @transform_3(%arg0: i32) -> (i32, i32) {
    %c0_i32 = arith.constant 0 : i32
    %c0_i32_0 = arith.constant 0 : i32
    %c0_i32_1 = arith.constant 0 : i32
    return %c0_i32, %c0_i32_0 : i32, i32
  }
  func.func @transform_4(%arg0: i32) -> (i32, i32) {
    %c0_i32 = arith.constant 0 : i32
    %c0_i32_0 = arith.constant 0 : i32
    %c0_i32_1 = arith.constant 0 : i32
    return %c0_i32, %c0_i32_0 : i32, i32
  }
  func.func @transform_5(%arg0: i32) -> (i32, i32) {
    %c0_i32 = arith.constant 0 : i32
    %c0_i32_0 = arith.constant 0 : i32
    %c0_i32_1 = arith.constant 0 : i32
    return %c0_i32, %c0_i32_0 : i32, i32
  }
  func.func @transform_6(%arg0: i32) -> (i32, i32) {
    %c0_i32 = arith.constant 0 : i32
    %c0_i32_0 = arith.constant 0 : i32
    %c0_i32_1 = arith.constant 0 : i32
    return %c0_i32, %c0_i32_0 : i32, i32
  }
  func.func @transform_7(%arg0: i32) -> (i32, i32) {
    %c0_i32 = arith.constant 0 : i32
    %c0_i32_0 = arith.constant 0 : i32
    %c0_i32_1 = arith.constant 0 : i32
    return %c0_i32, %c0_i32_0 : i32, i32
  }
  func.func @transform_8(%arg0: i32) -> (i32, i32) {
    %c0_i32 = arith.constant 0 : i32
    %c0_i32_0 = arith.constant 0 : i32
    %c0_i32_1 = arith.constant 0 : i32
    return %c0_i32, %c0_i32_0 : i32, i32
  }
  func.func @transform_9(%arg0: i32) -> (i32, i32) {
    %c0_i32 = arith.constant 0 : i32
    %c0_i32_0 = arith.constant 0 : i32
    %c0_i32_1 = arith.constant 0 : i32
    return %c0_i32, %c0_i32_0 : i32, i32
  }
  func.func @transform_10(%arg0: i32) -> (i32, i32) {
    %c0_i32 = arith.constant 0 : i32
    %c0_i32_0 = arith.constant 0 : i32
    %c0_i32_1 = arith.constant 0 : i32
    return %c0_i32, %c0_i32_0 : i32, i32
  }
  func.func @transform_11(%arg0: i32) -> (i32, i32) {
    %c0_i32 = arith.constant 0 : i32
    %c0_i32_0 = arith.constant 0 : i32
    %c0_i32_1 = arith.constant 0 : i32
    return %c0_i32, %c0_i32_0 : i32, i32
  }
  func.func @transform_12(%arg0: i32) -> (i32, i32) {
    %c0_i32 = arith.constant 0 : i32
    %c0_i32_0 = arith.constant 0 : i32
    %c0_i32_1 = arith.constant 0 : i32
    return %c0_i32, %c0_i32_0 : i32, i32
  }
  func.func @transform_13(%arg0: i32) -> (i32, i32) {
    %c0_i32 = arith.constant 0 : i32
    %c0_i32_0 = arith.constant 0 : i32
    %c0_i32_1 = arith.constant 0 : i32
    return %c0_i32, %c0_i32_0 : i32, i32
  }
  func.func @transform_14(%arg0: i32) -> (i32, i32) {
    %c0_i32 = arith.constant 0 : i32
    %c0_i32_0 = arith.constant 0 : i32
    %c0_i32_1 = arith.constant 0 : i32
    return %c0_i32, %c0_i32_0 : i32, i32
  }
  func.func @transform_15(%arg0: i32) -> (i32, i32) {
    %c0_i32 = arith.constant 0 : i32
    %c0_i32_0 = arith.constant 0 : i32
    %c0_i32_1 = arith.constant 0 : i32
    return %c0_i32, %c0_i32_0 : i32, i32
  }
  func.func @transform_16(%arg0: i32) -> (i32, i32) {
    %c0_i32 = arith.constant 0 : i32
    %c0_i32_0 = arith.constant 0 : i32
    %c0_i32_1 = arith.constant 0 : i32
    return %c0_i32, %c0_i32_0 : i32, i32
  }
  func.func @transform_17(%arg0: i32) -> (i32, i32) {
    %c0_i32 = arith.constant 0 : i32
    %c0_i32_0 = arith.constant 0 : i32
    %c0_i32_1 = arith.constant 0 : i32
    return %c0_i32, %c0_i32_0 : i32, i32
  }
  func.func @transform_18(%arg0: i32) -> (i32, i32) {
    %c0_i32 = arith.constant 0 : i32
    %c0_i32_0 = arith.constant 0 : i32
    %c0_i32_1 = arith.constant 0 : i32
    return %c0_i32, %c0_i32_0 : i32, i32
  }
  func.func @transform_19(%arg0: i32) -> (i32, i32) {
    %c0_i32 = arith.constant 0 : i32
    %c0_i32_0 = arith.constant 0 : i32
    %c0_i32_1 = arith.constant 0 : i32
    return %c0_i32, %c0_i32_0 : i32, i32
  }
  func.func @transform_20(%arg0: i32) -> (i32, i32) {
    %c0_i32 = arith.constant 0 : i32
    %c0_i32_0 = arith.constant 0 : i32
    %c0_i32_1 = arith.constant 0 : i32
    return %c0_i32, %c0_i32_0 : i32, i32
  }
  func.func @transform_21(%arg0: i32) -> (i32, i32) {
    %c0_i32 = arith.constant 0 : i32
    %c0_i32_0 = arith.constant 0 : i32
    return %arg0, %c0_i32 : i32, i32
  }
}

module attributes {stable_mosaic.version = 11 : i64} {
  func.func @autoencoder_kernel(%arg0: i32, %arg1: memref<16x32xf32, #tpu.memory_space<vmem>>, %arg2: memref<32x256xf32, #tpu.memory_space<vmem>>, %arg3: memref<1x256xf32, #tpu.memory_space<vmem>>, %arg4: memref<256x128xf32, #tpu.memory_space<vmem>>, %arg5: memref<1x128xf32, #tpu.memory_space<vmem>>, %arg6: memref<128x128xf32, #tpu.memory_space<vmem>>, %arg7: memref<1x128xf32, #tpu.memory_space<vmem>>, %arg8: memref<128x128xf32, #tpu.memory_space<vmem>>, %arg9: memref<1x128xf32, #tpu.memory_space<vmem>>, %arg10: memref<128x128xf32, #tpu.memory_space<vmem>>, %arg11: memref<1x128xf32, #tpu.memory_space<vmem>>, %arg12: memref<128x128xf32, #tpu.memory_space<vmem>>, %arg13: memref<1x128xf32, #tpu.memory_space<vmem>>, %arg14: memref<128x128xf32, #tpu.memory_space<vmem>>, %arg15: memref<1x128xf32, #tpu.memory_space<vmem>>, %arg16: memref<128x128xf32, #tpu.memory_space<vmem>>, %arg17: memref<1x128xf32, #tpu.memory_space<vmem>>, %arg18: memref<128x256xf32, #tpu.memory_space<vmem>>, %arg19: memref<1x256xf32, #tpu.memory_space<vmem>>, %arg20: memref<256x128xf32, #tpu.memory_space<vmem>>, %arg21: memref<1x128xf32, #tpu.memory_space<vmem>>, %arg22: memref<16x128xf32, #tpu.memory_space<vmem>>) attributes {dimension_semantics = [#tpu.dimension_semantics<parallel>], iteration_bounds = array<i64: 2>, scalar_prefetch = 0 : i64, scratch_operands = 0 : i64, tpu.core_type = #tpu.core_type<tc>, window_params = [{transform_indices = @transform_0, window_bounds = array<i64: 16, 32>}, {pipeline_mode = #tpu.pipeline_mode<synchronous>, transform_indices = @transform_1, window_bounds = array<i64: 32, 256>}, {pipeline_mode = #tpu.pipeline_mode<synchronous>, transform_indices = @transform_2, window_bounds = array<i64: 1, 256>}, {pipeline_mode = #tpu.pipeline_mode<synchronous>, transform_indices = @transform_3, window_bounds = array<i64: 256, 128>}, {pipeline_mode = #tpu.pipeline_mode<synchronous>, transform_indices = @transform_4, window_bounds = array<i64: 1, 128>}, {pipeline_mode = #tpu.pipeline_mode<synchronous>, transform_indices = @transform_5, window_bounds = array<i64: 128, 128>}, {pipeline_mode = #tpu.pipeline_mode<synchronous>, transform_indices = @transform_6, window_bounds = array<i64: 1, 128>}, {pipeline_mode = #tpu.pipeline_mode<synchronous>, transform_indices = @transform_7, window_bounds = array<i64: 128, 128>}, {pipeline_mode = #tpu.pipeline_mode<synchronous>, transform_indices = @transform_8, window_bounds = array<i64: 1, 128>}, {pipeline_mode = #tpu.pipeline_mode<synchronous>, transform_indices = @transform_9, window_bounds = array<i64: 128, 128>}, {pipeline_mode = #tpu.pipeline_mode<synchronous>, transform_indices = @transform_10, window_bounds = array<i64: 1, 128>}, {pipeline_mode = #tpu.pipeline_mode<synchronous>, transform_indices = @transform_11, window_bounds = array<i64: 128, 128>}, {pipeline_mode = #tpu.pipeline_mode<synchronous>, transform_indices = @transform_12, window_bounds = array<i64: 1, 128>}, {pipeline_mode = #tpu.pipeline_mode<synchronous>, transform_indices = @transform_13, window_bounds = array<i64: 128, 128>}, {pipeline_mode = #tpu.pipeline_mode<synchronous>, transform_indices = @transform_14, window_bounds = array<i64: 1, 128>}, {pipeline_mode = #tpu.pipeline_mode<synchronous>, transform_indices = @transform_15, window_bounds = array<i64: 128, 128>}, {pipeline_mode = #tpu.pipeline_mode<synchronous>, transform_indices = @transform_16, window_bounds = array<i64: 1, 128>}, {pipeline_mode = #tpu.pipeline_mode<synchronous>, transform_indices = @transform_17, window_bounds = array<i64: 128, 256>}, {pipeline_mode = #tpu.pipeline_mode<synchronous>, transform_indices = @transform_18, window_bounds = array<i64: 1, 256>}, {pipeline_mode = #tpu.pipeline_mode<synchronous>, transform_indices = @transform_19, window_bounds = array<i64: 256, 128>}, {pipeline_mode = #tpu.pipeline_mode<synchronous>, transform_indices = @transform_20, window_bounds = array<i64: 1, 128>}, {transform_indices = @transform_21, window_bounds = array<i64: 16, 128>}]} {
    %c0 = arith.constant 0 : index
    %c0_0 = arith.constant 0 : index
    %0 = vector.load %arg1[%c0, %c0_0] : memref<16x32xf32, #tpu.memory_space<vmem>>, vector<16x32xf32>
    %c0_1 = arith.constant 0 : index
    %c0_2 = arith.constant 0 : index
    %1 = vector.load %arg2[%c0_1, %c0_2] : memref<32x256xf32, #tpu.memory_space<vmem>>, vector<32x256xf32>
    %cst = arith.constant dense<0.000000e+00> : vector<16x256xf32>
    %2 = tpu.matmul %0, %1, %cst {dimension_numbers = #tpu.dot_dimension_numbers<[1], [0], [0], [1], [0, 0, 1, 1], [], []>} : vector<16x32xf32>, vector<32x256xf32>, vector<16x256xf32> -> vector<16x256xf32>
    %c0_3 = arith.constant 0 : index
    %c0_4 = arith.constant 0 : index
    %3 = vector.load %arg3[%c0_3, %c0_4] : memref<1x256xf32, #tpu.memory_space<vmem>>, vector<1x256xf32>
    %4 = vector.broadcast %3 : vector<1x256xf32> to vector<16x256xf32>
    %5 = arith.addf %2, %4 : vector<16x256xf32>
    %cst_5 = arith.constant 0.000000e+00 : f32
    %6 = vector.broadcast %cst_5 : f32 to vector<16x256xf32>
    %7 = arith.maximumf %5, %6 : vector<16x256xf32>
    %c0_6 = arith.constant 0 : index
    %c0_7 = arith.constant 0 : index
    %8 = vector.load %arg4[%c0_6, %c0_7] : memref<256x128xf32, #tpu.memory_space<vmem>>, vector<256x128xf32>
    %cst_8 = arith.constant dense<0.000000e+00> : vector<16x128xf32>
    %9 = tpu.matmul %7, %8, %cst_8 {dimension_numbers = #tpu.dot_dimension_numbers<[1], [0], [0], [1], [0, 0, 1, 1], [], []>} : vector<16x256xf32>, vector<256x128xf32>, vector<16x128xf32> -> vector<16x128xf32>
    %c0_9 = arith.constant 0 : index
    %c0_10 = arith.constant 0 : index
    %10 = vector.load %arg5[%c0_9, %c0_10] : memref<1x128xf32, #tpu.memory_space<vmem>>, vector<1x128xf32>
    %11 = vector.broadcast %10 : vector<1x128xf32> to vector<16x128xf32>
    %12 = arith.addf %9, %11 : vector<16x128xf32>
    %cst_11 = arith.constant 0.000000e+00 : f32
    %13 = vector.broadcast %cst_11 : f32 to vector<16x128xf32>
    %14 = arith.maximumf %12, %13 : vector<16x128xf32>
    %c0_12 = arith.constant 0 : index
    %c0_13 = arith.constant 0 : index
    %15 = vector.load %arg6[%c0_12, %c0_13] : memref<128x128xf32, #tpu.memory_space<vmem>>, vector<128x128xf32>
    %cst_14 = arith.constant dense<0.000000e+00> : vector<16x128xf32>
    %16 = tpu.matmul %14, %15, %cst_14 {dimension_numbers = #tpu.dot_dimension_numbers<[1], [0], [0], [1], [0, 0, 1, 1], [], []>} : vector<16x128xf32>, vector<128x128xf32>, vector<16x128xf32> -> vector<16x128xf32>
    %c0_15 = arith.constant 0 : index
    %c0_16 = arith.constant 0 : index
    %17 = vector.load %arg7[%c0_15, %c0_16] : memref<1x128xf32, #tpu.memory_space<vmem>>, vector<1x128xf32>
    %18 = vector.broadcast %17 : vector<1x128xf32> to vector<16x128xf32>
    %19 = arith.addf %16, %18 : vector<16x128xf32>
    %cst_17 = arith.constant 0.000000e+00 : f32
    %20 = vector.broadcast %cst_17 : f32 to vector<16x128xf32>
    %21 = arith.maximumf %19, %20 : vector<16x128xf32>
    %c0_18 = arith.constant 0 : index
    %c0_19 = arith.constant 0 : index
    %22 = vector.load %arg8[%c0_18, %c0_19] : memref<128x128xf32, #tpu.memory_space<vmem>>, vector<128x128xf32>
    %cst_20 = arith.constant dense<0.000000e+00> : vector<16x128xf32>
    %23 = tpu.matmul %21, %22, %cst_20 {dimension_numbers = #tpu.dot_dimension_numbers<[1], [0], [0], [1], [0, 0, 1, 1], [], []>} : vector<16x128xf32>, vector<128x128xf32>, vector<16x128xf32> -> vector<16x128xf32>
    %c0_21 = arith.constant 0 : index
    %c0_22 = arith.constant 0 : index
    %24 = vector.load %arg9[%c0_21, %c0_22] : memref<1x128xf32, #tpu.memory_space<vmem>>, vector<1x128xf32>
    %25 = vector.broadcast %24 : vector<1x128xf32> to vector<16x128xf32>
    %26 = arith.addf %23, %25 : vector<16x128xf32>
    %cst_23 = arith.constant 0.000000e+00 : f32
    %27 = vector.broadcast %cst_23 : f32 to vector<16x128xf32>
    %28 = arith.maximumf %26, %27 : vector<16x128xf32>
    %c0_24 = arith.constant 0 : index
    %c0_25 = arith.constant 0 : index
    %29 = vector.load %arg10[%c0_24, %c0_25] : memref<128x128xf32, #tpu.memory_space<vmem>>, vector<128x128xf32>
    %cst_26 = arith.constant dense<0.000000e+00> : vector<16x128xf32>
    %30 = tpu.matmul %28, %29, %cst_26 {dimension_numbers = #tpu.dot_dimension_numbers<[1], [0], [0], [1], [0, 0, 1, 1], [], []>} : vector<16x128xf32>, vector<128x128xf32>, vector<16x128xf32> -> vector<16x128xf32>
    %c0_27 = arith.constant 0 : index
    %c0_28 = arith.constant 0 : index
    %31 = vector.load %arg11[%c0_27, %c0_28] : memref<1x128xf32, #tpu.memory_space<vmem>>, vector<1x128xf32>
    %32 = vector.broadcast %31 : vector<1x128xf32> to vector<16x128xf32>
    %33 = arith.addf %30, %32 : vector<16x128xf32>
    %cst_29 = arith.constant 5.000000e-01 : f32
    %34 = vector.broadcast %cst_29 : f32 to vector<16x128xf32>
    %35 = arith.mulf %34, %33 : vector<16x128xf32>
    %36 = math.tanh %35 : vector<16x128xf32>
    %cst_30 = arith.constant 1.000000e+00 : f32
    %37 = vector.broadcast %cst_30 : f32 to vector<16x128xf32>
    %38 = arith.addf %36, %37 : vector<16x128xf32>
    %cst_31 = arith.constant 5.000000e-01 : f32
    %39 = vector.broadcast %cst_31 : f32 to vector<16x128xf32>
    %40 = arith.mulf %39, %38 : vector<16x128xf32>
    %cst_32 = arith.constant 1.000000e+00 : f32
    %41 = vector.broadcast %cst_32 : f32 to vector<16x128xf32>
    %42 = arith.mulf %41, %40 : vector<16x128xf32>
    %cst_33 = arith.constant 0.000000e+00 : f32
    %43 = vector.broadcast %cst_33 : f32 to vector<16x128xf32>
    %44 = arith.addf %43, %42 : vector<16x128xf32>
    %c0_34 = arith.constant 0 : index
    %c0_35 = arith.constant 0 : index
    %45 = vector.load %arg12[%c0_34, %c0_35] : memref<128x128xf32, #tpu.memory_space<vmem>>, vector<128x128xf32>
    %cst_36 = arith.constant dense<0.000000e+00> : vector<16x128xf32>
    %46 = tpu.matmul %44, %45, %cst_36 {dimension_numbers = #tpu.dot_dimension_numbers<[1], [0], [0], [1], [0, 0, 1, 1], [], []>} : vector<16x128xf32>, vector<128x128xf32>, vector<16x128xf32> -> vector<16x128xf32>
    %c0_37 = arith.constant 0 : index
    %c0_38 = arith.constant 0 : index
    %47 = vector.load %arg13[%c0_37, %c0_38] : memref<1x128xf32, #tpu.memory_space<vmem>>, vector<1x128xf32>
    %48 = vector.broadcast %47 : vector<1x128xf32> to vector<16x128xf32>
    %49 = arith.addf %46, %48 : vector<16x128xf32>
    %cst_39 = arith.constant 0.000000e+00 : f32
    %50 = vector.broadcast %cst_39 : f32 to vector<16x128xf32>
    %51 = arith.maximumf %49, %50 : vector<16x128xf32>
    %c0_40 = arith.constant 0 : index
    %c0_41 = arith.constant 0 : index
    %52 = vector.load %arg14[%c0_40, %c0_41] : memref<128x128xf32, #tpu.memory_space<vmem>>, vector<128x128xf32>
    %cst_42 = arith.constant dense<0.000000e+00> : vector<16x128xf32>
    %53 = tpu.matmul %51, %52, %cst_42 {dimension_numbers = #tpu.dot_dimension_numbers<[1], [0], [0], [1], [0, 0, 1, 1], [], []>} : vector<16x128xf32>, vector<128x128xf32>, vector<16x128xf32> -> vector<16x128xf32>
    %c0_43 = arith.constant 0 : index
    %c0_44 = arith.constant 0 : index
    %54 = vector.load %arg15[%c0_43, %c0_44] : memref<1x128xf32, #tpu.memory_space<vmem>>, vector<1x128xf32>
    %55 = vector.broadcast %54 : vector<1x128xf32> to vector<16x128xf32>
    %56 = arith.addf %53, %55 : vector<16x128xf32>
    %cst_45 = arith.constant 0.000000e+00 : f32
    %57 = vector.broadcast %cst_45 : f32 to vector<16x128xf32>
    %58 = arith.maximumf %56, %57 : vector<16x128xf32>
    %c0_46 = arith.constant 0 : index
    %c0_47 = arith.constant 0 : index
    %59 = vector.load %arg16[%c0_46, %c0_47] : memref<128x128xf32, #tpu.memory_space<vmem>>, vector<128x128xf32>
    %cst_48 = arith.constant dense<0.000000e+00> : vector<16x128xf32>
    %60 = tpu.matmul %58, %59, %cst_48 {dimension_numbers = #tpu.dot_dimension_numbers<[1], [0], [0], [1], [0, 0, 1, 1], [], []>} : vector<16x128xf32>, vector<128x128xf32>, vector<16x128xf32> -> vector<16x128xf32>
    %c0_49 = arith.constant 0 : index
    %c0_50 = arith.constant 0 : index
    %61 = vector.load %arg17[%c0_49, %c0_50] : memref<1x128xf32, #tpu.memory_space<vmem>>, vector<1x128xf32>
    %62 = vector.broadcast %61 : vector<1x128xf32> to vector<16x128xf32>
    %63 = arith.addf %60, %62 : vector<16x128xf32>
    %cst_51 = arith.constant 0.000000e+00 : f32
    %64 = vector.broadcast %cst_51 : f32 to vector<16x128xf32>
    %65 = arith.maximumf %63, %64 : vector<16x128xf32>
    %c0_52 = arith.constant 0 : index
    %c0_53 = arith.constant 0 : index
    %66 = vector.load %arg18[%c0_52, %c0_53] : memref<128x256xf32, #tpu.memory_space<vmem>>, vector<128x256xf32>
    %cst_54 = arith.constant dense<0.000000e+00> : vector<16x256xf32>
    %67 = tpu.matmul %65, %66, %cst_54 {dimension_numbers = #tpu.dot_dimension_numbers<[1], [0], [0], [1], [0, 0, 1, 1], [], []>} : vector<16x128xf32>, vector<128x256xf32>, vector<16x256xf32> -> vector<16x256xf32>
    %c0_55 = arith.constant 0 : index
    %c0_56 = arith.constant 0 : index
    %68 = vector.load %arg19[%c0_55, %c0_56] : memref<1x256xf32, #tpu.memory_space<vmem>>, vector<1x256xf32>
    %69 = vector.broadcast %68 : vector<1x256xf32> to vector<16x256xf32>
    %70 = arith.addf %67, %69 : vector<16x256xf32>
    %cst_57 = arith.constant 0.000000e+00 : f32
    %71 = vector.broadcast %cst_57 : f32 to vector<16x256xf32>
    %72 = arith.maximumf %70, %71 : vector<16x256xf32>
    %c0_58 = arith.constant 0 : index
    %c0_59 = arith.constant 0 : index
    %73 = vector.load %arg20[%c0_58, %c0_59] : memref<256x128xf32, #tpu.memory_space<vmem>>, vector<256x128xf32>
    %cst_60 = arith.constant dense<0.000000e+00> : vector<16x128xf32>
    %74 = tpu.matmul %72, %73, %cst_60 {dimension_numbers = #tpu.dot_dimension_numbers<[1], [0], [0], [1], [0, 0, 1, 1], [], []>} : vector<16x256xf32>, vector<256x128xf32>, vector<16x128xf32> -> vector<16x128xf32>
    %c0_61 = arith.constant 0 : index
    %c0_62 = arith.constant 0 : index
    %75 = vector.load %arg21[%c0_61, %c0_62] : memref<1x128xf32, #tpu.memory_space<vmem>>, vector<1x128xf32>
    %76 = vector.broadcast %75 : vector<1x128xf32> to vector<16x128xf32>
    %77 = arith.addf %74, %76 : vector<16x128xf32>
    %c0_63 = arith.constant 0 : index
    %c0_64 = arith.constant 0 : index
    %78 = vector.load %arg22[%c0_63, %c0_64] : memref<16x128xf32, #tpu.memory_space<vmem>>, vector<16x128xf32>
    tpu.vector_store %arg22[%c0_63, %c0_64], %77 {strides = array<i32>} : memref<16x128xf32, #tpu.memory_space<vmem>>, vector<16x128xf32>,
    return
  }
  func.func @transform_0(%arg0: i32) -> (i32, i32) {
    %c0_i32 = arith.constant 0 : i32
    %c0_i32_0 = arith.constant 0 : i32
    return %arg0, %c0_i32 : i32, i32
  }
  func.func @transform_1(%arg0: i32) -> (i32, i32) {
    %c0_i32 = arith.constant 0 : i32
    %c0_i32_0 = arith.constant 0 : i32
    %c0_i32_1 = arith.constant 0 : i32
    return %c0_i32, %c0_i32_0 : i32, i32
  }
  func.func @transform_2(%arg0: i32) -> (i32, i32) {
    %c0_i32 = arith.constant 0 : i32
    %c0_i32_0 = arith.constant 0 : i32
    %c0_i32_1 = arith.constant 0 : i32
    return %c0_i32, %c0_i32_0 : i32, i32
  }
  func.func @transform_3(%arg0: i32) -> (i32, i32) {
    %c0_i32 = arith.constant 0 : i32
    %c0_i32_0 = arith.constant 0 : i32
    %c0_i32_1 = arith.constant 0 : i32
    return %c0_i32, %c0_i32_0 : i32, i32
  }
  func.func @transform_4(%arg0: i32) -> (i32, i32) {
    %c0_i32 = arith.constant 0 : i32
    %c0_i32_0 = arith.constant 0 : i32
    %c0_i32_1 = arith.constant 0 : i32
    return %c0_i32, %c0_i32_0 : i32, i32
  }
  func.func @transform_5(%arg0: i32) -> (i32, i32) {
    %c0_i32 = arith.constant 0 : i32
    %c0_i32_0 = arith.constant 0 : i32
    %c0_i32_1 = arith.constant 0 : i32
    return %c0_i32, %c0_i32_0 : i32, i32
  }
  func.func @transform_6(%arg0: i32) -> (i32, i32) {
    %c0_i32 = arith.constant 0 : i32
    %c0_i32_0 = arith.constant 0 : i32
    %c0_i32_1 = arith.constant 0 : i32
    return %c0_i32, %c0_i32_0 : i32, i32
  }
  func.func @transform_7(%arg0: i32) -> (i32, i32) {
    %c0_i32 = arith.constant 0 : i32
    %c0_i32_0 = arith.constant 0 : i32
    %c0_i32_1 = arith.constant 0 : i32
    return %c0_i32, %c0_i32_0 : i32, i32
  }
  func.func @transform_8(%arg0: i32) -> (i32, i32) {
    %c0_i32 = arith.constant 0 : i32
    %c0_i32_0 = arith.constant 0 : i32
    %c0_i32_1 = arith.constant 0 : i32
    return %c0_i32, %c0_i32_0 : i32, i32
  }
  func.func @transform_9(%arg0: i32) -> (i32, i32) {
    %c0_i32 = arith.constant 0 : i32
    %c0_i32_0 = arith.constant 0 : i32
    %c0_i32_1 = arith.constant 0 : i32
    return %c0_i32, %c0_i32_0 : i32, i32
  }
  func.func @transform_10(%arg0: i32) -> (i32, i32) {
    %c0_i32 = arith.constant 0 : i32
    %c0_i32_0 = arith.constant 0 : i32
    %c0_i32_1 = arith.constant 0 : i32
    return %c0_i32, %c0_i32_0 : i32, i32
  }
  func.func @transform_11(%arg0: i32) -> (i32, i32) {
    %c0_i32 = arith.constant 0 : i32
    %c0_i32_0 = arith.constant 0 : i32
    %c0_i32_1 = arith.constant 0 : i32
    return %c0_i32, %c0_i32_0 : i32, i32
  }
  func.func @transform_12(%arg0: i32) -> (i32, i32) {
    %c0_i32 = arith.constant 0 : i32
    %c0_i32_0 = arith.constant 0 : i32
    %c0_i32_1 = arith.constant 0 : i32
    return %c0_i32, %c0_i32_0 : i32, i32
  }
  func.func @transform_13(%arg0: i32) -> (i32, i32) {
    %c0_i32 = arith.constant 0 : i32
    %c0_i32_0 = arith.constant 0 : i32
    %c0_i32_1 = arith.constant 0 : i32
    return %c0_i32, %c0_i32_0 : i32, i32
  }
  func.func @transform_14(%arg0: i32) -> (i32, i32) {
    %c0_i32 = arith.constant 0 : i32
    %c0_i32_0 = arith.constant 0 : i32
    %c0_i32_1 = arith.constant 0 : i32
    return %c0_i32, %c0_i32_0 : i32, i32
  }
  func.func @transform_15(%arg0: i32) -> (i32, i32) {
    %c0_i32 = arith.constant 0 : i32
    %c0_i32_0 = arith.constant 0 : i32
    %c0_i32_1 = arith.constant 0 : i32
    return %c0_i32, %c0_i32_0 : i32, i32
  }
  func.func @transform_16(%arg0: i32) -> (i32, i32) {
    %c0_i32 = arith.constant 0 : i32
    %c0_i32_0 = arith.constant 0 : i32
    %c0_i32_1 = arith.constant 0 : i32
    return %c0_i32, %c0_i32_0 : i32, i32
  }
  func.func @transform_17(%arg0: i32) -> (i32, i32) {
    %c0_i32 = arith.constant 0 : i32
    %c0_i32_0 = arith.constant 0 : i32
    %c0_i32_1 = arith.constant 0 : i32
    return %c0_i32, %c0_i32_0 : i32, i32
  }
  func.func @transform_18(%arg0: i32) -> (i32, i32) {
    %c0_i32 = arith.constant 0 : i32
    %c0_i32_0 = arith.constant 0 : i32
    %c0_i32_1 = arith.constant 0 : i32
    return %c0_i32, %c0_i32_0 : i32, i32
  }
  func.func @transform_19(%arg0: i32) -> (i32, i32) {
    %c0_i32 = arith.constant 0 : i32
    %c0_i32_0 = arith.constant 0 : i32
    %c0_i32_1 = arith.constant 0 : i32
    return %c0_i32, %c0_i32_0 : i32, i32
  }
  func.func @transform_20(%arg0: i32) -> (i32, i32) {
    %c0_i32 = arith.constant 0 : i32
    %c0_i32_0 = arith.constant 0 : i32
    %c0_i32_1 = arith.constant 0 : i32
    return %c0_i32, %c0_i32_0 : i32, i32
  }
  func.func @transform_21(%arg0: i32) -> (i32, i32) {
    %c0_i32 = arith.constant 0 : i32
    %c0_i32_0 = arith.constant 0 : i32
    return %arg0, %c0_i32 : i32, i32
  }
}

</mosaic_0001>

<llo_original>
// kernel: tpu_custom_call.1
$region0: #{tpu_custom_call.1}
  #allocation0 [shape = 'u32[]', space=smem, size = 0x4, offset = 0x4, fixed_abs, tag = 'smem constant byte address 0x4 - core index']
  #allocation1 [shape = 'u32[72,128]{1,0:T(1,128)}', space=vmem, size = 0x9000, scoped, tag = 'internal scratch']
  %s0 = inlined_call_operand.hbm [shape: f32[32,32], index: 0, kind: input, shape index: {}]
  %s1 = inlined_call_operand.hbm [shape: f32[32,256], index: 1, kind: input, shape index: {}]
  %s2 = inlined_call_operand.hbm [shape: f32[1,256], index: 2, kind: input, shape index: {}]
  %s3 = inlined_call_operand.hbm [shape: f32[256,128], index: 3, kind: input, shape index: {}]
  %s4 = inlined_call_operand.vmem [shape: f32[1,128], index: 4, kind: input, shape index: {}]
  %s5 = inlined_call_operand.hbm [shape: f32[128,128], index: 5, kind: input, shape index: {}]
  %s6 = inlined_call_operand.vmem [shape: f32[1,128], index: 6, kind: input, shape index: {}]
  %s7 = inlined_call_operand.hbm [shape: f32[128,128], index: 7, kind: input, shape index: {}]
  %s8 = inlined_call_operand.vmem [shape: f32[1,128], index: 8, kind: input, shape index: {}]
  %s9 = inlined_call_operand.hbm [shape: f32[128,128], index: 9, kind: input, shape index: {}]
  %s10 = inlined_call_operand.vmem [shape: f32[1,128], index: 10, kind: input, shape index: {}]
  %s11 = inlined_call_operand.hbm [shape: f32[128,128], index: 11, kind: input, shape index: {}]
  %s12 = inlined_call_operand.vmem [shape: f32[1,128], index: 12, kind: input, shape index: {}]
  %s13 = inlined_call_operand.hbm [shape: f32[128,128], index: 13, kind: input, shape index: {}]
  %s14 = inlined_call_operand.vmem [shape: f32[1,128], index: 14, kind: input, shape index: {}]
  %s15 = inlined_call_operand.hbm [shape: f32[128,128], index: 15, kind: input, shape index: {}]
  %s16 = inlined_call_operand.vmem [shape: f32[1,128], index: 16, kind: input, shape index: {}]
  %s17 = inlined_call_operand.hbm [shape: f32[128,256], index: 17, kind: input, shape index: {}]
  %s18 = inlined_call_operand.vmem [shape: f32[1,256], index: 18, kind: input, shape index: {}]
  %s19 = inlined_call_operand.hbm [shape: f32[256,128], index: 19, kind: input, shape index: {}]
  %s20 = inlined_call_operand.vmem [shape: f32[1,128], index: 20, kind: input, shape index: {}]
  %s21 = inlined_call_operand.hbm [shape: f32[32,128], index: 21, kind: output, shape index: {}]
  %s22 = sld [smem:[#allocation0]]
  $region165: #{tpu_custom_call.1} parent=0
    _
  %s24 = ssub.s32 1, %s22
  %s25 = scalar_select 0, %s24, %s22
  $region1: #{tpu_custom_call.1} parent=0
    #allocation2 [shape = 'u8[16384]{0}', space=vmem, size = 0x4000, scoped, tag = 'input window, operand 0']
    #allocation3 [shape = 's32[2]{0}', space=sflag, size = 0x8, scoped, tag = 'scoped memory for tpu_custom_call.1']
    #allocation4 [shape = 's32[2]{0}', space=sflag, size = 0x8, scoped, tag = 'scoped memory for tpu_custom_call.1']
    #allocation5 [shape = 'u8[32768]{0}', space=vmem, size = 0x8000, scoped, tag = 'input window, operand 1, single buffered']
    #allocation6 [shape = 's32[1]{0}', space=sflag, size = 0x4, scoped, tag = 'scoped memory for tpu_custom_call.1']
    #allocation7 [shape = 'u8[1024]{0}', space=vmem, size = 0x400, scoped, tag = 'input window, operand 2, single buffered']
    #allocation8 [shape = 'u8[131072]{0}', space=vmem, size = 0x20000, scoped, tag = 'input window, operand 3, single buffered']
    #allocation9 [shape = 's32[1]{0}', space=sflag, size = 0x4, scoped, tag = 'scoped memory for tpu_custom_call.1']
    #allocation10 [shape = 'u8[65536]{0}', space=vmem, size = 0x10000, scoped, tag = 'input window, operand 5, single buffered']
    #allocation11 [shape = 'u8[65536]{0}', space=vmem, size = 0x10000, scoped, tag = 'input window, operand 7, single buffered']
    #allocation12 [shape = 's32[1]{0}', space=sflag, size = 0x4, scoped, tag = 'scoped memory for tpu_custom_call.1']
    #allocation13 [shape = 'u8[65536]{0}', space=vmem, size = 0x10000, scoped, tag = 'input window, operand 9, single buffered']
    #allocation14 [shape = 'u8[65536]{0}', space=vmem, size = 0x10000, scoped, tag = 'input window, operand 11, single buffered']
    #allocation15 [shape = 's32[1]{0}', space=sflag, size = 0x4, scoped, tag = 'scoped memory for tpu_custom_call.1']
    #allocation16 [shape = 'u8[65536]{0}', space=vmem, size = 0x10000, scoped, tag = 'input window, operand 13, single buffered']
    #allocation17 [shape = 'u8[65536]{0}', space=vmem, size = 0x10000, scoped, tag = 'input window, operand 15, single buffered']
    #allocation18 [shape = 's32[1]{0}', space=sflag, size = 0x4, scoped, tag = 'scoped memory for tpu_custom_call.1']
    #allocation19 [shape = 'u8[131072]{0}', space=vmem, size = 0x20000, scoped, tag = 'input window, operand 17, single buffered']
    #allocation20 [shape = 'u8[131072]{0}', space=vmem, size = 0x20000, scoped, tag = 'input window, operand 19, single buffered']
    #allocation21 [shape = 's32[1]{0}', space=sflag, size = 0x4, scoped, tag = 'scoped memory for tpu_custom_call.1']
    #allocation22 [shape = 'u8[16384]{0}', space=vmem, size = 0x4000, scoped, tag = 'output window, operand 0']
    %26 = vsyncpa [#allocation3], 0
    %s27 = scalar_lea.sflag [#allocation3], 1
    %28 = vsyncpa %s27, 0
    %29 = vsyncpa [#allocation6], 0
    %30 = vsyncpa [#allocation9], 0
    %31 = vsyncpa [#allocation12], 0
    %32 = vsyncpa [#allocation15], 0
    %33 = vsyncpa [#allocation18], 0
    %34 = vsyncpa [#allocation21], 0
    %35 = vsyncpa [#allocation4], 0
    %s36 = scalar_lea.sflag [#allocation4], 1
    %37 = vsyncpa %s36, 0
    loop: start=0, step=1, limit=4
    $region2: #{tpu_custom_call.1} parent=1 // loop_pre_header
      _
    $region3: #{tpu_custom_call.1} parent=1 // loop_header
      %s39 = sphi 0, %s43
      %p40 = scmp.ge.s32.totalorder %s39, 4
      %s49 = sphi 0, %s51
      %s52 = sphi 0, %s49
      %s53 = sphi 0, %s52
      %s69 = sphi 0, %s53
      %s73 = sphi 0, %s73
      %s75 = sphi 0, %s73
      %s76 = sphi 0, %s75
      %s90 = sphi 0, %s76
      %s94 = sphi 0, %s94
      %s96 = sphi 0, %s94
      %s97 = sphi 0, %s96
      %s111 = sphi 0, %s97
      %s115 = sphi 0, %s115
      %s117 = sphi 0, %s115
      %s118 = sphi 0, %s117
      %s132 = sphi 0, %s118
      %s136 = sphi 0, %s136
      %s138 = sphi 0, %s136
      %s139 = sphi 0, %s138
      %s153 = sphi 0, %s139
      %s157 = sphi 0, %s157
      %s159 = sphi 0, %s157
      %s160 = sphi 0, %s159
      %s174 = sphi 0, %s160
      %s178 = sphi 0, %s178
      %s180 = sphi 0, %s178
      %s181 = sphi 0, %s180
      %s195 = sphi 0, %s181
      %s199 = sphi 0, %s199
      %s201 = sphi 0, %s199
      %s202 = sphi 0, %s201
      %s216 = sphi 0, %s202
      %s220 = sphi 0, %s220
      %s222 = sphi 0, %s220
      %s223 = sphi 0, %s222
      %s237 = sphi 0, %s223
      %s241 = sphi 0, %s241
      %s243 = sphi 0, %s241
      %s244 = sphi 0, %s243
      %s258 = sphi 0, %s244
      %s262 = sphi 0, %s262
      %s264 = sphi 0, %s262
      %s265 = sphi 0, %s264
      %s279 = sphi 0, %s265
      %s283 = sphi 0, %s283
      %s285 = sphi 0, %s283
      %s286 = sphi 0, %s285
      %s300 = sphi 0, %s286
      %s304 = sphi 0, %s304
      %s306 = sphi 0, %s304
      %s307 = sphi 0, %s306
      %s321 = sphi 0, %s307
      %s325 = sphi 0, %s325
      %s327 = sphi 0, %s325
      %s328 = sphi 0, %s327
      %s342 = sphi 0, %s328
      %s346 = sphi 0, %s346
      %s348 = sphi 0, %s346
      %s349 = sphi 0, %s348
      %s363 = sphi 0, %s349
      %s367 = sphi 0, %s367
      %s369 = sphi 0, %s367
      %s370 = sphi 0, %s369
      %s384 = sphi 0, %s370
      %s388 = sphi 0, %s388
      %s390 = sphi 0, %s388
      %s391 = sphi 0, %s390
      %s405 = sphi 0, %s391
      %s409 = sphi 0, %s409
      %s411 = sphi 0, %s409
      %s412 = sphi 0, %s411
      %s426 = sphi 0, %s412
      %s430 = sphi 0, %s430
      %s432 = sphi 0, %s430
      %s433 = sphi 0, %s432
      %s447 = sphi 0, %s433
      %s451 = sphi 0, %s451
      %s453 = sphi 0, %s451
      %s454 = sphi 0, %s453
      %s468 = sphi 0, %s454
      %s472 = sphi 0, %s472
      %s474 = sphi 0, %s472
      %s475 = sphi 0, %s474
      %s489 = sphi 0, %s475
      %s495 = sphi 0, %s497
      %s498 = sphi 0, %s495
      %s499 = sphi 0, %s498
      %s515 = sphi 0, %s499
    $region4: #{tpu_custom_call.1} parent=1 // loop_header_branch
      %42 = sbr.rel (%p40) target = $region8
    $region5: #{tpu_custom_call.1} parent=1 // loop_body
      %s44 = ssub.s32 %s39, 1
      %s45 = ssub.s32 %s39, 2
      %s46 = sadd.s32 %s39, 1
      %s47 = ssub.s32 %s39, %s46
      %p48 = scmp.eq.s32.totalorder %s47, 0
      %s50 = sadd.s32 %s49, 1
      %s51 = scalar_select %p48, %s49, %s50
      %p54 = pneg %p48
      %p55 = scmp.eq.s32.totalorder %s39, 1
      %p56 = por %p54, %p55
      %p57 = scmp.ne.s32.totalorder %s49, %s52
      %p58 = scmp.eq.s32.totalorder %s39, 0
      %p59 = por %p57, %p58
      %p60 = scmp.ne.s32.totalorder %s49, %s52
      %p61 = scmp.eq.s32.totalorder %s44, 1
      %p62 = por %p60, %p61
      %p63 = scmp.ne.s32.totalorder %s52, %s53
      %p64 = scmp.eq.s32.totalorder %s44, 0
      %p65 = por %p63, %p64
      %p66 = scmp.ne.s32.totalorder %s52, %s53
      %p67 = scmp.eq.s32.totalorder %s45, 1
      %p68 = por %p66, %p67
      %p70 = scmp.ne.s32.totalorder %s53, %s69
      %p71 = scmp.eq.s32.totalorder %s45, 0
      %p72 = por %p70, %p71
      %s74 = sadd.s32 %s73, 1
      %p77 = scmp.eq.s32.totalorder %s39, 1
      %p78 = scmp.ne.s32.totalorder %s73, %s75
      %p79 = scmp.eq.s32.totalorder %s39, 0
      %p80 = por %p78, %p79
      %p81 = scmp.ne.s32.totalorder %s73, %s75
      %p82 = scmp.eq.s32.totalorder %s44, 1
      %p83 = por %p81, %p82
      %p84 = scmp.ne.s32.totalorder %s75, %s76
      %p85 = scmp.eq.s32.totalorder %s44, 0
      %p86 = por %p84, %p85
      %p87 = scmp.ne.s32.totalorder %s75, %s76
      %p88 = scmp.eq.s32.totalorder %s45, 1
      %p89 = por %p87, %p88
      %p91 = scmp.ne.s32.totalorder %s76, %s90
      %p92 = scmp.eq.s32.totalorder %s45, 0
      %p93 = por %p91, %p92
      %s95 = sadd.s32 %s94, 1
      %p98 = scmp.eq.s32.totalorder %s39, 1
      %p99 = scmp.ne.s32.totalorder %s94, %s96
      %p100 = scmp.eq.s32.totalorder %s39, 0
      %p101 = por %p99, %p100
      %p102 = scmp.ne.s32.totalorder %s94, %s96
      %p103 = scmp.eq.s32.totalorder %s44, 1
      %p104 = por %p102, %p103
      %p105 = scmp.ne.s32.totalorder %s96, %s97
      %p106 = scmp.eq.s32.totalorder %s44, 0
      %p107 = por %p105, %p106
      %p108 = scmp.ne.s32.totalorder %s96, %s97
      %p109 = scmp.eq.s32.totalorder %s45, 1
      %p110 = por %p108, %p109
      %p112 = scmp.ne.s32.totalorder %s97, %s111
      %p113 = scmp.eq.s32.totalorder %s45, 0
      %p114 = por %p112, %p113
      %s116 = sadd.s32 %s115, 1
      %p119 = scmp.eq.s32.totalorder %s39, 1
      %p120 = scmp.ne.s32.totalorder %s115, %s117
      %p121 = scmp.eq.s32.totalorder %s39, 0
      %p122 = por %p120, %p121
      %p123 = scmp.ne.s32.totalorder %s115, %s117
      %p124 = scmp.eq.s32.totalorder %s44, 1
      %p125 = por %p123, %p124
      %p126 = scmp.ne.s32.totalorder %s117, %s118
      %p127 = scmp.eq.s32.totalorder %s44, 0
      %p128 = por %p126, %p127
      %p129 = scmp.ne.s32.totalorder %s117, %s118
      %p130 = scmp.eq.s32.totalorder %s45, 1
      %p131 = por %p129, %p130
      %p133 = scmp.ne.s32.totalorder %s118, %s132
      %p134 = scmp.eq.s32.totalorder %s45, 0
      %p135 = por %p133, %p134
      %s137 = sadd.s32 %s136, 1
      %p140 = scmp.eq.s32.totalorder %s39, 1
      %p141 = scmp.ne.s32.totalorder %s136, %s138
      %p142 = scmp.eq.s32.totalorder %s39, 0
      %p143 = por %p141, %p142
      %p144 = scmp.ne.s32.totalorder %s136, %s138
      %p145 = scmp.eq.s32.totalorder %s44, 1
      %p146 = por %p144, %p145
      %p147 = scmp.ne.s32.totalorder %s138, %s139
      %p148 = scmp.eq.s32.totalorder %s44, 0
      %p149 = por %p147, %p148
      %p150 = scmp.ne.s32.totalorder %s138, %s139
      %p151 = scmp.eq.s32.totalorder %s45, 1
      %p152 = por %p150, %p151
      %p154 = scmp.ne.s32.totalorder %s139, %s153
      %p155 = scmp.eq.s32.totalorder %s45, 0
      %p156 = por %p154, %p155
      %s158 = sadd.s32 %s157, 1
      %p161 = scmp.eq.s32.totalorder %s39, 1
      %p162 = scmp.ne.s32.totalorder %s157, %s159
      %p163 = scmp.eq.s32.totalorder %s39, 0
      %p164 = por %p162, %p163
      %p165 = scmp.ne.s32.totalorder %s157, %s159
      %p166 = scmp.eq.s32.totalorder %s44, 1
      %p167 = por %p165, %p166
      %p168 = scmp.ne.s32.totalorder %s159, %s160
      %p169 = scmp.eq.s32.totalorder %s44, 0
      %p170 = por %p168, %p169
      %p171 = scmp.ne.s32.totalorder %s159, %s160
      %p172 = scmp.eq.s32.totalorder %s45, 1
      %p173 = por %p171, %p172
      %p175 = scmp.ne.s32.totalorder %s160, %s174
      %p176 = scmp.eq.s32.totalorder %s45, 0
      %p177 = por %p175, %p176
      %s179 = sadd.s32 %s178, 1
      %p182 = scmp.eq.s32.totalorder %s39, 1
      %p183 = scmp.ne.s32.totalorder %s178, %s180
      %p184 = scmp.eq.s32.totalorder %s39, 0
      %p185 = por %p183, %p184
      %p186 = scmp.ne.s32.totalorder %s178, %s180
      %p187 = scmp.eq.s32.totalorder %s44, 1
      %p188 = por %p186, %p187
      %p189 = scmp.ne.s32.totalorder %s180, %s181
      %p190 = scmp.eq.s32.totalorder %s44, 0
      %p191 = por %p189, %p190
      %p192 = scmp.ne.s32.totalorder %s180, %s181
      %p193 = scmp.eq.s32.totalorder %s45, 1
      %p194 = por %p192, %p193
      %p196 = scmp.ne.s32.totalorder %s181, %s195
      %p197 = scmp.eq.s32.totalorder %s45, 0
      %p198 = por %p196, %p197
      %s200 = sadd.s32 %s199, 1
      %p203 = scmp.eq.s32.totalorder %s39, 1
      %p204 = scmp.ne.s32.totalorder %s199, %s201
      %p205 = scmp.eq.s32.totalorder %s39, 0
      %p206 = por %p204, %p205
      %p207 = scmp.ne.s32.totalorder %s199, %s201
      %p208 = scmp.eq.s32.totalorder %s44, 1
      %p209 = por %p207, %p208
      %p210 = scmp.ne.s32.totalorder %s201, %s202
      %p211 = scmp.eq.s32.totalorder %s44, 0
      %p212 = por %p210, %p211
      %p213 = scmp.ne.s32.totalorder %s201, %s202
      %p214 = scmp.eq.s32.totalorder %s45, 1
      %p215 = por %p213, %p214
      %p217 = scmp.ne.s32.totalorder %s202, %s216
      %p218 = scmp.eq.s32.totalorder %s45, 0
      %p219 = por %p217, %p218
      %s221 = sadd.s32 %s220, 1
      %p224 = scmp.eq.s32.totalorder %s39, 1
      %p225 = scmp.ne.s32.totalorder %s220, %s222
      %p226 = scmp.eq.s32.totalorder %s39, 0
      %p227 = por %p225, %p226
      %p228 = scmp.ne.s32.totalorder %s220, %s222
      %p229 = scmp.eq.s32.totalorder %s44, 1
      %p230 = por %p228, %p229
      %p231 = scmp.ne.s32.totalorder %s222, %s223
      %p232 = scmp.eq.s32.totalorder %s44, 0
      %p233 = por %p231, %p232
      %p234 = scmp.ne.s32.totalorder %s222, %s223
      %p235 = scmp.eq.s32.totalorder %s45, 1
      %p236 = por %p234, %p235
      %p238 = scmp.ne.s32.totalorder %s223, %s237
      %p239 = scmp.eq.s32.totalorder %s45, 0
      %p240 = por %p238, %p239
      %s242 = sadd.s32 %s241, 1
      %p245 = scmp.eq.s32.totalorder %s39, 1
      %p246 = scmp.ne.s32.totalorder %s241, %s243
      %p247 = scmp.eq.s32.totalorder %s39, 0
      %p248 = por %p246, %p247
      %p249 = scmp.ne.s32.totalorder %s241, %s243
      %p250 = scmp.eq.s32.totalorder %s44, 1
      %p251 = por %p249, %p250
      %p252 = scmp.ne.s32.totalorder %s243, %s244
      %p253 = scmp.eq.s32.totalorder %s44, 0
      %p254 = por %p252, %p253
      %p255 = scmp.ne.s32.totalorder %s243, %s244
      %p256 = scmp.eq.s32.totalorder %s45, 1
      %p257 = por %p255, %p256
      %p259 = scmp.ne.s32.totalorder %s244, %s258
      %p260 = scmp.eq.s32.totalorder %s45, 0
      %p261 = por %p259, %p260
      %s263 = sadd.s32 %s262, 1
      %p266 = scmp.eq.s32.totalorder %s39, 1
      %p267 = scmp.ne.s32.totalorder %s262, %s264
      %p268 = scmp.eq.s32.totalorder %s39, 0
      %p269 = por %p267, %p268
      %p270 = scmp.ne.s32.totalorder %s262, %s264
      %p271 = scmp.eq.s32.totalorder %s44, 1
      %p272 = por %p270, %p271
      %p273 = scmp.ne.s32.totalorder %s264, %s265
      %p274 = scmp.eq.s32.totalorder %s44, 0
      %p275 = por %p273, %p274
      %p276 = scmp.ne.s32.totalorder %s264, %s265
      %p277 = scmp.eq.s32.totalorder %s45, 1
      %p278 = por %p276, %p277
      %p280 = scmp.ne.s32.totalorder %s265, %s279
      %p281 = scmp.eq.s32.totalorder %s45, 0
      %p282 = por %p280, %p281
      %s284 = sadd.s32 %s283, 1
      %p287 = scmp.eq.s32.totalorder %s39, 1
      %p288 = scmp.ne.s32.totalorder %s283, %s285
      %p289 = scmp.eq.s32.totalorder %s39, 0
      %p290 = por %p288, %p289
      %p291 = scmp.ne.s32.totalorder %s283, %s285
      %p292 = scmp.eq.s32.totalorder %s44, 1
      %p293 = por %p291, %p292
      %p294 = scmp.ne.s32.totalorder %s285, %s286
      %p295 = scmp.eq.s32.totalorder %s44, 0
      %p296 = por %p294, %p295
      %p297 = scmp.ne.s32.totalorder %s285, %s286
      %p298 = scmp.eq.s32.totalorder %s45, 1
      %p299 = por %p297, %p298
      %p301 = scmp.ne.s32.totalorder %s286, %s300
      %p302 = scmp.eq.s32.totalorder %s45, 0
      %p303 = por %p301, %p302
      %s305 = sadd.s32 %s304, 1
      %p308 = scmp.eq.s32.totalorder %s39, 1
      %p309 = scmp.ne.s32.totalorder %s304, %s306
      %p310 = scmp.eq.s32.totalorder %s39, 0
      %p311 = por %p309, %p310
      %p312 = scmp.ne.s32.totalorder %s304, %s306
      %p313 = scmp.eq.s32.totalorder %s44, 1
      %p314 = por %p312, %p313
      %p315 = scmp.ne.s32.totalorder %s306, %s307
      %p316 = scmp.eq.s32.totalorder %s44, 0
      %p317 = por %p315, %p316
      %p318 = scmp.ne.s32.totalorder %s306, %s307
      %p319 = scmp.eq.s32.totalorder %s45, 1
      %p320 = por %p318, %p319
      %p322 = scmp.ne.s32.totalorder %s307, %s321
      %p323 = scmp.eq.s32.totalorder %s45, 0
      %p324 = por %p322, %p323
      %s326 = sadd.s32 %s325, 1
      %p329 = scmp.eq.s32.totalorder %s39, 1
      %p330 = scmp.ne.s32.totalorder %s325, %s327
      %p331 = scmp.eq.s32.totalorder %s39, 0
      %p332 = por %p330, %p331
      %p333 = scmp.ne.s32.totalorder %s325, %s327
      %p334 = scmp.eq.s32.totalorder %s44, 1
      %p335 = por %p333, %p334
      %p336 = scmp.ne.s32.totalorder %s327, %s328
      %p337 = scmp.eq.s32.totalorder %s44, 0
      %p338 = por %p336, %p337
      %p339 = scmp.ne.s32.totalorder %s327, %s328
      %p340 = scmp.eq.s32.totalorder %s45, 1
      %p341 = por %p339, %p340
      %p343 = scmp.ne.s32.totalorder %s328, %s342
      %p344 = scmp.eq.s32.totalorder %s45, 0
      %p345 = por %p343, %p344
      %s347 = sadd.s32 %s346, 1
      %p350 = scmp.eq.s32.totalorder %s39, 1
      %p351 = scmp.ne.s32.totalorder %s346, %s348
      %p352 = scmp.eq.s32.totalorder %s39, 0
      %p353 = por %p351, %p352
      %p354 = scmp.ne.s32.totalorder %s346, %s348
      %p355 = scmp.eq.s32.totalorder %s44, 1
      %p356 = por %p354, %p355
      %p357 = scmp.ne.s32.totalorder %s348, %s349
      %p358 = scmp.eq.s32.totalorder %s44, 0
      %p359 = por %p357, %p358
      %p360 = scmp.ne.s32.totalorder %s348, %s349
      %p361 = scmp.eq.s32.totalorder %s45, 1
      %p362 = por %p360, %p361
      %p364 = scmp.ne.s32.totalorder %s349, %s363
      %p365 = scmp.eq.s32.totalorder %s45, 0
      %p366 = por %p364, %p365
      %s368 = sadd.s32 %s367, 1
      %p371 = scmp.eq.s32.totalorder %s39, 1
      %p372 = scmp.ne.s32.totalorder %s367, %s369
      %p373 = scmp.eq.s32.totalorder %s39, 0
      %p374 = por %p372, %p373
      %p375 = scmp.ne.s32.totalorder %s367, %s369
      %p376 = scmp.eq.s32.totalorder %s44, 1
      %p377 = por %p375, %p376
      %p378 = scmp.ne.s32.totalorder %s369, %s370
      %p379 = scmp.eq.s32.totalorder %s44, 0
      %p380 = por %p378, %p379
      %p381 = scmp.ne.s32.totalorder %s369, %s370
      %p382 = scmp.eq.s32.totalorder %s45, 1
      %p383 = por %p381, %p382
      %p385 = scmp.ne.s32.totalorder %s370, %s384
      %p386 = scmp.eq.s32.totalorder %s45, 0
      %p387 = por %p385, %p386
      %s389 = sadd.s32 %s388, 1
      %p392 = scmp.eq.s32.totalorder %s39, 1
      %p393 = scmp.ne.s32.totalorder %s388, %s390
      %p394 = scmp.eq.s32.totalorder %s39, 0
      %p395 = por %p393, %p394
      %p396 = scmp.ne.s32.totalorder %s388, %s390
      %p397 = scmp.eq.s32.totalorder %s44, 1
      %p398 = por %p396, %p397
      %p399 = scmp.ne.s32.totalorder %s390, %s391
      %p400 = scmp.eq.s32.totalorder %s44, 0
      %p401 = por %p399, %p400
      %p402 = scmp.ne.s32.totalorder %s390, %s391
      %p403 = scmp.eq.s32.totalorder %s45, 1
      %p404 = por %p402, %p403
      %p406 = scmp.ne.s32.totalorder %s391, %s405
      %p407 = scmp.eq.s32.totalorder %s45, 0
      %p408 = por %p406, %p407
      %s410 = sadd.s32 %s409, 1
      %p413 = scmp.eq.s32.totalorder %s39, 1
      %p414 = scmp.ne.s32.totalorder %s409, %s411
      %p415 = scmp.eq.s32.totalorder %s39, 0
      %p416 = por %p414, %p415
      %p417 = scmp.ne.s32.totalorder %s409, %s411
      %p418 = scmp.eq.s32.totalorder %s44, 1
      %p419 = por %p417, %p418
      %p420 = scmp.ne.s32.totalorder %s411, %s412
      %p421 = scmp.eq.s32.totalorder %s44, 0
      %p422 = por %p420, %p421
      %p423 = scmp.ne.s32.totalorder %s411, %s412
      %p424 = scmp.eq.s32.totalorder %s45, 1
      %p425 = por %p423, %p424
      %p427 = scmp.ne.s32.totalorder %s412, %s426
      %p428 = scmp.eq.s32.totalorder %s45, 0
      %p429 = por %p427, %p428
      %s431 = sadd.s32 %s430, 1
      %p434 = scmp.eq.s32.totalorder %s39, 1
      %p435 = scmp.ne.s32.totalorder %s430, %s432
      %p436 = scmp.eq.s32.totalorder %s39, 0
      %p437 = por %p435, %p436
      %p438 = scmp.ne.s32.totalorder %s430, %s432
      %p439 = scmp.eq.s32.totalorder %s44, 1
      %p440 = por %p438, %p439
      %p441 = scmp.ne.s32.totalorder %s432, %s433
      %p442 = scmp.eq.s32.totalorder %s44, 0
      %p443 = por %p441, %p442
      %p444 = scmp.ne.s32.totalorder %s432, %s433
      %p445 = scmp.eq.s32.totalorder %s45, 1
      %p446 = por %p444, %p445
      %p448 = scmp.ne.s32.totalorder %s433, %s447
      %p449 = scmp.eq.s32.totalorder %s45, 0
      %p450 = por %p448, %p449
      %s452 = sadd.s32 %s451, 1
      %p455 = scmp.eq.s32.totalorder %s39, 1
      %p456 = scmp.ne.s32.totalorder %s451, %s453
      %p457 = scmp.eq.s32.totalorder %s39, 0
      %p458 = por %p456, %p457
      %p459 = scmp.ne.s32.totalorder %s451, %s453
      %p460 = scmp.eq.s32.totalorder %s44, 1
      %p461 = por %p459, %p460
      %p462 = scmp.ne.s32.totalorder %s453, %s454
      %p463 = scmp.eq.s32.totalorder %s44, 0
      %p464 = por %p462, %p463
      %p465 = scmp.ne.s32.totalorder %s453, %s454
      %p466 = scmp.eq.s32.totalorder %s45, 1
      %p467 = por %p465, %p466
      %p469 = scmp.ne.s32.totalorder %s454, %s468
      %p470 = scmp.eq.s32.totalorder %s45, 0
      %p471 = por %p469, %p470
      %s473 = sadd.s32 %s472, 1
      %p476 = scmp.eq.s32.totalorder %s39, 1
      %p477 = scmp.ne.s32.totalorder %s472, %s474
      %p478 = scmp.eq.s32.totalorder %s39, 0
      %p479 = por %p477, %p478
      %p480 = scmp.ne.s32.totalorder %s472, %s474
      %p481 = scmp.eq.s32.totalorder %s44, 1
      %p482 = por %p480, %p481
      %p483 = scmp.ne.s32.totalorder %s474, %s475
      %p484 = scmp.eq.s32.totalorder %s44, 0
      %p485 = por %p483, %p484
      %p486 = scmp.ne.s32.totalorder %s474, %s475
      %p487 = scmp.eq.s32.totalorder %s45, 1
      %p488 = por %p486, %p487
      %p490 = scmp.ne.s32.totalorder %s475, %s489
      %p491 = scmp.eq.s32.totalorder %s45, 0
      %p492 = por %p490, %p491
      %s493 = ssub.s32 %s39, %s46
      %p494 = scmp.eq.s32.totalorder %s493, 0
      %s496 = sadd.s32 %s495, 1
      %s497 = scalar_select %p494, %s495, %s496
      %p500 = pneg %p494
      %p501 = scmp.eq.s32.totalorder %s39, 1
      %p502 = por %p500, %p501
      %p503 = scmp.ne.s32.totalorder %s495, %s498
      %p504 = scmp.eq.s32.totalorder %s39, 0
      %p505 = por %p503, %p504
      %p506 = scmp.ne.s32.totalorder %s495, %s498
      %p507 = scmp.eq.s32.totalorder %s44, 1
      %p508 = por %p506, %p507
      %p509 = scmp.ne.s32.totalorder %s498, %s499
      %p510 = scmp.eq.s32.totalorder %s44, 0
      %p511 = por %p509, %p510
      %p512 = scmp.ne.s32.totalorder %s498, %s499
      %p513 = scmp.eq.s32.totalorder %s45, 1
      %p514 = por %p512, %p513
      %p516 = scmp.ne.s32.totalorder %s499, %s515
      %p517 = scmp.eq.s32.totalorder %s45, 0
      %p518 = por %p516, %p517
      %p519 = scmp.le.s32.totalorder 1, %s39
      %p520 = scmp.lt.s32.totalorder %s39, 3
      %p521 = pnand %p519, %p520
      %p522 = pneg %p521
      // Predicated region
      $region9: #{tpu_custom_call.1} parent=5 // pred_check
        _
      $region10: #{tpu_custom_call.1} parent=5 // pred_check_branch
        %524 = sbr.rel (%p521) target = $region12
      $region11: #{tpu_custom_call.1} parent=5 // pred_region
        %s525 = ssub.s32 %s39, 1
        // Predicated region
        $region13: #{tpu_custom_call.1} parent=11 // pred_check
          %p526 = pneg %p86
        $region14: #{tpu_custom_call.1} parent=11 // pred_check_branch
          %528 = sbr.rel (%p526) target = $region16
        $region15: #{tpu_custom_call.1} parent=11 // pred_region
          %530 = vsyncadd [#allocation6], 0
          %s531 = sshll.u32 %s1, 4
          %s532 = int_to_ptr.hbm [resolvable:$true] %s531
          %s533 = sshll.u32 [#allocation5], 4
          %s534 = int_to_ptr.vmem [resolvable:$true] %s533
          %539 = dma.hbm_to_vmem [thread:$0]  %s532, 1024, %s534, [#allocation6], 256, 256, 16
        $region16: #{tpu_custom_call.1} parent=11 // pred_fallthru
          _
        // Predicated region
        $region17: #{tpu_custom_call.1} parent=11 // pred_check
          %p540 = pneg %p107
        $region18: #{tpu_custom_call.1} parent=11 // pred_check_branch
          %542 = sbr.rel (%p540) target = $region20
        $region19: #{tpu_custom_call.1} parent=11 // pred_region
          %544 = vsyncadd [#allocation6], 0
          %s546 = sshll.u32 %s2, 4
          %s547 = int_to_ptr.hbm [resolvable:$true] %s546
          %s548 = sshll.u32 [#allocation7], 4
          %s549 = int_to_ptr.vmem [resolvable:$true] %s548
          %551 = dma.hbm_to_vmem [thread:$0]  %s547, 32, %s549, [#allocation6]
        $region20: #{tpu_custom_call.1} parent=11 // pred_fallthru
          _
        // Predicated region
        $region21: #{tpu_custom_call.1} parent=11 // pred_check
          %p552 = pneg %p128
        $region22: #{tpu_custom_call.1} parent=11 // pred_check_branch
          %554 = sbr.rel (%p552) target = $region24
        $region23: #{tpu_custom_call.1} parent=11 // pred_region
          %556 = vsyncadd [#allocation9], 0
          %s557 = sshll.u32 %s3, 4
          %s558 = int_to_ptr.hbm [resolvable:$true] %s557
          %s559 = sshll.u32 [#allocation8], 4
          %s560 = int_to_ptr.vmem [resolvable:$true] %s559
          %565 = dma.hbm_to_vmem [thread:$0]  %s558, 4096, %s560, [#allocation9], 128, 128, 8
        $region24: #{tpu_custom_call.1} parent=11 // pred_fallthru
          _
        // Predicated region
        $region25: #{tpu_custom_call.1} parent=11 // pred_check
          %p566 = pneg %p149
        $region26: #{tpu_custom_call.1} parent=11 // pred_check_branch
          %568 = sbr.rel (%p566) target = $region28
        $region27: #{tpu_custom_call.1} parent=11 // pred_region
          _
        $region28: #{tpu_custom_call.1} parent=11 // pred_fallthru
          _
        // Predicated region
        $region29: #{tpu_custom_call.1} parent=11 // pred_check
          %p569 = pneg %p170
        $region30: #{tpu_custom_call.1} parent=11 // pred_check_branch
          %571 = sbr.rel (%p569) target = $region32
        $region31: #{tpu_custom_call.1} parent=11 // pred_region
          %573 = vsyncadd [#allocation9], 0
          %s574 = sshll.u32 %s5, 4
          %s575 = int_to_ptr.hbm [resolvable:$true] %s574
          %s576 = sshll.u32 [#allocation10], 4
          %s577 = int_to_ptr.vmem [resolvable:$true] %s576
          %582 = dma.hbm_to_vmem [thread:$0]  %s575, 2048, %s577, [#allocation9], 128, 128, 8
        $region32: #{tpu_custom_call.1} parent=11 // pred_fallthru
          _
        // Predicated region
        $region33: #{tpu_custom_call.1} parent=11 // pred_check
          %p583 = pneg %p191
        $region34: #{tpu_custom_call.1} parent=11 // pred_check_branch
          %585 = sbr.rel (%p583) target = $region36
        $region35: #{tpu_custom_call.1} parent=11 // pred_region
          _
        $region36: #{tpu_custom_call.1} parent=11 // pred_fallthru
          _
        // Predicated region
        $region37: #{tpu_custom_call.1} parent=11 // pred_check
          %p586 = pneg %p212
        $region38: #{tpu_custom_call.1} parent=11 // pred_check_branch
          %588 = sbr.rel (%p586) target = $region40
        $region39: #{tpu_custom_call.1} parent=11 // pred_region
          %590 = vsyncadd [#allocation12], 0
          %s591 = sshll.u32 %s7, 4
          %s592 = int_to_ptr.hbm [resolvable:$true] %s591
          %s593 = sshll.u32 [#allocation11], 4
          %s594 = int_to_ptr.vmem [resolvable:$true] %s593
          %599 = dma.hbm_to_vmem [thread:$0]  %s592, 2048, %s594, [#allocation12], 128, 128, 8
        $region40: #{tpu_custom_call.1} parent=11 // pred_fallthru
          _
        // Predicated region
        $region41: #{tpu_custom_call.1} parent=11 // pred_check
          %p600 = pneg %p233
        $region42: #{tpu_custom_call.1} parent=11 // pred_check_branch
          %602 = sbr.rel (%p600) target = $region44
        $region43: #{tpu_custom_call.1} parent=11 // pred_region
          _
        $region44: #{tpu_custom_call.1} parent=11 // pred_fallthru
          _
        // Predicated region
        $region45: #{tpu_custom_call.1} parent=11 // pred_check
          %p603 = pneg %p254
        $region46: #{tpu_custom_call.1} parent=11 // pred_check_branch
          %605 = sbr.rel (%p603) target = $region48
        $region47: #{tpu_custom_call.1} parent=11 // pred_region
          %607 = vsyncadd [#allocation12], 0
          %s608 = sshll.u32 %s9, 4
          %s609 = int_to_ptr.hbm [resolvable:$true] %s608
          %s610 = sshll.u32 [#allocation13], 4
          %s611 = int_to_ptr.vmem [resolvable:$true] %s610
          %616 = dma.hbm_to_vmem [thread:$0]  %s609, 2048, %s611, [#allocation12], 128, 128, 8
        $region48: #{tpu_custom_call.1} parent=11 // pred_fallthru
          _
        // Predicated region
        $region49: #{tpu_custom_call.1} parent=11 // pred_check
          %p617 = pneg %p275
        $region50: #{tpu_custom_call.1} parent=11 // pred_check_branch
          %619 = sbr.rel (%p617) target = $region52
        $region51: #{tpu_custom_call.1} parent=11 // pred_region
          _
        $region52: #{tpu_custom_call.1} parent=11 // pred_fallthru
          _
        // Predicated region
        $region53: #{tpu_custom_call.1} parent=11 // pred_check
          %p620 = pneg %p296
        $region54: #{tpu_custom_call.1} parent=11 // pred_check_branch
          %622 = sbr.rel (%p620) target = $region56
        $region55: #{tpu_custom_call.1} parent=11 // pred_region
          %624 = vsyncadd [#allocation15], 0
          %s625 = sshll.u32 %s11, 4
          %s626 = int_to_ptr.hbm [resolvable:$true] %s625
          %s627 = sshll.u32 [#allocation14], 4
          %s628 = int_to_ptr.vmem [resolvable:$true] %s627
          %633 = dma.hbm_to_vmem [thread:$0]  %s626, 2048, %s628, [#allocation15], 128, 128, 8
        $region56: #{tpu_custom_call.1} parent=11 // pred_fallthru
          _
        // Predicated region
        $region57: #{tpu_custom_call.1} parent=11 // pred_check
          %p634 = pneg %p317
        $region58: #{tpu_custom_call.1} parent=11 // pred_check_branch
          %636 = sbr.rel (%p634) target = $region60
        $region59: #{tpu_custom_call.1} parent=11 // pred_region
          _
        $region60: #{tpu_custom_call.1} parent=11 // pred_fallthru
          _
        // Predicated region
        $region61: #{tpu_custom_call.1} parent=11 // pred_check
          %p637 = pneg %p338
        $region62: #{tpu_custom_call.1} parent=11 // pred_check_branch
          %639 = sbr.rel (%p637) target = $region64
        $region63: #{tpu_custom_call.1} parent=11 // pred_region
          %641 = vsyncadd [#allocation15], 0
          %s642 = sshll.u32 %s13, 4
          %s643 = int_to_ptr.hbm [resolvable:$true] %s642
          %s644 = sshll.u32 [#allocation16], 4
          %s645 = int_to_ptr.vmem [resolvable:$true] %s644
          %650 = dma.hbm_to_vmem [thread:$0]  %s643, 2048, %s645, [#allocation15], 128, 128, 8
        $region64: #{tpu_custom_call.1} parent=11 // pred_fallthru
          _
        // Predicated region
        $region65: #{tpu_custom_call.1} parent=11 // pred_check
          %p651 = pneg %p359
        $region66: #{tpu_custom_call.1} parent=11 // pred_check_branch
          %653 = sbr.rel (%p651) target = $region68
        $region67: #{tpu_custom_call.1} parent=11 // pred_region
          _
        $region68: #{tpu_custom_call.1} parent=11 // pred_fallthru
          _
        // Predicated region
        $region69: #{tpu_custom_call.1} parent=11 // pred_check
          %p654 = pneg %p380
        $region70: #{tpu_custom_call.1} parent=11 // pred_check_branch
          %656 = sbr.rel (%p654) target = $region72
        $region71: #{tpu_custom_call.1} parent=11 // pred_region
          %658 = vsyncadd [#allocation18], 0
          %s659 = sshll.u32 %s15, 4
          %s660 = int_to_ptr.hbm [resolvable:$true] %s659
          %s661 = sshll.u32 [#allocation17], 4
          %s662 = int_to_ptr.vmem [resolvable:$true] %s661
          %667 = dma.hbm_to_vmem [thread:$0]  %s660, 2048, %s662, [#allocation18], 128, 128, 8
        $region72: #{tpu_custom_call.1} parent=11 // pred_fallthru
          _
        // Predicated region
        $region73: #{tpu_custom_call.1} parent=11 // pred_check
          %p668 = pneg %p401
        $region74: #{tpu_custom_call.1} parent=11 // pred_check_branch
          %670 = sbr.rel (%p668) target = $region76
        $region75: #{tpu_custom_call.1} parent=11 // pred_region
          _
        $region76: #{tpu_custom_call.1} parent=11 // pred_fallthru
          _
        // Predicated region
        $region77: #{tpu_custom_call.1} parent=11 // pred_check
          %p671 = pneg %p422
        $region78: #{tpu_custom_call.1} parent=11 // pred_check_branch
          %673 = sbr.rel (%p671) target = $region80
        $region79: #{tpu_custom_call.1} parent=11 // pred_region
          %675 = vsyncadd [#allocation18], 0
          %s676 = sshll.u32 %s17, 4
          %s677 = int_to_ptr.hbm [resolvable:$true] %s676
          %s678 = sshll.u32 [#allocation19], 4
          %s679 = int_to_ptr.vmem [resolvable:$true] %s678
          %684 = dma.hbm_to_vmem [thread:$0]  %s677, 4096, %s679, [#allocation18], 256, 256, 16
        $region80: #{tpu_custom_call.1} parent=11 // pred_fallthru
          _
        // Predicated region
        $region81: #{tpu_custom_call.1} parent=11 // pred_check
          %p685 = pneg %p443
        $region82: #{tpu_custom_call.1} parent=11 // pred_check_branch
          %687 = sbr.rel (%p685) target = $region84
        $region83: #{tpu_custom_call.1} parent=11 // pred_region
          _
        $region84: #{tpu_custom_call.1} parent=11 // pred_fallthru
          _
        // Predicated region
        $region85: #{tpu_custom_call.1} parent=11 // pred_check
          %p688 = pneg %p464
        $region86: #{tpu_custom_call.1} parent=11 // pred_check_branch
          %690 = sbr.rel (%p688) target = $region88
        $region87: #{tpu_custom_call.1} parent=11 // pred_region
          %692 = vsyncadd [#allocation21], 0
          %s693 = sshll.u32 %s19, 4
          %s694 = int_to_ptr.hbm [resolvable:$true] %s693
          %s695 = sshll.u32 [#allocation20], 4
          %s696 = int_to_ptr.vmem [resolvable:$true] %s695
          %701 = dma.hbm_to_vmem [thread:$0]  %s694, 4096, %s696, [#allocation21], 128, 128, 8
        $region88: #{tpu_custom_call.1} parent=11 // pred_fallthru
          _
        // Predicated region
        $region89: #{tpu_custom_call.1} parent=11 // pred_check
          %p702 = pneg %p485
        $region90: #{tpu_custom_call.1} parent=11 // pred_check_branch
          %704 = sbr.rel (%p702) target = $region92
        $region91: #{tpu_custom_call.1} parent=11 // pred_region
          _
        $region92: #{tpu_custom_call.1} parent=11 // pred_fallthru
          _
      $region12: #{tpu_custom_call.1} parent=5 // pred_fallthru
        _
      %p705 = scmp.lt.s32.totalorder %s39, 2
      // Predicated region
      $region93: #{tpu_custom_call.1} parent=5 // pred_check
        %p706 = pneg %p705
      $region94: #{tpu_custom_call.1} parent=5 // pred_check_branch
        %708 = sbr.rel (%p706) target = $region96
      $region95: #{tpu_custom_call.1} parent=5 // pred_region
        // Predicated region
        $region97: #{tpu_custom_call.1} parent=95 // pred_check
          %p709 = pneg %p59
        $region98: #{tpu_custom_call.1} parent=95 // pred_check_branch
          %711 = sbr.rel (%p709) target = $region100
        $region99: #{tpu_custom_call.1} parent=95 // pred_region
          %s712 = sand.u32 %s49, 1
          %s713 = scalar_lea.sflag [#allocation3], %s712
          %s714 = sand.u32 %s49, 1
          %s715 = smul.addr %s714, 16
          %s716 = scalar_lea.vmem [#allocation2], %s715
          %s717 = smul.u32 2, %s39
          %719 = vsyncadd %s713, 0
          %s720 = smul.addr %s717, 8
          %s721 = scalar_lea.hbm %s0, %s720
          %s722 = sshll.u32 %s721, 4
          %s723 = int_to_ptr.hbm [resolvable:$true] %s722
          %s724 = sshll.u32 %s716, 4
          %s725 = int_to_ptr.vmem [resolvable:$true] %s724
          %730 = dma.hbm_to_vmem [thread:$0]  %s723, 256, %s725, %s713, 128, 128, 8
        $region100: #{tpu_custom_call.1} parent=95 // pred_fallthru
          _
      $region96: #{tpu_custom_call.1} parent=5 // pred_fallthru
        _
      %p731 = scmp.le.s32.totalorder 1, %s39
      %p732 = scmp.lt.s32.totalorder %s39, 3
      %p733 = pnand %p731, %p732
      %p734 = pneg %p733
      // Predicated region
      $region101: #{tpu_custom_call.1} parent=5 // pred_check
        _
      $region102: #{tpu_custom_call.1} parent=5 // pred_check_branch
        %736 = sbr.rel (%p733) target = $region104
      $region103: #{tpu_custom_call.1} parent=5 // pred_region
        %s737 = ssub.s32 %s39, 1
        %s738 = sand.u32 %s52, 1
        %s739 = scalar_lea.sflag [#allocation3], %s738
        %s740 = sand.u32 %s52, 1
        %s741 = smul.addr %s740, 16
        %s742 = scalar_lea.vmem [#allocation2], %s741
        // Predicated region
        $region105: #{tpu_custom_call.1} parent=103 // pred_check
          %p743 = pneg %p65
        $region106: #{tpu_custom_call.1} parent=103 // pred_check_branch
          %745 = sbr.rel (%p743) target = $region108
        $region107: #{tpu_custom_call.1} parent=103 // pred_region
          %747 = dma.done %s739, 256
        $region108: #{tpu_custom_call.1} parent=103 // pred_fallthru
          _
        // Predicated region
        $region109: #{tpu_custom_call.1} parent=103 // pred_check
          %p748 = pneg %p86
        $region110: #{tpu_custom_call.1} parent=103 // pred_check_branch
          %750 = sbr.rel (%p748) target = $region112
        $region111: #{tpu_custom_call.1} parent=103 // pred_region
          %752 = dma.done [#allocation6], 1024
        $region112: #{tpu_custom_call.1} parent=103 // pred_fallthru
          _
        // Predicated region
        $region113: #{tpu_custom_call.1} parent=103 // pred_check
          %p753 = pneg %p107
        $region114: #{tpu_custom_call.1} parent=103 // pred_check_branch
          %755 = sbr.rel (%p753) target = $region116
        $region115: #{tpu_custom_call.1} parent=103 // pred_region
          %757 = dma.done [#allocation6], 32
        $region116: #{tpu_custom_call.1} parent=103 // pred_fallthru
          _
        // Predicated region
        $region117: #{tpu_custom_call.1} parent=103 // pred_check
          %p758 = pneg %p128
        $region118: #{tpu_custom_call.1} parent=103 // pred_check_branch
          %760 = sbr.rel (%p758) target = $region120
        $region119: #{tpu_custom_call.1} parent=103 // pred_region
          %762 = dma.done [#allocation9], 4096
        $region120: #{tpu_custom_call.1} parent=103 // pred_fallthru
          _
        // Predicated region
        $region121: #{tpu_custom_call.1} parent=103 // pred_check
          %p763 = pneg %p170
        $region122: #{tpu_custom_call.1} parent=103 // pred_check_branch
          %765 = sbr.rel (%p763) target = $region124
        $region123: #{tpu_custom_call.1} parent=103 // pred_region
          %767 = dma.done [#allocation9], 2048
        $region124: #{tpu_custom_call.1} parent=103 // pred_fallthru
          _
        // Predicated region
        $region125: #{tpu_custom_call.1} parent=103 // pred_check
          %p768 = pneg %p212
        $region126: #{tpu_custom_call.1} parent=103 // pred_check_branch
          %770 = sbr.rel (%p768) target = $region128
        $region127: #{tpu_custom_call.1} parent=103 // pred_region
          %772 = dma.done [#allocation12], 2048
        $region128: #{tpu_custom_call.1} parent=103 // pred_fallthru
          _
        // Predicated region
        $region129: #{tpu_custom_call.1} parent=103 // pred_check
          %p773 = pneg %p254
        $region130: #{tpu_custom_call.1} parent=103 // pred_check_branch
          %775 = sbr.rel (%p773) target = $region132
        $region131: #{tpu_custom_call.1} parent=103 // pred_region
          %777 = dma.done [#allocation12], 2048
        $region132: #{tpu_custom_call.1} parent=103 // pred_fallthru
          _
        // Predicated region
        $region133: #{tpu_custom_call.1} parent=103 // pred_check
          %p778 = pneg %p296
        $region134: #{tpu_custom_call.1} parent=103 // pred_check_branch
          %780 = sbr.rel (%p778) target = $region136
        $region135: #{tpu_custom_call.1} parent=103 // pred_region
          %782 = dma.done [#allocation15], 2048
        $region136: #{tpu_custom_call.1} parent=103 // pred_fallthru
          _
        // Predicated region
        $region137: #{tpu_custom_call.1} parent=103 // pred_check
          %p783 = pneg %p338
        $region138: #{tpu_custom_call.1} parent=103 // pred_check_branch
          %785 = sbr.rel (%p783) target = $region140
        $region139: #{tpu_custom_call.1} parent=103 // pred_region
          %787 = dma.done [#allocation15], 2048
        $region140: #{tpu_custom_call.1} parent=103 // pred_fallthru
          _
        // Predicated region
        $region141: #{tpu_custom_call.1} parent=103 // pred_check
          %p788 = pneg %p380
        $region142: #{tpu_custom_call.1} parent=103 // pred_check_branch
          %790 = sbr.rel (%p788) target = $region144
        $region143: #{tpu_custom_call.1} parent=103 // pred_region
          %792 = dma.done [#allocation18], 2048
        $region144: #{tpu_custom_call.1} parent=103 // pred_fallthru
          _
        // Predicated region
        $region145: #{tpu_custom_call.1} parent=103 // pred_check
          %p793 = pneg %p422
        $region146: #{tpu_custom_call.1} parent=103 // pred_check_branch
          %795 = sbr.rel (%p793) target = $region148
        $region147: #{tpu_custom_call.1} parent=103 // pred_region
          %797 = dma.done [#allocation18], 4096
        $region148: #{tpu_custom_call.1} parent=103 // pred_fallthru
          _
        // Predicated region
        $region149: #{tpu_custom_call.1} parent=103 // pred_check
          %p798 = pneg %p464
        $region150: #{tpu_custom_call.1} parent=103 // pred_check_branch
          %800 = sbr.rel (%p798) target = $region152
        $region151: #{tpu_custom_call.1} parent=103 // pred_region
          %802 = dma.done [#allocation21], 4096
        $region152: #{tpu_custom_call.1} parent=103 // pred_fallthru
          _
        %s803 = sand.u32 %s52, 1
        %s804 = scalar_lea.sflag [#allocation3], %s803
        %s805 = sand.u32 %s52, 1
        %s806 = smul.addr %s805, 16
        %s807 = scalar_lea.vmem [#allocation2], %s806
        %p808 = pneg %p65
        %p809 = pneg %p62
        %p810 = pneg %p86
        %p811 = pneg %p83
        %p812 = pneg %p107
        %p813 = pneg %p104
        %p814 = pneg %p128
        %p815 = pneg %p125
        %p816 = pneg %p149
        %p817 = pneg %p146
        %p818 = pneg %p170
        %p819 = pneg %p167
        %p820 = pneg %p191
        %p821 = pneg %p188
        %p822 = pneg %p212
        %p823 = pneg %p209
        %p824 = pneg %p233
        %p825 = pneg %p230
        %p826 = pneg %p254
        %p827 = pneg %p251
        %p828 = pneg %p275
        %p829 = pneg %p272
        %p830 = pneg %p296
        %p831 = pneg %p293
        %p832 = pneg %p317
        %p833 = pneg %p314
        %p834 = pneg %p338
        %p835 = pneg %p335
        %p836 = pneg %p359
        %p837 = pneg %p356
        %p838 = pneg %p380
        %p839 = pneg %p377
        %p840 = pneg %p401
        %p841 = pneg %p398
        %p842 = pneg %p422
        %p843 = pneg %p419
        %p844 = pneg %p443
        %p845 = pneg %p440
        %p846 = pneg %p464
        %p847 = pneg %p461
        %p848 = pneg %p485
        %p849 = pneg %p482
        %p850 = pneg %p511
        %p851 = pneg %p508
        %s852 = sand.u32 %s498, 1
        %s853 = scalar_lea.sflag [#allocation4], %s852
        %s854 = sand.u32 %s498, 1
        %s855 = smul.addr %s854, 16
        %s856 = scalar_lea.vmem [#allocation22], %s855
        %s857 = smul.u32 2, %s44
        %s858 = smul.u32 2, %s44
        %v859 = vld [vmem:[%s742] sm:$0xff]
        %v860 = vld [vmem:[%s742 + $0x8] sm:$0xff]
        %v861 = vld [vmem:[#allocation5] sm:$0xff]
        %v862 = vld [vmem:[#allocation5 + $0x8] sm:$0xff]
        %v863 = vld [vmem:[#allocation5 + $0x10] sm:$0xff]
        %v864 = vld [vmem:[#allocation5 + $0x18] sm:$0xff]
        %v865 = vld [vmem:[#allocation5 + $0x20] sm:$0xff]
        %v866 = vld [vmem:[#allocation5 + $0x28] sm:$0xff]
        %v867 = vld [vmem:[#allocation5 + $0x30] sm:$0xff]
        %v868 = vld [vmem:[#allocation5 + $0x38] sm:$0xff]
        %v869 = vld [vmem:[#allocation7] sm:$0x3]
        %v871 = vperm.slane %v869, 0
        %v872 = vperm.slane %v869, 1
        %vm875 = vcmask 261120
        %v877 = vsel %vm875, %v859, 0
        %v880 = vsel %vm875, %v860, 0
        %882 = vmatpush.msra.mxu0 0.0
        %883 = vmatpush.msra.mxu0 0.0
        %884 = vmatpush.msra.mxu0 0.0
        %885 = vmatpush.msra.mxu0 0.0
        %886 = vmatpush.msra.mxu0 0.0
        %887 = vmatpush.msra.mxu0 0.0
        %888 = vmatpush.msra.mxu0 0.0
        %889 = vmatpush.msra.mxu0 0.0
        %890 = vmatpush.msra.mxu0 0.0
        %891 = vmatpush.msra.mxu0 0.0
        %892 = vmatpush.msra.mxu0 0.0
        %893 = vmatpush.msra.mxu0 0.0
        %894 = vmatpush.msra.mxu0 %v867
        %895 = vmatpush.msra.mxu0 %v865
        %896 = vmatpush.msra.mxu0 %v863
        %897 = vmatpush.msra.mxu0 %v861
        %898 = vmatmul.f32.gmra.mxu0 %v877
        %v899 = vpop.f32.mrf.mxu0
        %v900 = vadd.f32 %v871, %v899
        %901 = vmatmul.f32.gmra.mxu0 %v880
        %v902 = vpop.f32.mrf.mxu0
        %v903 = vadd.f32 %v871, %v902
        %904 = vdwg.mxu0
        %905 = vmatpush.msra.mxu0 0.0
        %906 = vmatpush.msra.mxu0 0.0
        %907 = vmatpush.msra.mxu0 0.0
        %908 = vmatpush.msra.mxu0 0.0
        %909 = vmatpush.msra.mxu0 0.0
        %910 = vmatpush.msra.mxu0 0.0
        %911 = vmatpush.msra.mxu0 0.0
        %912 = vmatpush.msra.mxu0 0.0
        %913 = vmatpush.msra.mxu0 0.0
        %914 = vmatpush.msra.mxu0 0.0
        %915 = vmatpush.msra.mxu0 0.0
        %916 = vmatpush.msra.mxu0 0.0
        %917 = vmatpush.msra.mxu0 %v868
        %918 = vmatpush.msra.mxu0 %v866
        %919 = vmatpush.msra.mxu0 %v864
        %920 = vmatpush.msra.mxu0 %v862
        %921 = vmatmul.f32.gmra.mxu0 %v877
        %v922 = vpop.f32.mrf.mxu0
        %v923 = vadd.f32 %v872, %v922
        %924 = vmatmul.f32.gmra.mxu0 %v880
        %v925 = vpop.f32.mrf.mxu0
        %v926 = vadd.f32 %v872, %v925
        %927 = vdwg.mxu0
        %v928 = vmax.f32 %v900, 0.0
        %v929 = vmax.f32 %v923, 0.0
        %v930 = vmax.f32 %v903, 0.0
        %v931 = vmax.f32 %v926, 0.0
        %v932 = vld [vmem:[#allocation8] sm:$0xff]
        %v933 = vld [vmem:[#allocation8 + $0x8] sm:$0xff]
        %v934 = vld [vmem:[#allocation8 + $0x10] sm:$0xff]
        %v935 = vld [vmem:[#allocation8 + $0x18] sm:$0xff]
        %v936 = vld [vmem:[#allocation8 + $0x20] sm:$0xff]
        %v937 = vld [vmem:[#allocation8 + $0x28] sm:$0xff]
        %v938 = vld [vmem:[#allocation8 + $0x30] sm:$0xff]
        %v939 = vld [vmem:[#allocation8 + $0x38] sm:$0xff]
        %v940 = vld [vmem:[#allocation8 + $0x40] sm:$0xff]
        %v941 = vld [vmem:[#allocation8 + $0x48] sm:$0xff]
        %v942 = vld [vmem:[#allocation8 + $0x50] sm:$0xff]
        %v943 = vld [vmem:[#allocation8 + $0x58] sm:$0xff]
        %v944 = vld [vmem:[#allocation8 + $0x60] sm:$0xff]
        %v945 = vld [vmem:[#allocation8 + $0x68] sm:$0xff]
        %v946 = vld [vmem:[#allocation8 + $0x70] sm:$0xff]
        %v947 = vld [vmem:[#allocation8 + $0x78] sm:$0xff]
        %v948 = vld [vmem:[#allocation8 + $0x80] sm:$0xff]
        %v949 = vld [vmem:[#allocation8 + $0x88] sm:$0xff]
        %v950 = vld [vmem:[#allocation8 + $0x90] sm:$0xff]
        %v951 = vld [vmem:[#allocation8 + $0x98] sm:$0xff]
        %v952 = vld [vmem:[#allocation8 + $0xa0] sm:$0xff]
        %v953 = vld [vmem:[#allocation8 + $0xa8] sm:$0xff]
        %v954 = vld [vmem:[#allocation8 + $0xb0] sm:$0xff]
        %v955 = vld [vmem:[#allocation8 + $0xb8] sm:$0xff]
        %v956 = vld [vmem:[#allocation8 + $0xc0] sm:$0xff]
        %v957 = vld [vmem:[#allocation8 + $0xc8] sm:$0xff]
        %v958 = vld [vmem:[#allocation8 + $0xd0] sm:$0xff]
        %v959 = vld [vmem:[#allocation8 + $0xd8] sm:$0xff]
        %v960 = vld [vmem:[#allocation8 + $0xe0] sm:$0xff]
        %v961 = vld [vmem:[#allocation8 + $0xe8] sm:$0xff]
        %v962 = vld [vmem:[#allocation8 + $0xf0] sm:$0xff]
        %v963 = vld [vmem:[#allocation8 + $0xf8] sm:$0xff]
        %v964 = vld [vmem:[%s4] sm:$0x1]
        %v966 = vperm.slane %v964, 0
        %968 = vmatpush.msra.mxu0 %v947
        %969 = vmatpush.msra.mxu0 %v946
        %970 = vmatpush.msra.mxu0 %v945
        %971 = vmatpush.msra.mxu0 %v944
        %972 = vmatpush.msra.mxu0 %v943
        %973 = vmatpush.msra.mxu0 %v942
        %974 = vmatpush.msra.mxu0 %v941
        %975 = vmatpush.msra.mxu0 %v940
        %976 = vmatpush.msra.mxu0 %v939
        %977 = vmatpush.msra.mxu0 %v938
        %978 = vmatpush.msra.mxu0 %v937
        %979 = vmatpush.msra.mxu0 %v936
        %980 = vmatpush.msra.mxu0 %v935
        %981 = vmatpush.msra.mxu0 %v934
        %982 = vmatpush.msra.mxu0 %v933
        %983 = vmatpush.msra.mxu0 %v932
        %984 = vmatmul.f32.gmra.mxu0 %v928
        %v985 = vpop.f32.mrf.mxu0
        %v986 = vadd.f32 %v966, %v985
        %987 = vmatmul.f32.gmra.mxu0 %v930
        %v988 = vpop.f32.mrf.mxu0
        %v989 = vadd.f32 %v966, %v988
        %990 = vdwg.mxu0
        %991 = vmatpush.msra.mxu0 %v963
        %992 = vmatpush.msra.mxu0 %v962
        %993 = vmatpush.msra.mxu0 %v961
        %994 = vmatpush.msra.mxu0 %v960
        %995 = vmatpush.msra.mxu0 %v959
        %996 = vmatpush.msra.mxu0 %v958
        %997 = vmatpush.msra.mxu0 %v957
        %998 = vmatpush.msra.mxu0 %v956
        %999 = vmatpush.msra.mxu0 %v955
        %1000 = vmatpush.msra.mxu0 %v954
        %1001 = vmatpush.msra.mxu0 %v953
        %1002 = vmatpush.msra.mxu0 %v952
        %1003 = vmatpush.msra.mxu0 %v951
        %1004 = vmatpush.msra.mxu0 %v950
        %1005 = vmatpush.msra.mxu0 %v949
        %1006 = vmatpush.msra.mxu0 %v948
        %1007 = vmatmul.f32.gmra.mxu0 %v929
        %v1008 = vpop.f32.mrf.mxu0
        %v1009 = vadd.f32 %v986, %v1008
        %1010 = vmatmul.f32.gmra.mxu0 %v931
        %v1011 = vpop.f32.mrf.mxu0
        %v1012 = vadd.f32 %v989, %v1011
        %1013 = vdwg.mxu0
        %v1014 = vmax.f32 %v1009, 0.0
        %v1015 = vmax.f32 %v1012, 0.0
        %v1016 = vld [vmem:[#allocation10] sm:$0xff]
        %v1017 = vld [vmem:[#allocation10 + $0x8] sm:$0xff]
        %v1018 = vld [vmem:[#allocation10 + $0x10] sm:$0xff]
        %v1019 = vld [vmem:[#allocation10 + $0x18] sm:$0xff]
        %v1020 = vld [vmem:[#allocation10 + $0x20] sm:$0xff]
        %v1021 = vld [vmem:[#allocation10 + $0x28] sm:$0xff]
        %v1022 = vld [vmem:[#allocation10 + $0x30] sm:$0xff]
        %v1023 = vld [vmem:[#allocation10 + $0x38] sm:$0xff]
        %v1024 = vld [vmem:[#allocation10 + $0x40] sm:$0xff]
        %v1025 = vld [vmem:[#allocation10 + $0x48] sm:$0xff]
        %v1026 = vld [vmem:[#allocation10 + $0x50] sm:$0xff]
        %v1027 = vld [vmem:[#allocation10 + $0x58] sm:$0xff]
        %v1028 = vld [vmem:[#allocation10 + $0x60] sm:$0xff]
        %v1029 = vld [vmem:[#allocation10 + $0x68] sm:$0xff]
        %v1030 = vld [vmem:[#allocation10 + $0x70] sm:$0xff]
        %v1031 = vld [vmem:[#allocation10 + $0x78] sm:$0xff]
        %v1032 = vld [vmem:[%s6] sm:$0x1]
        %v1034 = vperm.slane %v1032, 0
        %1036 = vmatpush.msra.mxu0 %v1031
        %1037 = vmatpush.msra.mxu0 %v1030
        %1038 = vmatpush.msra.mxu0 %v1029
        %1039 = vmatpush.msra.mxu0 %v1028
        %1040 = vmatpush.msra.mxu0 %v1027
        %1041 = vmatpush.msra.mxu0 %v1026
        %1042 = vmatpush.msra.mxu0 %v1025
        %1043 = vmatpush.msra.mxu0 %v1024
        %1044 = vmatpush.msra.mxu0 %v1023
        %1045 = vmatpush.msra.mxu0 %v1022
        %1046 = vmatpush.msra.mxu0 %v1021
        %1047 = vmatpush.msra.mxu0 %v1020
        %1048 = vmatpush.msra.mxu0 %v1019
        %1049 = vmatpush.msra.mxu0 %v1018
        %1050 = vmatpush.msra.mxu0 %v1017
        %1051 = vmatpush.msra.mxu0 %v1016
        %1052 = vmatmul.f32.gmra.mxu0 %v1014
        %v1053 = vpop.f32.mrf.mxu0
        %v1054 = vadd.f32 %v1034, %v1053
        %1055 = vmatmul.f32.gmra.mxu0 %v1015
        %v1056 = vpop.f32.mrf.mxu0
        %v1057 = vadd.f32 %v1034, %v1056
        %1058 = vdwg.mxu0
        %v1059 = vmax.f32 %v1054, 0.0
        %v1060 = vmax.f32 %v1057, 0.0
        %v1061 = vld [vmem:[#allocation11] sm:$0xff]
        %v1062 = vld [vmem:[#allocation11 + $0x8] sm:$0xff]
        %v1063 = vld [vmem:[#allocation11 + $0x10] sm:$0xff]
        %v1064 = vld [vmem:[#allocation11 + $0x18] sm:$0xff]
        %v1065 = vld [vmem:[#allocation11 + $0x20] sm:$0xff]
        %v1066 = vld [vmem:[#allocation11 + $0x28] sm:$0xff]
        %v1067 = vld [vmem:[#allocation11 + $0x30] sm:$0xff]
        %v1068 = vld [vmem:[#allocation11 + $0x38] sm:$0xff]
        %v1069 = vld [vmem:[#allocation11 + $0x40] sm:$0xff]
        %v1070 = vld [vmem:[#allocation11 + $0x48] sm:$0xff]
        %v1071 = vld [vmem:[#allocation11 + $0x50] sm:$0xff]
        %v1072 = vld [vmem:[#allocation11 + $0x58] sm:$0xff]
        %v1073 = vld [vmem:[#allocation11 + $0x60] sm:$0xff]
        %v1074 = vld [vmem:[#allocation11 + $0x68] sm:$0xff]
        %v1075 = vld [vmem:[#allocation11 + $0x70] sm:$0xff]
        %v1076 = vld [vmem:[#allocation11 + $0x78] sm:$0xff]
        %v1077 = vld [vmem:[%s8] sm:$0x1]
        %v1079 = vperm.slane %v1077, 0
        %1081 = vmatpush.msra.mxu0 %v1076
        %1082 = vmatpush.msra.mxu0 %v1075
        %1083 = vmatpush.msra.mxu0 %v1074
        %1084 = vmatpush.msra.mxu0 %v1073
        %1085 = vmatpush.msra.mxu0 %v1072
        %1086 = vmatpush.msra.mxu0 %v1071
        %1087 = vmatpush.msra.mxu0 %v1070
        %1088 = vmatpush.msra.mxu0 %v1069
        %1089 = vmatpush.msra.mxu0 %v1068
        %1090 = vmatpush.msra.mxu0 %v1067
        %1091 = vmatpush.msra.mxu0 %v1066
        %1092 = vmatpush.msra.mxu0 %v1065
        %1093 = vmatpush.msra.mxu0 %v1064
        %1094 = vmatpush.msra.mxu0 %v1063
        %1095 = vmatpush.msra.mxu0 %v1062
        %1096 = vmatpush.msra.mxu0 %v1061
        %1097 = vmatmul.f32.gmra.mxu0 %v1059
        %v1098 = vpop.f32.mrf.mxu0
        %v1099 = vadd.f32 %v1079, %v1098
        %1100 = vmatmul.f32.gmra.mxu0 %v1060
        %v1101 = vpop.f32.mrf.mxu0
        %v1102 = vadd.f32 %v1079, %v1101
        %1103 = vdwg.mxu0
        %v1104 = vmax.f32 %v1099, 0.0
        %v1105 = vmax.f32 %v1102, 0.0
        %v1106 = vld [vmem:[#allocation13] sm:$0xff]
        %v1107 = vld [vmem:[#allocation13 + $0x8] sm:$0xff]
        %v1108 = vld [vmem:[#allocation13 + $0x10] sm:$0xff]
        %v1109 = vld [vmem:[#allocation13 + $0x18] sm:$0xff]
        %v1110 = vld [vmem:[#allocation13 + $0x20] sm:$0xff]
        %v1111 = vld [vmem:[#allocation13 + $0x28] sm:$0xff]
        %v1112 = vld [vmem:[#allocation13 + $0x30] sm:$0xff]
        %v1113 = vld [vmem:[#allocation13 + $0x38] sm:$0xff]
        %v1114 = vld [vmem:[#allocation13 + $0x40] sm:$0xff]
        %v1115 = vld [vmem:[#allocation13 + $0x48] sm:$0xff]
        %v1116 = vld [vmem:[#allocation13 + $0x50] sm:$0xff]
        %v1117 = vld [vmem:[#allocation13 + $0x58] sm:$0xff]
        %v1118 = vld [vmem:[#allocation13 + $0x60] sm:$0xff]
        %v1119 = vld [vmem:[#allocation13 + $0x68] sm:$0xff]
        %v1120 = vld [vmem:[#allocation13 + $0x70] sm:$0xff]
        %v1121 = vld [vmem:[#allocation13 + $0x78] sm:$0xff]
        %v1122 = vld [vmem:[%s10] sm:$0x1]
        %v1124 = vperm.slane %v1122, 0
        %1126 = vmatpush.msra.mxu0 %v1121
        %1127 = vmatpush.msra.mxu0 %v1120
        %1128 = vmatpush.msra.mxu0 %v1119
        %1129 = vmatpush.msra.mxu0 %v1118
        %1130 = vmatpush.msra.mxu0 %v1117
        %1131 = vmatpush.msra.mxu0 %v1116
        %1132 = vmatpush.msra.mxu0 %v1115
        %1133 = vmatpush.msra.mxu0 %v1114
        %1134 = vmatpush.msra.mxu0 %v1113
        %1135 = vmatpush.msra.mxu0 %v1112
        %1136 = vmatpush.msra.mxu0 %v1111
        %1137 = vmatpush.msra.mxu0 %v1110
        %1138 = vmatpush.msra.mxu0 %v1109
        %1139 = vmatpush.msra.mxu0 %v1108
        %1140 = vmatpush.msra.mxu0 %v1107
        %1141 = vmatpush.msra.mxu0 %v1106
        %1142 = vmatmul.f32.gmra.mxu0 %v1104
        %v1143 = vpop.f32.mrf.mxu0
        %v1144 = vadd.f32 %v1124, %v1143
        %1145 = vmatmul.f32.gmra.mxu0 %v1105
        %v1146 = vpop.f32.mrf.mxu0
        %v1147 = vadd.f32 %v1124, %v1146
        %1148 = vdwg.mxu0
        %v1149 = vmul.f32 %v1144, 0.5
        %v1150 = vmul.f32 %v1147, 0.5
        %v1151 = vtanh.pop %v1149
        %v1152 = vtanh.pop %v1150
        %v1153 = vadd.f32 %v1151, 1.0
        %v1154 = vadd.f32 %v1152, 1.0
        %v1155 = vmul.f32 %v1153, 0.5
        %v1156 = vmul.f32 %v1154, 0.5
        %v1157 = vadd.f32 %v1155, 0.0
        %v1158 = vadd.f32 %v1156, 0.0
        %v1159 = vld [vmem:[#allocation14] sm:$0xff]
        %v1160 = vld [vmem:[#allocation14 + $0x8] sm:$0xff]
        %v1161 = vld [vmem:[#allocation14 + $0x10] sm:$0xff]
        %v1162 = vld [vmem:[#allocation14 + $0x18] sm:$0xff]
        %v1163 = vld [vmem:[#allocation14 + $0x20] sm:$0xff]
        %v1164 = vld [vmem:[#allocation14 + $0x28] sm:$0xff]
        %v1165 = vld [vmem:[#allocation14 + $0x30] sm:$0xff]
        %v1166 = vld [vmem:[#allocation14 + $0x38] sm:$0xff]
        %v1167 = vld [vmem:[#allocation14 + $0x40] sm:$0xff]
        %v1168 = vld [vmem:[#allocation14 + $0x48] sm:$0xff]
        %v1169 = vld [vmem:[#allocation14 + $0x50] sm:$0xff]
        %v1170 = vld [vmem:[#allocation14 + $0x58] sm:$0xff]
        %v1171 = vld [vmem:[#allocation14 + $0x60] sm:$0xff]
        %v1172 = vld [vmem:[#allocation14 + $0x68] sm:$0xff]
        %v1173 = vld [vmem:[#allocation14 + $0x70] sm:$0xff]
        %v1174 = vld [vmem:[#allocation14 + $0x78] sm:$0xff]
        %v1175 = vld [vmem:[%s12] sm:$0x1]
        %v1177 = vperm.slane %v1175, 0
        %1179 = vmatpush.msra.mxu0 %v1174
        %1180 = vmatpush.msra.mxu0 %v1173
        %1181 = vmatpush.msra.mxu0 %v1172
        %1182 = vmatpush.msra.mxu0 %v1171
        %1183 = vmatpush.msra.mxu0 %v1170
        %1184 = vmatpush.msra.mxu0 %v1169
        %1185 = vmatpush.msra.mxu0 %v1168
        %1186 = vmatpush.msra.mxu0 %v1167
        %1187 = vmatpush.msra.mxu0 %v1166
        %1188 = vmatpush.msra.mxu0 %v1165
        %1189 = vmatpush.msra.mxu0 %v1164
        %1190 = vmatpush.msra.mxu0 %v1163
        %1191 = vmatpush.msra.mxu0 %v1162
        %1192 = vmatpush.msra.mxu0 %v1161
        %1193 = vmatpush.msra.mxu0 %v1160
        %1194 = vmatpush.msra.mxu0 %v1159
        %1195 = vmatmul.f32.gmra.mxu0 %v1157
        %v1196 = vpop.f32.mrf.mxu0
        %v1197 = vadd.f32 %v1177, %v1196
        %1198 = vmatmul.f32.gmra.mxu0 %v1158
        %v1199 = vpop.f32.mrf.mxu0
        %v1200 = vadd.f32 %v1177, %v1199
        %1201 = vdwg.mxu0
        %v1202 = vmax.f32 %v1197, 0.0
        %v1203 = vmax.f32 %v1200, 0.0
        %v1204 = vld [vmem:[#allocation16] sm:$0xff]
        %v1205 = vld [vmem:[#allocation16 + $0x8] sm:$0xff]
        %v1206 = vld [vmem:[#allocation16 + $0x10] sm:$0xff]
        %v1207 = vld [vmem:[#allocation16 + $0x18] sm:$0xff]
        %v1208 = vld [vmem:[#allocation16 + $0x20] sm:$0xff]
        %v1209 = vld [vmem:[#allocation16 + $0x28] sm:$0xff]
        %v1210 = vld [vmem:[#allocation16 + $0x30] sm:$0xff]
        %v1211 = vld [vmem:[#allocation16 + $0x38] sm:$0xff]
        %v1212 = vld [vmem:[#allocation16 + $0x40] sm:$0xff]
        %v1213 = vld [vmem:[#allocation16 + $0x48] sm:$0xff]
        %v1214 = vld [vmem:[#allocation16 + $0x50] sm:$0xff]
        %v1215 = vld [vmem:[#allocation16 + $0x58] sm:$0xff]
        %v1216 = vld [vmem:[#allocation16 + $0x60] sm:$0xff]
        %v1217 = vld [vmem:[#allocation16 + $0x68] sm:$0xff]
        %v1218 = vld [vmem:[#allocation16 + $0x70] sm:$0xff]
        %v1219 = vld [vmem:[#allocation16 + $0x78] sm:$0xff]
        %v1220 = vld [vmem:[%s14] sm:$0x1]
        %v1222 = vperm.slane %v1220, 0
        %1224 = vmatpush.msra.mxu0 %v1219
        %1225 = vmatpush.msra.mxu0 %v1218
        %1226 = vmatpush.msra.mxu0 %v1217
        %1227 = vmatpush.msra.mxu0 %v1216
        %1228 = vmatpush.msra.mxu0 %v1215
        %1229 = vmatpush.msra.mxu0 %v1214
        %1230 = vmatpush.msra.mxu0 %v1213
        %1231 = vmatpush.msra.mxu0 %v1212
        %1232 = vmatpush.msra.mxu0 %v1211
        %1233 = vmatpush.msra.mxu0 %v1210
        %1234 = vmatpush.msra.mxu0 %v1209
        %1235 = vmatpush.msra.mxu0 %v1208
        %1236 = vmatpush.msra.mxu0 %v1207
        %1237 = vmatpush.msra.mxu0 %v1206
        %1238 = vmatpush.msra.mxu0 %v1205
        %1239 = vmatpush.msra.mxu0 %v1204
        %1240 = vmatmul.f32.gmra.mxu0 %v1202
        %v1241 = vpop.f32.mrf.mxu0
        %v1242 = vadd.f32 %v1222, %v1241
        %1243 = vmatmul.f32.gmra.mxu0 %v1203
        %v1244 = vpop.f32.mrf.mxu0
        %v1245 = vadd.f32 %v1222, %v1244
        %1246 = vdwg.mxu0
        %v1247 = vmax.f32 %v1242, 0.0
        %v1248 = vmax.f32 %v1245, 0.0
        %v1249 = vld [vmem:[#allocation17] sm:$0xff]
        %v1250 = vld [vmem:[#allocation17 + $0x8] sm:$0xff]
        %v1251 = vld [vmem:[#allocation17 + $0x10] sm:$0xff]
        %v1252 = vld [vmem:[#allocation17 + $0x18] sm:$0xff]
        %v1253 = vld [vmem:[#allocation17 + $0x20] sm:$0xff]
        %v1254 = vld [vmem:[#allocation17 + $0x28] sm:$0xff]
        %v1255 = vld [vmem:[#allocation17 + $0x30] sm:$0xff]
        %v1256 = vld [vmem:[#allocation17 + $0x38] sm:$0xff]
        %v1257 = vld [vmem:[#allocation17 + $0x40] sm:$0xff]
        %v1258 = vld [vmem:[#allocation17 + $0x48] sm:$0xff]
        %v1259 = vld [vmem:[#allocation17 + $0x50] sm:$0xff]
        %v1260 = vld [vmem:[#allocation17 + $0x58] sm:$0xff]
        %v1261 = vld [vmem:[#allocation17 + $0x60] sm:$0xff]
        %v1262 = vld [vmem:[#allocation17 + $0x68] sm:$0xff]
        %v1263 = vld [vmem:[#allocation17 + $0x70] sm:$0xff]
        %v1264 = vld [vmem:[#allocation17 + $0x78] sm:$0xff]
        %v1265 = vld [vmem:[%s16] sm:$0x1]
        %v1267 = vperm.slane %v1265, 0
        %1269 = vmatpush.msra.mxu0 %v1264
        %1270 = vmatpush.msra.mxu0 %v1263
        %1271 = vmatpush.msra.mxu0 %v1262
        %1272 = vmatpush.msra.mxu0 %v1261
        %1273 = vmatpush.msra.mxu0 %v1260
        %1274 = vmatpush.msra.mxu0 %v1259
        %1275 = vmatpush.msra.mxu0 %v1258
        %1276 = vmatpush.msra.mxu0 %v1257
        %1277 = vmatpush.msra.mxu0 %v1256
        %1278 = vmatpush.msra.mxu0 %v1255
        %1279 = vmatpush.msra.mxu0 %v1254
        %1280 = vmatpush.msra.mxu0 %v1253
        %1281 = vmatpush.msra.mxu0 %v1252
        %1282 = vmatpush.msra.mxu0 %v1251
        %1283 = vmatpush.msra.mxu0 %v1250
        %1284 = vmatpush.msra.mxu0 %v1249
        %1285 = vmatmul.f32.gmra.mxu0 %v1247
        %v1286 = vpop.f32.mrf.mxu0
        %v1287 = vadd.f32 %v1267, %v1286
        %1288 = vmatmul.f32.gmra.mxu0 %v1248
        %v1289 = vpop.f32.mrf.mxu0
        %v1290 = vadd.f32 %v1267, %v1289
        %1291 = vdwg.mxu0
        %v1292 = vmax.f32 %v1287, 0.0
        %v1293 = vmax.f32 %v1290, 0.0
        %v1294 = vld [vmem:[#allocation19] sm:$0xff]
        %v1295 = vld [vmem:[#allocation19 + $0x8] sm:$0xff]
        %v1296 = vld [vmem:[#allocation19 + $0x10] sm:$0xff]
        %v1297 = vld [vmem:[#allocation19 + $0x18] sm:$0xff]
        %v1298 = vld [vmem:[#allocation19 + $0x20] sm:$0xff]
        %v1299 = vld [vmem:[#allocation19 + $0x28] sm:$0xff]
        %v1300 = vld [vmem:[#allocation19 + $0x30] sm:$0xff]
        %v1301 = vld [vmem:[#allocation19 + $0x38] sm:$0xff]
        %v1302 = vld [vmem:[#allocation19 + $0x40] sm:$0xff]
        %v1303 = vld [vmem:[#allocation19 + $0x48] sm:$0xff]
        %v1304 = vld [vmem:[#allocation19 + $0x50] sm:$0xff]
        %v1305 = vld [vmem:[#allocation19 + $0x58] sm:$0xff]
        %v1306 = vld [vmem:[#allocation19 + $0x60] sm:$0xff]
        %v1307 = vld [vmem:[#allocation19 + $0x68] sm:$0xff]
        %v1308 = vld [vmem:[#allocation19 + $0x70] sm:$0xff]
        %v1309 = vld [vmem:[#allocation19 + $0x78] sm:$0xff]
        %v1310 = vld [vmem:[#allocation19 + $0x80] sm:$0xff]
        %v1311 = vld [vmem:[#allocation19 + $0x88] sm:$0xff]
        %v1312 = vld [vmem:[#allocation19 + $0x90] sm:$0xff]
        %v1313 = vld [vmem:[#allocation19 + $0x98] sm:$0xff]
        %v1314 = vld [vmem:[#allocation19 + $0xa0] sm:$0xff]
        %v1315 = vld [vmem:[#allocation19 + $0xa8] sm:$0xff]
        %v1316 = vld [vmem:[#allocation19 + $0xb0] sm:$0xff]
        %v1317 = vld [vmem:[#allocation19 + $0xb8] sm:$0xff]
        %v1318 = vld [vmem:[#allocation19 + $0xc0] sm:$0xff]
        %v1319 = vld [vmem:[#allocation19 + $0xc8] sm:$0xff]
        %v1320 = vld [vmem:[#allocation19 + $0xd0] sm:$0xff]
        %v1321 = vld [vmem:[#allocation19 + $0xd8] sm:$0xff]
        %v1322 = vld [vmem:[#allocation19 + $0xe0] sm:$0xff]
        %v1323 = vld [vmem:[#allocation19 + $0xe8] sm:$0xff]
        %v1324 = vld [vmem:[#allocation19 + $0xf0] sm:$0xff]
        %v1325 = vld [vmem:[#allocation19 + $0xf8] sm:$0xff]
        %v1326 = vld [vmem:[%s18] sm:$0x3]
        %v1328 = vperm.slane %v1326, 0
        %v1329 = vperm.slane %v1326, 1
        %1332 = vmatpush.msra.mxu0 %v1324
        %1333 = vmatpush.msra.mxu0 %v1322
        %1334 = vmatpush.msra.mxu0 %v1320
        %1335 = vmatpush.msra.mxu0 %v1318
        %1336 = vmatpush.msra.mxu0 %v1316
        %1337 = vmatpush.msra.mxu0 %v1314
        %1338 = vmatpush.msra.mxu0 %v1312
        %1339 = vmatpush.msra.mxu0 %v1310
        %1340 = vmatpush.msra.mxu0 %v1308
        %1341 = vmatpush.msra.mxu0 %v1306
        %1342 = vmatpush.msra.mxu0 %v1304
        %1343 = vmatpush.msra.mxu0 %v1302
        %1344 = vmatpush.msra.mxu0 %v1300
        %1345 = vmatpush.msra.mxu0 %v1298
        %1346 = vmatpush.msra.mxu0 %v1296
        %1347 = vmatpush.msra.mxu0 %v1294
        %1348 = vmatmul.f32.gmra.mxu0 %v1292
        %v1349 = vpop.f32.mrf.mxu0
        %v1350 = vadd.f32 %v1328, %v1349
        %1351 = vmatmul.f32.gmra.mxu0 %v1293
        %v1352 = vpop.f32.mrf.mxu0
        %v1353 = vadd.f32 %v1328, %v1352
        %1354 = vdwg.mxu0
        %1355 = vmatpush.msra.mxu0 %v1325
        %1356 = vmatpush.msra.mxu0 %v1323
        %1357 = vmatpush.msra.mxu0 %v1321
        %1358 = vmatpush.msra.mxu0 %v1319
        %1359 = vmatpush.msra.mxu0 %v1317
        %1360 = vmatpush.msra.mxu0 %v1315
        %1361 = vmatpush.msra.mxu0 %v1313
        %1362 = vmatpush.msra.mxu0 %v1311
        %1363 = vmatpush.msra.mxu0 %v1309
        %1364 = vmatpush.msra.mxu0 %v1307
        %1365 = vmatpush.msra.mxu0 %v1305
        %1366 = vmatpush.msra.mxu0 %v1303
        %1367 = vmatpush.msra.mxu0 %v1301
        %1368 = vmatpush.msra.mxu0 %v1299
        %1369 = vmatpush.msra.mxu0 %v1297
        %1370 = vmatpush.msra.mxu0 %v1295
        %1371 = vmatmul.f32.gmra.mxu0 %v1292
        %v1372 = vpop.f32.mrf.mxu0
        %v1373 = vadd.f32 %v1329, %v1372
        %1374 = vmatmul.f32.gmra.mxu0 %v1293
        %v1375 = vpop.f32.mrf.mxu0
        %v1376 = vadd.f32 %v1329, %v1375
        %1377 = vdwg.mxu0
        %v1378 = vmax.f32 %v1350, 0.0
        %v1379 = vmax.f32 %v1373, 0.0
        %v1380 = vmax.f32 %v1353, 0.0
        %v1381 = vmax.f32 %v1376, 0.0
        %v1382 = vld [vmem:[#allocation20] sm:$0xff]
        %v1383 = vld [vmem:[#allocation20 + $0x8] sm:$0xff]
        %v1384 = vld [vmem:[#allocation20 + $0x10] sm:$0xff]
        %v1385 = vld [vmem:[#allocation20 + $0x18] sm:$0xff]
        %v1386 = vld [vmem:[#allocation20 + $0x20] sm:$0xff]
        %v1387 = vld [vmem:[#allocation20 + $0x28] sm:$0xff]
        %v1388 = vld [vmem:[#allocation20 + $0x30] sm:$0xff]
        %v1389 = vld [vmem:[#allocation20 + $0x38] sm:$0xff]
        %v1390 = vld [vmem:[#allocation20 + $0x40] sm:$0xff]
        %v1391 = vld [vmem:[#allocation20 + $0x48] sm:$0xff]
        %v1392 = vld [vmem:[#allocation20 + $0x50] sm:$0xff]
        %v1393 = vld [vmem:[#allocation20 + $0x58] sm:$0xff]
        %v1394 = vld [vmem:[#allocation20 + $0x60] sm:$0xff]
        %v1395 = vld [vmem:[#allocation20 + $0x68] sm:$0xff]
        %v1396 = vld [vmem:[#allocation20 + $0x70] sm:$0xff]
        %v1397 = vld [vmem:[#allocation20 + $0x78] sm:$0xff]
        %v1398 = vld [vmem:[#allocation20 + $0x80] sm:$0xff]
        %v1399 = vld [vmem:[#allocation20 + $0x88] sm:$0xff]
        %v1400 = vld [vmem:[#allocation20 + $0x90] sm:$0xff]
        %v1401 = vld [vmem:[#allocation20 + $0x98] sm:$0xff]
        %v1402 = vld [vmem:[#allocation20 + $0xa0] sm:$0xff]
        %v1403 = vld [vmem:[#allocation20 + $0xa8] sm:$0xff]
        %v1404 = vld [vmem:[#allocation20 + $0xb0] sm:$0xff]
        %v1405 = vld [vmem:[#allocation20 + $0xb8] sm:$0xff]
        %v1406 = vld [vmem:[#allocation20 + $0xc0] sm:$0xff]
        %v1407 = vld [vmem:[#allocation20 + $0xc8] sm:$0xff]
        %v1408 = vld [vmem:[#allocation20 + $0xd0] sm:$0xff]
        %v1409 = vld [vmem:[#allocation20 + $0xd8] sm:$0xff]
        %v1410 = vld [vmem:[#allocation20 + $0xe0] sm:$0xff]
        %v1411 = vld [vmem:[#allocation20 + $0xe8] sm:$0xff]
        %v1412 = vld [vmem:[#allocation20 + $0xf0] sm:$0xff]
        %v1413 = vld [vmem:[#allocation20 + $0xf8] sm:$0xff]
        %v1414 = vld [vmem:[%s20] sm:$0x1]
        %v1416 = vperm.slane %v1414, 0
        %1418 = vmatpush.msra.mxu0 %v1397
        %1419 = vmatpush.msra.mxu0 %v1396
        %1420 = vmatpush.msra.mxu0 %v1395
        %1421 = vmatpush.msra.mxu0 %v1394
        %1422 = vmatpush.msra.mxu0 %v1393
        %1423 = vmatpush.msra.mxu0 %v1392
        %1424 = vmatpush.msra.mxu0 %v1391
        %1425 = vmatpush.msra.mxu0 %v1390
        %1426 = vmatpush.msra.mxu0 %v1389
        %1427 = vmatpush.msra.mxu0 %v1388
        %1428 = vmatpush.msra.mxu0 %v1387
        %1429 = vmatpush.msra.mxu0 %v1386
        %1430 = vmatpush.msra.mxu0 %v1385
        %1431 = vmatpush.msra.mxu0 %v1384
        %1432 = vmatpush.msra.mxu0 %v1383
        %1433 = vmatpush.msra.mxu0 %v1382
        %1434 = vmatmul.f32.gmra.mxu0 %v1378
        %v1435 = vpop.f32.mrf.mxu0
        %v1436 = vadd.f32 %v1416, %v1435
        %1437 = vmatmul.f32.gmra.mxu0 %v1380
        %v1438 = vpop.f32.mrf.mxu0
        %v1439 = vadd.f32 %v1416, %v1438
        %1440 = vdwg.mxu0
        %1441 = vmatpush.msra.mxu0 %v1413
        %1442 = vmatpush.msra.mxu0 %v1412
        %1443 = vmatpush.msra.mxu0 %v1411
        %1444 = vmatpush.msra.mxu0 %v1410
        %1445 = vmatpush.msra.mxu0 %v1409
        %1446 = vmatpush.msra.mxu0 %v1408
        %1447 = vmatpush.msra.mxu0 %v1407
        %1448 = vmatpush.msra.mxu0 %v1406
        %1449 = vmatpush.msra.mxu0 %v1405
        %1450 = vmatpush.msra.mxu0 %v1404
        %1451 = vmatpush.msra.mxu0 %v1403
        %1452 = vmatpush.msra.mxu0 %v1402
        %1453 = vmatpush.msra.mxu0 %v1401
        %1454 = vmatpush.msra.mxu0 %v1400
        %1455 = vmatpush.msra.mxu0 %v1399
        %1456 = vmatpush.msra.mxu0 %v1398
        %1457 = vmatmul.f32.gmra.mxu0 %v1379
        %v1458 = vpop.f32.mrf.mxu0
        %v1459 = vadd.f32 %v1436, %v1458
        %1460 = vmatmul.f32.gmra.mxu0 %v1381
        %v1461 = vpop.f32.mrf.mxu0
        %v1462 = vadd.f32 %v1439, %v1461
        %1463 = vdwg.mxu0
        %1464 = vst [vmem:[%s856] sm:$0xff] %v1459
        %1465 = vst [vmem:[%s856 + $0x8] sm:$0xff] %v1462
        %s1466 = sand.u32 %s498, 1
        %s1467 = scalar_lea.sflag [#allocation4], %s1466
        %s1468 = sand.u32 %s498, 1
        %s1469 = smul.addr %s1468, 16
        %s1470 = scalar_lea.vmem [#allocation22], %s1469
        // Predicated region
        $region153: #{tpu_custom_call.1} parent=103 // pred_check
          %p1471 = pneg %p508
        $region154: #{tpu_custom_call.1} parent=103 // pred_check_branch
          %1473 = sbr.rel (%p1471) target = $region156
        $region155: #{tpu_custom_call.1} parent=103 // pred_region
          %s1474 = smul.u32 2, %s44
          %1476 = vsyncadd %s1467, 0
          %s1477 = smul.addr %s1474, 8
          %s1478 = scalar_lea.hbm %s21, %s1477
          %s1479 = sshll.u32 %s1470, 4
          %s1480 = int_to_ptr.vmem [resolvable:$true] %s1479
          %s1481 = sshll.u32 %s1478, 4
          %s1482 = int_to_ptr.hbm [resolvable:$true] %s1481
          %1487 = dma.vmem_to_hbm [thread:$0]  %s1480, 256, %s1482, %s1467, 128, 128, 8
        $region156: #{tpu_custom_call.1} parent=103 // pred_fallthru
          _
      $region104: #{tpu_custom_call.1} parent=5 // pred_fallthru
        _
      %p1488 = scmp.le.s32.totalorder 2, %s39
      // Predicated region
      $region157: #{tpu_custom_call.1} parent=5 // pred_check
        %p1489 = pneg %p1488
      $region158: #{tpu_custom_call.1} parent=5 // pred_check_branch
        %1491 = sbr.rel (%p1489) target = $region160
      $region159: #{tpu_custom_call.1} parent=5 // pred_region
        %s1492 = ssub.s32 %s39, 2
        // Predicated region
        $region161: #{tpu_custom_call.1} parent=159 // pred_check
          %p1493 = pneg %p514
        $region162: #{tpu_custom_call.1} parent=159 // pred_check_branch
          %1495 = sbr.rel (%p1493) target = $region164
        $region163: #{tpu_custom_call.1} parent=159 // pred_region
          %s1496 = sand.u32 %s499, 1
          %s1497 = scalar_lea.sflag [#allocation4], %s1496
          %s1498 = sand.u32 %s499, 1
          %s1499 = smul.addr %s1498, 16
          %s1500 = scalar_lea.vmem [#allocation22], %s1499
          %1502 = dma.done %s1497, 256
        $region164: #{tpu_custom_call.1} parent=159 // pred_fallthru
          _
      $region160: #{tpu_custom_call.1} parent=5 // pred_fallthru
        _
    $region6: #{tpu_custom_call.1} parent=1 // loop_footer
      %s43 = sadd.s32 1, %s39
    $region7: #{tpu_custom_call.1} parent=1 // loop_footer_branch
      %38 = sbr.rel target = $region3
    $region8: #{tpu_custom_call.1} parent=1 // loop_exit
      _
    %1503 = vsyncpa [#allocation3], 1
    %s1504 = scalar_lea.sflag [#allocation3], 1
    %1505 = vsyncpa %s1504, 1
    %1506 = vsyncpa [#allocation6], 1
    %1507 = vsyncpa [#allocation9], 1
    %1508 = vsyncpa [#allocation12], 1
    %1509 = vsyncpa [#allocation15], 1
    %1510 = vsyncpa [#allocation18], 1
    %1511 = vsyncpa [#allocation21], 1
    %1512 = vsyncpa [#allocation4], 1
    %s1513 = scalar_lea.sflag [#allocation4], 1
    %1514 = vsyncpa %s1513, 1

// kernel: tpu_custom_call.1
$region0: #{tpu_custom_call.1}
  #allocation0 [shape = 'u32[]', space=smem, size = 0x4, offset = 0x4, fixed_abs, tag = 'smem constant byte address 0x4 - core index']
  #allocation1 [shape = 'u32[72,128]{1,0:T(1,128)}', space=vmem, size = 0x9000, scoped, tag = 'internal scratch']
  %s0 = inlined_call_operand.hbm [shape: f32[32,32], index: 0, kind: input, shape index: {}]
  %s1 = inlined_call_operand.hbm [shape: f32[32,256], index: 1, kind: input, shape index: {}]
  %s2 = inlined_call_operand.hbm [shape: f32[1,256], index: 2, kind: input, shape index: {}]
  %s3 = inlined_call_operand.hbm [shape: f32[256,128], index: 3, kind: input, shape index: {}]
  %s4 = inlined_call_operand.vmem [shape: f32[1,128], index: 4, kind: input, shape index: {}]
  %s5 = inlined_call_operand.hbm [shape: f32[128,128], index: 5, kind: input, shape index: {}]
  %s6 = inlined_call_operand.vmem [shape: f32[1,128], index: 6, kind: input, shape index: {}]
  %s7 = inlined_call_operand.hbm [shape: f32[128,128], index: 7, kind: input, shape index: {}]
  %s8 = inlined_call_operand.vmem [shape: f32[1,128], index: 8, kind: input, shape index: {}]
  %s9 = inlined_call_operand.hbm [shape: f32[128,128], index: 9, kind: input, shape index: {}]
  %s10 = inlined_call_operand.vmem [shape: f32[1,128], index: 10, kind: input, shape index: {}]
  %s11 = inlined_call_operand.hbm [shape: f32[128,128], index: 11, kind: input, shape index: {}]
  %s12 = inlined_call_operand.vmem [shape: f32[1,128], index: 12, kind: input, shape index: {}]
  %s13 = inlined_call_operand.hbm [shape: f32[128,128], index: 13, kind: input, shape index: {}]
  %s14 = inlined_call_operand.vmem [shape: f32[1,128], index: 14, kind: input, shape index: {}]
  %s15 = inlined_call_operand.hbm [shape: f32[128,128], index: 15, kind: input, shape index: {}]
  %s16 = inlined_call_operand.vmem [shape: f32[1,128], index: 16, kind: input, shape index: {}]
  %s17 = inlined_call_operand.hbm [shape: f32[128,256], index: 17, kind: input, shape index: {}]
  %s18 = inlined_call_operand.vmem [shape: f32[1,256], index: 18, kind: input, shape index: {}]
  %s19 = inlined_call_operand.hbm [shape: f32[256,128], index: 19, kind: input, shape index: {}]
  %s20 = inlined_call_operand.vmem [shape: f32[1,128], index: 20, kind: input, shape index: {}]
  %s21 = inlined_call_operand.hbm [shape: f32[32,128], index: 21, kind: output, shape index: {}]
  %s22 = sld [smem:[#allocation0]]
  $region165: #{tpu_custom_call.1} parent=0
    _
  %s24 = ssub.s32 1, %s22
  %s25 = scalar_select 0, %s24, %s22
  $region1: #{tpu_custom_call.1} parent=0
    #allocation2 [shape = 'u8[16384]{0}', space=vmem, size = 0x4000, scoped, tag = 'input window, operand 0']
    #allocation3 [shape = 's32[2]{0}', space=sflag, size = 0x8, scoped, tag = 'scoped memory for tpu_custom_call.1']
    #allocation4 [shape = 's32[2]{0}', space=sflag, size = 0x8, scoped, tag = 'scoped memory for tpu_custom_call.1']
    #allocation5 [shape = 'u8[32768]{0}', space=vmem, size = 0x8000, scoped, tag = 'input window, operand 1, single buffered']
    #allocation6 [shape = 's32[1]{0}', space=sflag, size = 0x4, scoped, tag = 'scoped memory for tpu_custom_call.1']
    #allocation7 [shape = 'u8[1024]{0}', space=vmem, size = 0x400, scoped, tag = 'input window, operand 2, single buffered']
    #allocation8 [shape = 'u8[131072]{0}', space=vmem, size = 0x20000, scoped, tag = 'input window, operand 3, single buffered']
    #allocation9 [shape = 's32[1]{0}', space=sflag, size = 0x4, scoped, tag = 'scoped memory for tpu_custom_call.1']
    #allocation10 [shape = 'u8[65536]{0}', space=vmem, size = 0x10000, scoped, tag = 'input window, operand 5, single buffered']
    #allocation11 [shape = 'u8[65536]{0}', space=vmem, size = 0x10000, scoped, tag = 'input window, operand 7, single buffered']
    #allocation12 [shape = 's32[1]{0}', space=sflag, size = 0x4, scoped, tag = 'scoped memory for tpu_custom_call.1']
    #allocation13 [shape = 'u8[65536]{0}', space=vmem, size = 0x10000, scoped, tag = 'input window, operand 9, single buffered']
    #allocation14 [shape = 'u8[65536]{0}', space=vmem, size = 0x10000, scoped, tag = 'input window, operand 11, single buffered']
    #allocation15 [shape = 's32[1]{0}', space=sflag, size = 0x4, scoped, tag = 'scoped memory for tpu_custom_call.1']
    #allocation16 [shape = 'u8[65536]{0}', space=vmem, size = 0x10000, scoped, tag = 'input window, operand 13, single buffered']
    #allocation17 [shape = 'u8[65536]{0}', space=vmem, size = 0x10000, scoped, tag = 'input window, operand 15, single buffered']
    #allocation18 [shape = 's32[1]{0}', space=sflag, size = 0x4, scoped, tag = 'scoped memory for tpu_custom_call.1']
    #allocation19 [shape = 'u8[131072]{0}', space=vmem, size = 0x20000, scoped, tag = 'input window, operand 17, single buffered']
    #allocation20 [shape = 'u8[131072]{0}', space=vmem, size = 0x20000, scoped, tag = 'input window, operand 19, single buffered']
    #allocation21 [shape = 's32[1]{0}', space=sflag, size = 0x4, scoped, tag = 'scoped memory for tpu_custom_call.1']
    #allocation22 [shape = 'u8[16384]{0}', space=vmem, size = 0x4000, scoped, tag = 'output window, operand 0']
    %26 = vsyncpa [#allocation3], 0
    %s27 = scalar_lea.sflag [#allocation3], 1
    %28 = vsyncpa %s27, 0
    %29 = vsyncpa [#allocation6], 0
    %30 = vsyncpa [#allocation9], 0
    %31 = vsyncpa [#allocation12], 0
    %32 = vsyncpa [#allocation15], 0
    %33 = vsyncpa [#allocation18], 0
    %34 = vsyncpa [#allocation21], 0
    %35 = vsyncpa [#allocation4], 0
    %s36 = scalar_lea.sflag [#allocation4], 1
    %37 = vsyncpa %s36, 0
    loop: start=0, step=1, limit=4
    $region2: #{tpu_custom_call.1} parent=1 // loop_pre_header
      _
    $region3: #{tpu_custom_call.1} parent=1 // loop_header
      %s39 = sphi 0, %s43
      %p40 = scmp.ge.s32.totalorder %s39, 4
      %s49 = sphi 0, %s51
      %s52 = sphi 0, %s49
      %s53 = sphi 0, %s52
      %s69 = sphi 0, %s53
      %s73 = sphi 0, %s73
      %s75 = sphi 0, %s73
      %s76 = sphi 0, %s75
      %s90 = sphi 0, %s76
      %s94 = sphi 0, %s94
      %s96 = sphi 0, %s94
      %s97 = sphi 0, %s96
      %s111 = sphi 0, %s97
      %s115 = sphi 0, %s115
      %s117 = sphi 0, %s115
      %s118 = sphi 0, %s117
      %s132 = sphi 0, %s118
      %s136 = sphi 0, %s136
      %s138 = sphi 0, %s136
      %s139 = sphi 0, %s138
      %s153 = sphi 0, %s139
      %s157 = sphi 0, %s157
      %s159 = sphi 0, %s157
      %s160 = sphi 0, %s159
      %s174 = sphi 0, %s160
      %s178 = sphi 0, %s178
      %s180 = sphi 0, %s178
      %s181 = sphi 0, %s180
      %s195 = sphi 0, %s181
      %s199 = sphi 0, %s199
      %s201 = sphi 0, %s199
      %s202 = sphi 0, %s201
      %s216 = sphi 0, %s202
      %s220 = sphi 0, %s220
      %s222 = sphi 0, %s220
      %s223 = sphi 0, %s222
      %s237 = sphi 0, %s223
      %s241 = sphi 0, %s241
      %s243 = sphi 0, %s241
      %s244 = sphi 0, %s243
      %s258 = sphi 0, %s244
      %s262 = sphi 0, %s262
      %s264 = sphi 0, %s262
      %s265 = sphi 0, %s264
      %s279 = sphi 0, %s265
      %s283 = sphi 0, %s283
      %s285 = sphi 0, %s283
      %s286 = sphi 0, %s285
      %s300 = sphi 0, %s286
      %s304 = sphi 0, %s304
      %s306 = sphi 0, %s304
      %s307 = sphi 0, %s306
      %s321 = sphi 0, %s307
      %s325 = sphi 0, %s325
      %s327 = sphi 0, %s325
      %s328 = sphi 0, %s327
      %s342 = sphi 0, %s328
      %s346 = sphi 0, %s346
      %s348 = sphi 0, %s346
      %s349 = sphi 0, %s348
      %s363 = sphi 0, %s349
      %s367 = sphi 0, %s367
      %s369 = sphi 0, %s367
      %s370 = sphi 0, %s369
      %s384 = sphi 0, %s370
      %s388 = sphi 0, %s388
      %s390 = sphi 0, %s388
      %s391 = sphi 0, %s390
      %s405 = sphi 0, %s391
      %s409 = sphi 0, %s409
      %s411 = sphi 0, %s409
      %s412 = sphi 0, %s411
      %s426 = sphi 0, %s412
      %s430 = sphi 0, %s430
      %s432 = sphi 0, %s430
      %s433 = sphi 0, %s432
      %s447 = sphi 0, %s433
      %s451 = sphi 0, %s451
      %s453 = sphi 0, %s451
      %s454 = sphi 0, %s453
      %s468 = sphi 0, %s454
      %s472 = sphi 0, %s472
      %s474 = sphi 0, %s472
      %s475 = sphi 0, %s474
      %s489 = sphi 0, %s475
      %s495 = sphi 0, %s497
      %s498 = sphi 0, %s495
      %s499 = sphi 0, %s498
      %s515 = sphi 0, %s499
    $region4: #{tpu_custom_call.1} parent=1 // loop_header_branch
      %42 = sbr.rel (%p40) target = $region8
    $region5: #{tpu_custom_call.1} parent=1 // loop_body
      %s44 = ssub.s32 %s39, 1
      %s45 = ssub.s32 %s39, 2
      %s46 = sadd.s32 %s39, 1
      %s47 = ssub.s32 %s39, %s46
      %p48 = scmp.eq.s32.totalorder %s47, 0
      %s50 = sadd.s32 %s49, 1
      %s51 = scalar_select %p48, %s49, %s50
      %p54 = pneg %p48
      %p55 = scmp.eq.s32.totalorder %s39, 1
      %p56 = por %p54, %p55
      %p57 = scmp.ne.s32.totalorder %s49, %s52
      %p58 = scmp.eq.s32.totalorder %s39, 0
      %p59 = por %p57, %p58
      %p60 = scmp.ne.s32.totalorder %s49, %s52
      %p61 = scmp.eq.s32.totalorder %s44, 1
      %p62 = por %p60, %p61
      %p63 = scmp.ne.s32.totalorder %s52, %s53
      %p64 = scmp.eq.s32.totalorder %s44, 0
      %p65 = por %p63, %p64
      %p66 = scmp.ne.s32.totalorder %s52, %s53
      %p67 = scmp.eq.s32.totalorder %s45, 1
      %p68 = por %p66, %p67
      %p70 = scmp.ne.s32.totalorder %s53, %s69
      %p71 = scmp.eq.s32.totalorder %s45, 0
      %p72 = por %p70, %p71
      %s74 = sadd.s32 %s73, 1
      %p77 = scmp.eq.s32.totalorder %s39, 1
      %p78 = scmp.ne.s32.totalorder %s73, %s75
      %p79 = scmp.eq.s32.totalorder %s39, 0
      %p80 = por %p78, %p79
      %p81 = scmp.ne.s32.totalorder %s73, %s75
      %p82 = scmp.eq.s32.totalorder %s44, 1
      %p83 = por %p81, %p82
      %p84 = scmp.ne.s32.totalorder %s75, %s76
      %p85 = scmp.eq.s32.totalorder %s44, 0
      %p86 = por %p84, %p85
      %p87 = scmp.ne.s32.totalorder %s75, %s76
      %p88 = scmp.eq.s32.totalorder %s45, 1
      %p89 = por %p87, %p88
      %p91 = scmp.ne.s32.totalorder %s76, %s90
      %p92 = scmp.eq.s32.totalorder %s45, 0
      %p93 = por %p91, %p92
      %s95 = sadd.s32 %s94, 1
      %p98 = scmp.eq.s32.totalorder %s39, 1
      %p99 = scmp.ne.s32.totalorder %s94, %s96
      %p100 = scmp.eq.s32.totalorder %s39, 0
      %p101 = por %p99, %p100
      %p102 = scmp.ne.s32.totalorder %s94, %s96
      %p103 = scmp.eq.s32.totalorder %s44, 1
      %p104 = por %p102, %p103
      %p105 = scmp.ne.s32.totalorder %s96, %s97
      %p106 = scmp.eq.s32.totalorder %s44, 0
      %p107 = por %p105, %p106
      %p108 = scmp.ne.s32.totalorder %s96, %s97
      %p109 = scmp.eq.s32.totalorder %s45, 1
      %p110 = por %p108, %p109
      %p112 = scmp.ne.s32.totalorder %s97, %s111
      %p113 = scmp.eq.s32.totalorder %s45, 0
      %p114 = por %p112, %p113
      %s116 = sadd.s32 %s115, 1
      %p119 = scmp.eq.s32.totalorder %s39, 1
      %p120 = scmp.ne.s32.totalorder %s115, %s117
      %p121 = scmp.eq.s32.totalorder %s39, 0
      %p122 = por %p120, %p121
      %p123 = scmp.ne.s32.totalorder %s115, %s117
      %p124 = scmp.eq.s32.totalorder %s44, 1
      %p125 = por %p123, %p124
      %p126 = scmp.ne.s32.totalorder %s117, %s118
      %p127 = scmp.eq.s32.totalorder %s44, 0
      %p128 = por %p126, %p127
      %p129 = scmp.ne.s32.totalorder %s117, %s118
      %p130 = scmp.eq.s32.totalorder %s45, 1
      %p131 = por %p129, %p130
      %p133 = scmp.ne.s32.totalorder %s118, %s132
      %p134 = scmp.eq.s32.totalorder %s45, 0
      %p135 = por %p133, %p134
      %s137 = sadd.s32 %s136, 1
      %p140 = scmp.eq.s32.totalorder %s39, 1
      %p141 = scmp.ne.s32.totalorder %s136, %s138
      %p142 = scmp.eq.s32.totalorder %s39, 0
      %p143 = por %p141, %p142
      %p144 = scmp.ne.s32.totalorder %s136, %s138
      %p145 = scmp.eq.s32.totalorder %s44, 1
      %p146 = por %p144, %p145
      %p147 = scmp.ne.s32.totalorder %s138, %s139
      %p148 = scmp.eq.s32.totalorder %s44, 0
      %p149 = por %p147, %p148
      %p150 = scmp.ne.s32.totalorder %s138, %s139
      %p151 = scmp.eq.s32.totalorder %s45, 1
      %p152 = por %p150, %p151
      %p154 = scmp.ne.s32.totalorder %s139, %s153
      %p155 = scmp.eq.s32.totalorder %s45, 0
      %p156 = por %p154, %p155
      %s158 = sadd.s32 %s157, 1
      %p161 = scmp.eq.s32.totalorder %s39, 1
      %p162 = scmp.ne.s32.totalorder %s157, %s159
      %p163 = scmp.eq.s32.totalorder %s39, 0
      %p164 = por %p162, %p163
      %p165 = scmp.ne.s32.totalorder %s157, %s159
      %p166 = scmp.eq.s32.totalorder %s44, 1
      %p167 = por %p165, %p166
      %p168 = scmp.ne.s32.totalorder %s159, %s160
      %p169 = scmp.eq.s32.totalorder %s44, 0
      %p170 = por %p168, %p169
      %p171 = scmp.ne.s32.totalorder %s159, %s160
      %p172 = scmp.eq.s32.totalorder %s45, 1
      %p173 = por %p171, %p172
      %p175 = scmp.ne.s32.totalorder %s160, %s174
      %p176 = scmp.eq.s32.totalorder %s45, 0
      %p177 = por %p175, %p176
      %s179 = sadd.s32 %s178, 1
      %p182 = scmp.eq.s32.totalorder %s39, 1
      %p183 = scmp.ne.s32.totalorder %s178, %s180
      %p184 = scmp.eq.s32.totalorder %s39, 0
      %p185 = por %p183, %p184
      %p186 = scmp.ne.s32.totalorder %s178, %s180
      %p187 = scmp.eq.s32.totalorder %s44, 1
      %p188 = por %p186, %p187
      %p189 = scmp.ne.s32.totalorder %s180, %s181
      %p190 = scmp.eq.s32.totalorder %s44, 0
      %p191 = por %p189, %p190
      %p192 = scmp.ne.s32.totalorder %s180, %s181
      %p193 = scmp.eq.s32.totalorder %s45, 1
      %p194 = por %p192, %p193
      %p196 = scmp.ne.s32.totalorder %s181, %s195
      %p197 = scmp.eq.s32.totalorder %s45, 0
      %p198 = por %p196, %p197
      %s200 = sadd.s32 %s199, 1
      %p203 = scmp.eq.s32.totalorder %s39, 1
      %p204 = scmp.ne.s32.totalorder %s199, %s201
      %p205 = scmp.eq.s32.totalorder %s39, 0
      %p206 = por %p204, %p205
      %p207 = scmp.ne.s32.totalorder %s199, %s201
      %p208 = scmp.eq.s32.totalorder %s44, 1
      %p209 = por %p207, %p208
      %p210 = scmp.ne.s32.totalorder %s201, %s202
      %p211 = scmp.eq.s32.totalorder %s44, 0
      %p212 = por %p210, %p211
      %p213 = scmp.ne.s32.totalorder %s201, %s202
      %p214 = scmp.eq.s32.totalorder %s45, 1
      %p215 = por %p213, %p214
      %p217 = scmp.ne.s32.totalorder %s202, %s216
      %p218 = scmp.eq.s32.totalorder %s45, 0
      %p219 = por %p217, %p218
      %s221 = sadd.s32 %s220, 1
      %p224 = scmp.eq.s32.totalorder %s39, 1
      %p225 = scmp.ne.s32.totalorder %s220, %s222
      %p226 = scmp.eq.s32.totalorder %s39, 0
      %p227 = por %p225, %p226
      %p228 = scmp.ne.s32.totalorder %s220, %s222
      %p229 = scmp.eq.s32.totalorder %s44, 1
      %p230 = por %p228, %p229
      %p231 = scmp.ne.s32.totalorder %s222, %s223
      %p232 = scmp.eq.s32.totalorder %s44, 0
      %p233 = por %p231, %p232
      %p234 = scmp.ne.s32.totalorder %s222, %s223
      %p235 = scmp.eq.s32.totalorder %s45, 1
      %p236 = por %p234, %p235
      %p238 = scmp.ne.s32.totalorder %s223, %s237
      %p239 = scmp.eq.s32.totalorder %s45, 0
      %p240 = por %p238, %p239
      %s242 = sadd.s32 %s241, 1
      %p245 = scmp.eq.s32.totalorder %s39, 1
      %p246 = scmp.ne.s32.totalorder %s241, %s243
      %p247 = scmp.eq.s32.totalorder %s39, 0
      %p248 = por %p246, %p247
      %p249 = scmp.ne.s32.totalorder %s241, %s243
      %p250 = scmp.eq.s32.totalorder %s44, 1
      %p251 = por %p249, %p250
      %p252 = scmp.ne.s32.totalorder %s243, %s244
      %p253 = scmp.eq.s32.totalorder %s44, 0
      %p254 = por %p252, %p253
      %p255 = scmp.ne.s32.totalorder %s243, %s244
      %p256 = scmp.eq.s32.totalorder %s45, 1
      %p257 = por %p255, %p256
      %p259 = scmp.ne.s32.totalorder %s244, %s258
      %p260 = scmp.eq.s32.totalorder %s45, 0
      %p261 = por %p259, %p260
      %s263 = sadd.s32 %s262, 1
      %p266 = scmp.eq.s32.totalorder %s39, 1
      %p267 = scmp.ne.s32.totalorder %s262, %s264
      %p268 = scmp.eq.s32.totalorder %s39, 0
      %p269 = por %p267, %p268
      %p270 = scmp.ne.s32.totalorder %s262, %s264
      %p271 = scmp.eq.s32.totalorder %s44, 1
      %p272 = por %p270, %p271
      %p273 = scmp.ne.s32.totalorder %s264, %s265
      %p274 = scmp.eq.s32.totalorder %s44, 0
      %p275 = por %p273, %p274
      %p276 = scmp.ne.s32.totalorder %s264, %s265
      %p277 = scmp.eq.s32.totalorder %s45, 1
      %p278 = por %p276, %p277
      %p280 = scmp.ne.s32.totalorder %s265, %s279
      %p281 = scmp.eq.s32.totalorder %s45, 0
      %p282 = por %p280, %p281
      %s284 = sadd.s32 %s283, 1
      %p287 = scmp.eq.s32.totalorder %s39, 1
      %p288 = scmp.ne.s32.totalorder %s283, %s285
      %p289 = scmp.eq.s32.totalorder %s39, 0
      %p290 = por %p288, %p289
      %p291 = scmp.ne.s32.totalorder %s283, %s285
      %p292 = scmp.eq.s32.totalorder %s44, 1
      %p293 = por %p291, %p292
      %p294 = scmp.ne.s32.totalorder %s285, %s286
      %p295 = scmp.eq.s32.totalorder %s44, 0
      %p296 = por %p294, %p295
      %p297 = scmp.ne.s32.totalorder %s285, %s286
      %p298 = scmp.eq.s32.totalorder %s45, 1
      %p299 = por %p297, %p298
      %p301 = scmp.ne.s32.totalorder %s286, %s300
      %p302 = scmp.eq.s32.totalorder %s45, 0
      %p303 = por %p301, %p302
      %s305 = sadd.s32 %s304, 1
      %p308 = scmp.eq.s32.totalorder %s39, 1
      %p309 = scmp.ne.s32.totalorder %s304, %s306
      %p310 = scmp.eq.s32.totalorder %s39, 0
      %p311 = por %p309, %p310
      %p312 = scmp.ne.s32.totalorder %s304, %s306
      %p313 = scmp.eq.s32.totalorder %s44, 1
      %p314 = por %p312, %p313
      %p315 = scmp.ne.s32.totalorder %s306, %s307
      %p316 = scmp.eq.s32.totalorder %s44, 0
      %p317 = por %p315, %p316
      %p318 = scmp.ne.s32.totalorder %s306, %s307
      %p319 = scmp.eq.s32.totalorder %s45, 1
      %p320 = por %p318, %p319
      %p322 = scmp.ne.s32.totalorder %s307, %s321
      %p323 = scmp.eq.s32.totalorder %s45, 0
      %p324 = por %p322, %p323
      %s326 = sadd.s32 %s325, 1
      %p329 = scmp.eq.s32.totalorder %s39, 1
      %p330 = scmp.ne.s32.totalorder %s325, %s327
      %p331 = scmp.eq.s32.totalorder %s39, 0
      %p332 = por %p330, %p331
      %p333 = scmp.ne.s32.totalorder %s325, %s327
      %p334 = scmp.eq.s32.totalorder %s44, 1
      %p335 = por %p333, %p334
      %p336 = scmp.ne.s32.totalorder %s327, %s328
      %p337 = scmp.eq.s32.totalorder %s44, 0
      %p338 = por %p336, %p337
      %p339 = scmp.ne.s32.totalorder %s327, %s328
      %p340 = scmp.eq.s32.totalorder %s45, 1
      %p341 = por %p339, %p340
      %p343 = scmp.ne.s32.totalorder %s328, %s342
      %p344 = scmp.eq.s32.totalorder %s45, 0
      %p345 = por %p343, %p344
      %s347 = sadd.s32 %s346, 1
      %p350 = scmp.eq.s32.totalorder %s39, 1
      %p351 = scmp.ne.s32.totalorder %s346, %s348
      %p352 = scmp.eq.s32.totalorder %s39, 0
      %p353 = por %p351, %p352
      %p354 = scmp.ne.s32.totalorder %s346, %s348
      %p355 = scmp.eq.s32.totalorder %s44, 1
      %p356 = por %p354, %p355
      %p357 = scmp.ne.s32.totalorder %s348, %s349
      %p358 = scmp.eq.s32.totalorder %s44, 0
      %p359 = por %p357, %p358
      %p360 = scmp.ne.s32.totalorder %s348, %s349
      %p361 = scmp.eq.s32.totalorder %s45, 1
      %p362 = por %p360, %p361
      %p364 = scmp.ne.s32.totalorder %s349, %s363
      %p365 = scmp.eq.s32.totalorder %s45, 0
      %p366 = por %p364, %p365
      %s368 = sadd.s32 %s367, 1
      %p371 = scmp.eq.s32.totalorder %s39, 1
      %p372 = scmp.ne.s32.totalorder %s367, %s369
      %p373 = scmp.eq.s32.totalorder %s39, 0
      %p374 = por %p372, %p373
      %p375 = scmp.ne.s32.totalorder %s367, %s369
      %p376 = scmp.eq.s32.totalorder %s44, 1
      %p377 = por %p375, %p376
      %p378 = scmp.ne.s32.totalorder %s369, %s370
      %p379 = scmp.eq.s32.totalorder %s44, 0
      %p380 = por %p378, %p379
      %p381 = scmp.ne.s32.totalorder %s369, %s370
      %p382 = scmp.eq.s32.totalorder %s45, 1
      %p383 = por %p381, %p382
      %p385 = scmp.ne.s32.totalorder %s370, %s384
      %p386 = scmp.eq.s32.totalorder %s45, 0
      %p387 = por %p385, %p386
      %s389 = sadd.s32 %s388, 1
      %p392 = scmp.eq.s32.totalorder %s39, 1
      %p393 = scmp.ne.s32.totalorder %s388, %s390
      %p394 = scmp.eq.s32.totalorder %s39, 0
      %p395 = por %p393, %p394
      %p396 = scmp.ne.s32.totalorder %s388, %s390
      %p397 = scmp.eq.s32.totalorder %s44, 1
      %p398 = por %p396, %p397
      %p399 = scmp.ne.s32.totalorder %s390, %s391
      %p400 = scmp.eq.s32.totalorder %s44, 0
      %p401 = por %p399, %p400
      %p402 = scmp.ne.s32.totalorder %s390, %s391
      %p403 = scmp.eq.s32.totalorder %s45, 1
      %p404 = por %p402, %p403
      %p406 = scmp.ne.s32.totalorder %s391, %s405
      %p407 = scmp.eq.s32.totalorder %s45, 0
      %p408 = por %p406, %p407
      %s410 = sadd.s32 %s409, 1
      %p413 = scmp.eq.s32.totalorder %s39, 1
      %p414 = scmp.ne.s32.totalorder %s409, %s411
      %p415 = scmp.eq.s32.totalorder %s39, 0
      %p416 = por %p414, %p415
      %p417 = scmp.ne.s32.totalorder %s409, %s411
      %p418 = scmp.eq.s32.totalorder %s44, 1
      %p419 = por %p417, %p418
      %p420 = scmp.ne.s32.totalorder %s411, %s412
      %p421 = scmp.eq.s32.totalorder %s44, 0
      %p422 = por %p420, %p421
      %p423 = scmp.ne.s32.totalorder %s411, %s412
      %p424 = scmp.eq.s32.totalorder %s45, 1
      %p425 = por %p423, %p424
      %p427 = scmp.ne.s32.totalorder %s412, %s426
      %p428 = scmp.eq.s32.totalorder %s45, 0
      %p429 = por %p427, %p428
      %s431 = sadd.s32 %s430, 1
      %p434 = scmp.eq.s32.totalorder %s39, 1
      %p435 = scmp.ne.s32.totalorder %s430, %s432
      %p436 = scmp.eq.s32.totalorder %s39, 0
      %p437 = por %p435, %p436
      %p438 = scmp.ne.s32.totalorder %s430, %s432
      %p439 = scmp.eq.s32.totalorder %s44, 1
      %p440 = por %p438, %p439
      %p441 = scmp.ne.s32.totalorder %s432, %s433
      %p442 = scmp.eq.s32.totalorder %s44, 0
      %p443 = por %p441, %p442
      %p444 = scmp.ne.s32.totalorder %s432, %s433
      %p445 = scmp.eq.s32.totalorder %s45, 1
      %p446 = por %p444, %p445
      %p448 = scmp.ne.s32.totalorder %s433, %s447
      %p449 = scmp.eq.s32.totalorder %s45, 0
      %p450 = por %p448, %p449
      %s452 = sadd.s32 %s451, 1
      %p455 = scmp.eq.s32.totalorder %s39, 1
      %p456 = scmp.ne.s32.totalorder %s451, %s453
      %p457 = scmp.eq.s32.totalorder %s39, 0
      %p458 = por %p456, %p457
      %p459 = scmp.ne.s32.totalorder %s451, %s453
      %p460 = scmp.eq.s32.totalorder %s44, 1
      %p461 = por %p459, %p460
      %p462 = scmp.ne.s32.totalorder %s453, %s454
      %p463 = scmp.eq.s32.totalorder %s44, 0
      %p464 = por %p462, %p463
      %p465 = scmp.ne.s32.totalorder %s453, %s454
      %p466 = scmp.eq.s32.totalorder %s45, 1
      %p467 = por %p465, %p466
      %p469 = scmp.ne.s32.totalorder %s454, %s468
      %p470 = scmp.eq.s32.totalorder %s45, 0
      %p471 = por %p469, %p470
      %s473 = sadd.s32 %s472, 1
      %p476 = scmp.eq.s32.totalorder %s39, 1
      %p477 = scmp.ne.s32.totalorder %s472, %s474
      %p478 = scmp.eq.s32.totalorder %s39, 0
      %p479 = por %p477, %p478
      %p480 = scmp.ne.s32.totalorder %s472, %s474
      %p481 = scmp.eq.s32.totalorder %s44, 1
      %p482 = por %p480, %p481
      %p483 = scmp.ne.s32.totalorder %s474, %s475
      %p484 = scmp.eq.s32.totalorder %s44, 0
      %p485 = por %p483, %p484
      %p486 = scmp.ne.s32.totalorder %s474, %s475
      %p487 = scmp.eq.s32.totalorder %s45, 1
      %p488 = por %p486, %p487
      %p490 = scmp.ne.s32.totalorder %s475, %s489
      %p491 = scmp.eq.s32.totalorder %s45, 0
      %p492 = por %p490, %p491
      %s493 = ssub.s32 %s39, %s46
      %p494 = scmp.eq.s32.totalorder %s493, 0
      %s496 = sadd.s32 %s495, 1
      %s497 = scalar_select %p494, %s495, %s496
      %p500 = pneg %p494
      %p501 = scmp.eq.s32.totalorder %s39, 1
      %p502 = por %p500, %p501
      %p503 = scmp.ne.s32.totalorder %s495, %s498
      %p504 = scmp.eq.s32.totalorder %s39, 0
      %p505 = por %p503, %p504
      %p506 = scmp.ne.s32.totalorder %s495, %s498
      %p507 = scmp.eq.s32.totalorder %s44, 1
      %p508 = por %p506, %p507
      %p509 = scmp.ne.s32.totalorder %s498, %s499
      %p510 = scmp.eq.s32.totalorder %s44, 0
      %p511 = por %p509, %p510
      %p512 = scmp.ne.s32.totalorder %s498, %s499
      %p513 = scmp.eq.s32.totalorder %s45, 1
      %p514 = por %p512, %p513
      %p516 = scmp.ne.s32.totalorder %s499, %s515
      %p517 = scmp.eq.s32.totalorder %s45, 0
      %p518 = por %p516, %p517
      %p519 = scmp.le.s32.totalorder 1, %s39
      %p520 = scmp.lt.s32.totalorder %s39, 3
      %p521 = pnand %p519, %p520
      %p522 = pneg %p521
      // Predicated region
      $region9: #{tpu_custom_call.1} parent=5 // pred_check
        _
      $region10: #{tpu_custom_call.1} parent=5 // pred_check_branch
        %524 = sbr.rel (%p521) target = $region12
      $region11: #{tpu_custom_call.1} parent=5 // pred_region
        %s525 = ssub.s32 %s39, 1
        // Predicated region
        $region13: #{tpu_custom_call.1} parent=11 // pred_check
          %p526 = pneg %p86
        $region14: #{tpu_custom_call.1} parent=11 // pred_check_branch
          %528 = sbr.rel (%p526) target = $region16
        $region15: #{tpu_custom_call.1} parent=11 // pred_region
          %530 = vsyncadd [#allocation6], 0
          %s531 = sshll.u32 %s1, 4
          %s532 = int_to_ptr.hbm [resolvable:$true] %s531
          %s533 = sshll.u32 [#allocation5], 4
          %s534 = int_to_ptr.vmem [resolvable:$true] %s533
          %539 = dma.hbm_to_vmem [thread:$0]  %s532, 1024, %s534, [#allocation6], 256, 256, 16
        $region16: #{tpu_custom_call.1} parent=11 // pred_fallthru
          _
        // Predicated region
        $region17: #{tpu_custom_call.1} parent=11 // pred_check
          %p540 = pneg %p107
        $region18: #{tpu_custom_call.1} parent=11 // pred_check_branch
          %542 = sbr.rel (%p540) target = $region20
        $region19: #{tpu_custom_call.1} parent=11 // pred_region
          %544 = vsyncadd [#allocation6], 0
          %s546 = sshll.u32 %s2, 4
          %s547 = int_to_ptr.hbm [resolvable:$true] %s546
          %s548 = sshll.u32 [#allocation7], 4
          %s549 = int_to_ptr.vmem [resolvable:$true] %s548
          %551 = dma.hbm_to_vmem [thread:$0]  %s547, 32, %s549, [#allocation6]
        $region20: #{tpu_custom_call.1} parent=11 // pred_fallthru
          _
        // Predicated region
        $region21: #{tpu_custom_call.1} parent=11 // pred_check
          %p552 = pneg %p128
        $region22: #{tpu_custom_call.1} parent=11 // pred_check_branch
          %554 = sbr.rel (%p552) target = $region24
        $region23: #{tpu_custom_call.1} parent=11 // pred_region
          %556 = vsyncadd [#allocation9], 0
          %s557 = sshll.u32 %s3, 4
          %s558 = int_to_ptr.hbm [resolvable:$true] %s557
          %s559 = sshll.u32 [#allocation8], 4
          %s560 = int_to_ptr.vmem [resolvable:$true] %s559
          %565 = dma.hbm_to_vmem [thread:$0]  %s558, 4096, %s560, [#allocation9], 128, 128, 8
        $region24: #{tpu_custom_call.1} parent=11 // pred_fallthru
          _
        // Predicated region
        $region25: #{tpu_custom_call.1} parent=11 // pred_check
          %p566 = pneg %p149
        $region26: #{tpu_custom_call.1} parent=11 // pred_check_branch
          %568 = sbr.rel (%p566) target = $region28
        $region27: #{tpu_custom_call.1} parent=11 // pred_region
          _
        $region28: #{tpu_custom_call.1} parent=11 // pred_fallthru
          _
        // Predicated region
        $region29: #{tpu_custom_call.1} parent=11 // pred_check
          %p569 = pneg %p170
        $region30: #{tpu_custom_call.1} parent=11 // pred_check_branch
          %571 = sbr.rel (%p569) target = $region32
        $region31: #{tpu_custom_call.1} parent=11 // pred_region
          %573 = vsyncadd [#allocation9], 0
          %s574 = sshll.u32 %s5, 4
          %s575 = int_to_ptr.hbm [resolvable:$true] %s574
          %s576 = sshll.u32 [#allocation10], 4
          %s577 = int_to_ptr.vmem [resolvable:$true] %s576
          %582 = dma.hbm_to_vmem [thread:$0]  %s575, 2048, %s577, [#allocation9], 128, 128, 8
        $region32: #{tpu_custom_call.1} parent=11 // pred_fallthru
          _
        // Predicated region
        $region33: #{tpu_custom_call.1} parent=11 // pred_check
          %p583 = pneg %p191
        $region34: #{tpu_custom_call.1} parent=11 // pred_check_branch
          %585 = sbr.rel (%p583) target = $region36
        $region35: #{tpu_custom_call.1} parent=11 // pred_region
          _
        $region36: #{tpu_custom_call.1} parent=11 // pred_fallthru
          _
        // Predicated region
        $region37: #{tpu_custom_call.1} parent=11 // pred_check
          %p586 = pneg %p212
        $region38: #{tpu_custom_call.1} parent=11 // pred_check_branch
          %588 = sbr.rel (%p586) target = $region40
        $region39: #{tpu_custom_call.1} parent=11 // pred_region
          %590 = vsyncadd [#allocation12], 0
          %s591 = sshll.u32 %s7, 4
          %s592 = int_to_ptr.hbm [resolvable:$true] %s591
          %s593 = sshll.u32 [#allocation11], 4
          %s594 = int_to_ptr.vmem [resolvable:$true] %s593
          %599 = dma.hbm_to_vmem [thread:$0]  %s592, 2048, %s594, [#allocation12], 128, 128, 8
        $region40: #{tpu_custom_call.1} parent=11 // pred_fallthru
          _
        // Predicated region
        $region41: #{tpu_custom_call.1} parent=11 // pred_check
          %p600 = pneg %p233
        $region42: #{tpu_custom_call.1} parent=11 // pred_check_branch
          %602 = sbr.rel (%p600) target = $region44
        $region43: #{tpu_custom_call.1} parent=11 // pred_region
          _
        $region44: #{tpu_custom_call.1} parent=11 // pred_fallthru
          _
        // Predicated region
        $region45: #{tpu_custom_call.1} parent=11 // pred_check
          %p603 = pneg %p254
        $region46: #{tpu_custom_call.1} parent=11 // pred_check_branch
          %605 = sbr.rel (%p603) target = $region48
        $region47: #{tpu_custom_call.1} parent=11 // pred_region
          %607 = vsyncadd [#allocation12], 0
          %s608 = sshll.u32 %s9, 4
          %s609 = int_to_ptr.hbm [resolvable:$true] %s608
          %s610 = sshll.u32 [#allocation13], 4
          %s611 = int_to_ptr.vmem [resolvable:$true] %s610
          %616 = dma.hbm_to_vmem [thread:$0]  %s609, 2048, %s611, [#allocation12], 128, 128, 8
        $region48: #{tpu_custom_call.1} parent=11 // pred_fallthru
          _
        // Predicated region
        $region49: #{tpu_custom_call.1} parent=11 // pred_check
          %p617 = pneg %p275
        $region50: #{tpu_custom_call.1} parent=11 // pred_check_branch
          %619 = sbr.rel (%p617) target = $region52
        $region51: #{tpu_custom_call.1} parent=11 // pred_region
          _
        $region52: #{tpu_custom_call.1} parent=11 // pred_fallthru
          _
        // Predicated region
        $region53: #{tpu_custom_call.1} parent=11 // pred_check
          %p620 = pneg %p296
        $region54: #{tpu_custom_call.1} parent=11 // pred_check_branch
          %622 = sbr.rel (%p620) target = $region56
        $region55: #{tpu_custom_call.1} parent=11 // pred_region
          %624 = vsyncadd [#allocation15], 0
          %s625 = sshll.u32 %s11, 4
          %s626 = int_to_ptr.hbm [resolvable:$true] %s625
          %s627 = sshll.u32 [#allocation14], 4
          %s628 = int_to_ptr.vmem [resolvable:$true] %s627
          %633 = dma.hbm_to_vmem [thread:$0]  %s626, 2048, %s628, [#allocation15], 128, 128, 8
        $region56: #{tpu_custom_call.1} parent=11 // pred_fallthru
          _
        // Predicated region
        $region57: #{tpu_custom_call.1} parent=11 // pred_check
          %p634 = pneg %p317
        $region58: #{tpu_custom_call.1} parent=11 // pred_check_branch
          %636 = sbr.rel (%p634) target = $region60
        $region59: #{tpu_custom_call.1} parent=11 // pred_region
          _
        $region60: #{tpu_custom_call.1} parent=11 // pred_fallthru
          _
        // Predicated region
        $region61: #{tpu_custom_call.1} parent=11 // pred_check
          %p637 = pneg %p338
        $region62: #{tpu_custom_call.1} parent=11 // pred_check_branch
          %639 = sbr.rel (%p637) target = $region64
        $region63: #{tpu_custom_call.1} parent=11 // pred_region
          %641 = vsyncadd [#allocation15], 0
          %s642 = sshll.u32 %s13, 4
          %s643 = int_to_ptr.hbm [resolvable:$true] %s642
          %s644 = sshll.u32 [#allocation16], 4
          %s645 = int_to_ptr.vmem [resolvable:$true] %s644
          %650 = dma.hbm_to_vmem [thread:$0]  %s643, 2048, %s645, [#allocation15], 128, 128, 8
        $region64: #{tpu_custom_call.1} parent=11 // pred_fallthru
          _
        // Predicated region
        $region65: #{tpu_custom_call.1} parent=11 // pred_check
          %p651 = pneg %p359
        $region66: #{tpu_custom_call.1} parent=11 // pred_check_branch
          %653 = sbr.rel (%p651) target = $region68
        $region67: #{tpu_custom_call.1} parent=11 // pred_region
          _
        $region68: #{tpu_custom_call.1} parent=11 // pred_fallthru
          _
        // Predicated region
        $region69: #{tpu_custom_call.1} parent=11 // pred_check
          %p654 = pneg %p380
        $region70: #{tpu_custom_call.1} parent=11 // pred_check_branch
          %656 = sbr.rel (%p654) target = $region72
        $region71: #{tpu_custom_call.1} parent=11 // pred_region
          %658 = vsyncadd [#allocation18], 0
          %s659 = sshll.u32 %s15, 4
          %s660 = int_to_ptr.hbm [resolvable:$true] %s659
          %s661 = sshll.u32 [#allocation17], 4
          %s662 = int_to_ptr.vmem [resolvable:$true] %s661
          %667 = dma.hbm_to_vmem [thread:$0]  %s660, 2048, %s662, [#allocation18], 128, 128, 8
        $region72: #{tpu_custom_call.1} parent=11 // pred_fallthru
          _
        // Predicated region
        $region73: #{tpu_custom_call.1} parent=11 // pred_check
          %p668 = pneg %p401
        $region74: #{tpu_custom_call.1} parent=11 // pred_check_branch
          %670 = sbr.rel (%p668) target = $region76
        $region75: #{tpu_custom_call.1} parent=11 // pred_region
          _
        $region76: #{tpu_custom_call.1} parent=11 // pred_fallthru
          _
        // Predicated region
        $region77: #{tpu_custom_call.1} parent=11 // pred_check
          %p671 = pneg %p422
        $region78: #{tpu_custom_call.1} parent=11 // pred_check_branch
          %673 = sbr.rel (%p671) target = $region80
        $region79: #{tpu_custom_call.1} parent=11 // pred_region
          %675 = vsyncadd [#allocation18], 0
          %s676 = sshll.u32 %s17, 4
          %s677 = int_to_ptr.hbm [resolvable:$true] %s676
          %s678 = sshll.u32 [#allocation19], 4
          %s679 = int_to_ptr.vmem [resolvable:$true] %s678
          %684 = dma.hbm_to_vmem [thread:$0]  %s677, 4096, %s679, [#allocation18], 256, 256, 16
        $region80: #{tpu_custom_call.1} parent=11 // pred_fallthru
          _
        // Predicated region
        $region81: #{tpu_custom_call.1} parent=11 // pred_check
          %p685 = pneg %p443
        $region82: #{tpu_custom_call.1} parent=11 // pred_check_branch
          %687 = sbr.rel (%p685) target = $region84
        $region83: #{tpu_custom_call.1} parent=11 // pred_region
          _
        $region84: #{tpu_custom_call.1} parent=11 // pred_fallthru
          _
        // Predicated region
        $region85: #{tpu_custom_call.1} parent=11 // pred_check
          %p688 = pneg %p464
        $region86: #{tpu_custom_call.1} parent=11 // pred_check_branch
          %690 = sbr.rel (%p688) target = $region88
        $region87: #{tpu_custom_call.1} parent=11 // pred_region
          %692 = vsyncadd [#allocation21], 0
          %s693 = sshll.u32 %s19, 4
          %s694 = int_to_ptr.hbm [resolvable:$true] %s693
          %s695 = sshll.u32 [#allocation20], 4
          %s696 = int_to_ptr.vmem [resolvable:$true] %s695
          %701 = dma.hbm_to_vmem [thread:$0]  %s694, 4096, %s696, [#allocation21], 128, 128, 8
        $region88: #{tpu_custom_call.1} parent=11 // pred_fallthru
          _
        // Predicated region
        $region89: #{tpu_custom_call.1} parent=11 // pred_check
          %p702 = pneg %p485
        $region90: #{tpu_custom_call.1} parent=11 // pred_check_branch
          %704 = sbr.rel (%p702) target = $region92
        $region91: #{tpu_custom_call.1} parent=11 // pred_region
          _
        $region92: #{tpu_custom_call.1} parent=11 // pred_fallthru
          _
      $region12: #{tpu_custom_call.1} parent=5 // pred_fallthru
        _
      %p705 = scmp.lt.s32.totalorder %s39, 2
      // Predicated region
      $region93: #{tpu_custom_call.1} parent=5 // pred_check
        %p706 = pneg %p705
      $region94: #{tpu_custom_call.1} parent=5 // pred_check_branch
        %708 = sbr.rel (%p706) target = $region96
      $region95: #{tpu_custom_call.1} parent=5 // pred_region
        // Predicated region
        $region97: #{tpu_custom_call.1} parent=95 // pred_check
          %p709 = pneg %p59
        $region98: #{tpu_custom_call.1} parent=95 // pred_check_branch
          %711 = sbr.rel (%p709) target = $region100
        $region99: #{tpu_custom_call.1} parent=95 // pred_region
          %s712 = sand.u32 %s49, 1
          %s713 = scalar_lea.sflag [#allocation3], %s712
          %s714 = sand.u32 %s49, 1
          %s715 = smul.addr %s714, 16
          %s716 = scalar_lea.vmem [#allocation2], %s715
          %s717 = smul.u32 2, %s39
          %719 = vsyncadd %s713, 0
          %s720 = smul.addr %s717, 8
          %s721 = scalar_lea.hbm %s0, %s720
          %s722 = sshll.u32 %s721, 4
          %s723 = int_to_ptr.hbm [resolvable:$true] %s722
          %s724 = sshll.u32 %s716, 4
          %s725 = int_to_ptr.vmem [resolvable:$true] %s724
          %730 = dma.hbm_to_vmem [thread:$0]  %s723, 256, %s725, %s713, 128, 128, 8
        $region100: #{tpu_custom_call.1} parent=95 // pred_fallthru
          _
      $region96: #{tpu_custom_call.1} parent=5 // pred_fallthru
        _
      %p731 = scmp.le.s32.totalorder 1, %s39
      %p732 = scmp.lt.s32.totalorder %s39, 3
      %p733 = pnand %p731, %p732
      %p734 = pneg %p733
      // Predicated region
      $region101: #{tpu_custom_call.1} parent=5 // pred_check
        _
      $region102: #{tpu_custom_call.1} parent=5 // pred_check_branch
        %736 = sbr.rel (%p733) target = $region104
      $region103: #{tpu_custom_call.1} parent=5 // pred_region
        %s737 = ssub.s32 %s39, 1
        %s738 = sand.u32 %s52, 1
        %s739 = scalar_lea.sflag [#allocation3], %s738
        %s740 = sand.u32 %s52, 1
        %s741 = smul.addr %s740, 16
        %s742 = scalar_lea.vmem [#allocation2], %s741
        // Predicated region
        $region105: #{tpu_custom_call.1} parent=103 // pred_check
          %p743 = pneg %p65
        $region106: #{tpu_custom_call.1} parent=103 // pred_check_branch
          %745 = sbr.rel (%p743) target = $region108
        $region107: #{tpu_custom_call.1} parent=103 // pred_region
          %747 = dma.done %s739, 256
        $region108: #{tpu_custom_call.1} parent=103 // pred_fallthru
          _
        // Predicated region
        $region109: #{tpu_custom_call.1} parent=103 // pred_check
          %p748 = pneg %p86
        $region110: #{tpu_custom_call.1} parent=103 // pred_check_branch
          %750 = sbr.rel (%p748) target = $region112
        $region111: #{tpu_custom_call.1} parent=103 // pred_region
          %752 = dma.done [#allocation6], 1024
        $region112: #{tpu_custom_call.1} parent=103 // pred_fallthru
          _
        // Predicated region
        $region113: #{tpu_custom_call.1} parent=103 // pred_check
          %p753 = pneg %p107
        $region114: #{tpu_custom_call.1} parent=103 // pred_check_branch
          %755 = sbr.rel (%p753) target = $region116
        $region115: #{tpu_custom_call.1} parent=103 // pred_region
          %757 = dma.done [#allocation6], 32
        $region116: #{tpu_custom_call.1} parent=103 // pred_fallthru
          _
        // Predicated region
        $region117: #{tpu_custom_call.1} parent=103 // pred_check
          %p758 = pneg %p128
        $region118: #{tpu_custom_call.1} parent=103 // pred_check_branch
          %760 = sbr.rel (%p758) target = $region120
        $region119: #{tpu_custom_call.1} parent=103 // pred_region
          %762 = dma.done [#allocation9], 4096
        $region120: #{tpu_custom_call.1} parent=103 // pred_fallthru
          _
        // Predicated region
        $region121: #{tpu_custom_call.1} parent=103 // pred_check
          %p763 = pneg %p170
        $region122: #{tpu_custom_call.1} parent=103 // pred_check_branch
          %765 = sbr.rel (%p763) target = $region124
        $region123: #{tpu_custom_call.1} parent=103 // pred_region
          %767 = dma.done [#allocation9], 2048
        $region124: #{tpu_custom_call.1} parent=103 // pred_fallthru
          _
        // Predicated region
        $region125: #{tpu_custom_call.1} parent=103 // pred_check
          %p768 = pneg %p212
        $region126: #{tpu_custom_call.1} parent=103 // pred_check_branch
          %770 = sbr.rel (%p768) target = $region128
        $region127: #{tpu_custom_call.1} parent=103 // pred_region
          %772 = dma.done [#allocation12], 2048
        $region128: #{tpu_custom_call.1} parent=103 // pred_fallthru
          _
        // Predicated region
        $region129: #{tpu_custom_call.1} parent=103 // pred_check
          %p773 = pneg %p254
        $region130: #{tpu_custom_call.1} parent=103 // pred_check_branch
          %775 = sbr.rel (%p773) target = $region132
        $region131: #{tpu_custom_call.1} parent=103 // pred_region
          %777 = dma.done [#allocation12], 2048
        $region132: #{tpu_custom_call.1} parent=103 // pred_fallthru
          _
        // Predicated region
        $region133: #{tpu_custom_call.1} parent=103 // pred_check
          %p778 = pneg %p296
        $region134: #{tpu_custom_call.1} parent=103 // pred_check_branch
          %780 = sbr.rel (%p778) target = $region136
        $region135: #{tpu_custom_call.1} parent=103 // pred_region
          %782 = dma.done [#allocation15], 2048
        $region136: #{tpu_custom_call.1} parent=103 // pred_fallthru
          _
        // Predicated region
        $region137: #{tpu_custom_call.1} parent=103 // pred_check
          %p783 = pneg %p338
        $region138: #{tpu_custom_call.1} parent=103 // pred_check_branch
          %785 = sbr.rel (%p783) target = $region140
        $region139: #{tpu_custom_call.1} parent=103 // pred_region
          %787 = dma.done [#allocation15], 2048
        $region140: #{tpu_custom_call.1} parent=103 // pred_fallthru
          _
        // Predicated region
        $region141: #{tpu_custom_call.1} parent=103 // pred_check
          %p788 = pneg %p380
        $region142: #{tpu_custom_call.1} parent=103 // pred_check_branch
          %790 = sbr.rel (%p788) target = $region144
        $region143: #{tpu_custom_call.1} parent=103 // pred_region
          %792 = dma.done [#allocation18], 2048
        $region144: #{tpu_custom_call.1} parent=103 // pred_fallthru
          _
        // Predicated region
        $region145: #{tpu_custom_call.1} parent=103 // pred_check
          %p793 = pneg %p422
        $region146: #{tpu_custom_call.1} parent=103 // pred_check_branch
          %795 = sbr.rel (%p793) target = $region148
        $region147: #{tpu_custom_call.1} parent=103 // pred_region
          %797 = dma.done [#allocation18], 4096
        $region148: #{tpu_custom_call.1} parent=103 // pred_fallthru
          _
        // Predicated region
        $region149: #{tpu_custom_call.1} parent=103 // pred_check
          %p798 = pneg %p464
        $region150: #{tpu_custom_call.1} parent=103 // pred_check_branch
          %800 = sbr.rel (%p798) target = $region152
        $region151: #{tpu_custom_call.1} parent=103 // pred_region
          %802 = dma.done [#allocation21], 4096
        $region152: #{tpu_custom_call.1} parent=103 // pred_fallthru
          _
        %s803 = sand.u32 %s52, 1
        %s804 = scalar_lea.sflag [#allocation3], %s803
        %s805 = sand.u32 %s52, 1
        %s806 = smul.addr %s805, 16
        %s807 = scalar_lea.vmem [#allocation2], %s806
        %p808 = pneg %p65
        %p809 = pneg %p62
        %p810 = pneg %p86
        %p811 = pneg %p83
        %p812 = pneg %p107
        %p813 = pneg %p104
        %p814 = pneg %p128
        %p815 = pneg %p125
        %p816 = pneg %p149
        %p817 = pneg %p146
        %p818 = pneg %p170
        %p819 = pneg %p167
        %p820 = pneg %p191
        %p821 = pneg %p188
        %p822 = pneg %p212
        %p823 = pneg %p209
        %p824 = pneg %p233
        %p825 = pneg %p230
        %p826 = pneg %p254
        %p827 = pneg %p251
        %p828 = pneg %p275
        %p829 = pneg %p272
        %p830 = pneg %p296
        %p831 = pneg %p293
        %p832 = pneg %p317
        %p833 = pneg %p314
        %p834 = pneg %p338
        %p835 = pneg %p335
        %p836 = pneg %p359
        %p837 = pneg %p356
        %p838 = pneg %p380
        %p839 = pneg %p377
        %p840 = pneg %p401
        %p841 = pneg %p398
        %p842 = pneg %p422
        %p843 = pneg %p419
        %p844 = pneg %p443
        %p845 = pneg %p440
        %p846 = pneg %p464
        %p847 = pneg %p461
        %p848 = pneg %p485
        %p849 = pneg %p482
        %p850 = pneg %p511
        %p851 = pneg %p508
        %s852 = sand.u32 %s498, 1
        %s853 = scalar_lea.sflag [#allocation4], %s852
        %s854 = sand.u32 %s498, 1
        %s855 = smul.addr %s854, 16
        %s856 = scalar_lea.vmem [#allocation22], %s855
        %s857 = smul.u32 2, %s44
        %s858 = smul.u32 2, %s44
        %v859 = vld [vmem:[%s742] sm:$0xff]
        %v860 = vld [vmem:[%s742 + $0x8] sm:$0xff]
        %v861 = vld [vmem:[#allocation5] sm:$0xff]
        %v862 = vld [vmem:[#allocation5 + $0x8] sm:$0xff]
        %v863 = vld [vmem:[#allocation5 + $0x10] sm:$0xff]
        %v864 = vld [vmem:[#allocation5 + $0x18] sm:$0xff]
        %v865 = vld [vmem:[#allocation5 + $0x20] sm:$0xff]
        %v866 = vld [vmem:[#allocation5 + $0x28] sm:$0xff]
        %v867 = vld [vmem:[#allocation5 + $0x30] sm:$0xff]
        %v868 = vld [vmem:[#allocation5 + $0x38] sm:$0xff]
        %v869 = vld [vmem:[#allocation7] sm:$0x3]
        %v871 = vperm.slane %v869, 0
        %v872 = vperm.slane %v869, 1
        %vm875 = vcmask 261120
        %v877 = vsel %vm875, %v859, 0
        %v880 = vsel %vm875, %v860, 0
        %882 = vmatpush.msra.mxu0 0.0
        %883 = vmatpush.msra.mxu0 0.0
        %884 = vmatpush.msra.mxu0 0.0
        %885 = vmatpush.msra.mxu0 0.0
        %886 = vmatpush.msra.mxu0 0.0
        %887 = vmatpush.msra.mxu0 0.0
        %888 = vmatpush.msra.mxu0 0.0
        %889 = vmatpush.msra.mxu0 0.0
        %890 = vmatpush.msra.mxu0 0.0
        %891 = vmatpush.msra.mxu0 0.0
        %892 = vmatpush.msra.mxu0 0.0
        %893 = vmatpush.msra.mxu0 0.0
        %894 = vmatpush.msra.mxu0 %v867
        %895 = vmatpush.msra.mxu0 %v865
        %896 = vmatpush.msra.mxu0 %v863
        %897 = vmatpush.msra.mxu0 %v861
        %898 = vmatmul.f32.gmra.mxu0 %v877
        %v899 = vpop.f32.mrf.mxu0
        %v900 = vadd.f32 %v871, %v899
        %901 = vmatmul.f32.gmra.mxu0 %v880
        %v902 = vpop.f32.mrf.mxu0
        %v903 = vadd.f32 %v871, %v902
        %904 = vdwg.mxu0
        %905 = vmatpush.msra.mxu0 0.0
        %906 = vmatpush.msra.mxu0 0.0
        %907 = vmatpush.msra.mxu0 0.0
        %908 = vmatpush.msra.mxu0 0.0
        %909 = vmatpush.msra.mxu0 0.0
        %910 = vmatpush.msra.mxu0 0.0
        %911 = vmatpush.msra.mxu0 0.0
        %912 = vmatpush.msra.mxu0 0.0
        %913 = vmatpush.msra.mxu0 0.0
        %914 = vmatpush.msra.mxu0 0.0
        %915 = vmatpush.msra.mxu0 0.0
        %916 = vmatpush.msra.mxu0 0.0
        %917 = vmatpush.msra.mxu0 %v868
        %918 = vmatpush.msra.mxu0 %v866
        %919 = vmatpush.msra.mxu0 %v864
        %920 = vmatpush.msra.mxu0 %v862
        %921 = vmatmul.f32.gmra.mxu0 %v877
        %v922 = vpop.f32.mrf.mxu0
        %v923 = vadd.f32 %v872, %v922
        %924 = vmatmul.f32.gmra.mxu0 %v880
        %v925 = vpop.f32.mrf.mxu0
        %v926 = vadd.f32 %v872, %v925
        %927 = vdwg.mxu0
        %v928 = vmax.f32 %v900, 0.0
        %v929 = vmax.f32 %v923, 0.0
        %v930 = vmax.f32 %v903, 0.0
        %v931 = vmax.f32 %v926, 0.0
        %v932 = vld [vmem:[#allocation8] sm:$0xff]
        %v933 = vld [vmem:[#allocation8 + $0x8] sm:$0xff]
        %v934 = vld [vmem:[#allocation8 + $0x10] sm:$0xff]
        %v935 = vld [vmem:[#allocation8 + $0x18] sm:$0xff]
        %v936 = vld [vmem:[#allocation8 + $0x20] sm:$0xff]
        %v937 = vld [vmem:[#allocation8 + $0x28] sm:$0xff]
        %v938 = vld [vmem:[#allocation8 + $0x30] sm:$0xff]
        %v939 = vld [vmem:[#allocation8 + $0x38] sm:$0xff]
        %v940 = vld [vmem:[#allocation8 + $0x40] sm:$0xff]
        %v941 = vld [vmem:[#allocation8 + $0x48] sm:$0xff]
        %v942 = vld [vmem:[#allocation8 + $0x50] sm:$0xff]
        %v943 = vld [vmem:[#allocation8 + $0x58] sm:$0xff]
        %v944 = vld [vmem:[#allocation8 + $0x60] sm:$0xff]
        %v945 = vld [vmem:[#allocation8 + $0x68] sm:$0xff]
        %v946 = vld [vmem:[#allocation8 + $0x70] sm:$0xff]
        %v947 = vld [vmem:[#allocation8 + $0x78] sm:$0xff]
        %v948 = vld [vmem:[#allocation8 + $0x80] sm:$0xff]
        %v949 = vld [vmem:[#allocation8 + $0x88] sm:$0xff]
        %v950 = vld [vmem:[#allocation8 + $0x90] sm:$0xff]
        %v951 = vld [vmem:[#allocation8 + $0x98] sm:$0xff]
        %v952 = vld [vmem:[#allocation8 + $0xa0] sm:$0xff]
        %v953 = vld [vmem:[#allocation8 + $0xa8] sm:$0xff]
        %v954 = vld [vmem:[#allocation8 + $0xb0] sm:$0xff]
        %v955 = vld [vmem:[#allocation8 + $0xb8] sm:$0xff]
        %v956 = vld [vmem:[#allocation8 + $0xc0] sm:$0xff]
        %v957 = vld [vmem:[#allocation8 + $0xc8] sm:$0xff]
        %v958 = vld [vmem:[#allocation8 + $0xd0] sm:$0xff]
        %v959 = vld [vmem:[#allocation8 + $0xd8] sm:$0xff]
        %v960 = vld [vmem:[#allocation8 + $0xe0] sm:$0xff]
        %v961 = vld [vmem:[#allocation8 + $0xe8] sm:$0xff]
        %v962 = vld [vmem:[#allocation8 + $0xf0] sm:$0xff]
        %v963 = vld [vmem:[#allocation8 + $0xf8] sm:$0xff]
        %v964 = vld [vmem:[%s4] sm:$0x1]
        %v966 = vperm.slane %v964, 0
        %968 = vmatpush.msra.mxu0 %v947
        %969 = vmatpush.msra.mxu0 %v946
        %970 = vmatpush.msra.mxu0 %v945
        %971 = vmatpush.msra.mxu0 %v944
        %972 = vmatpush.msra.mxu0 %v943
        %973 = vmatpush.msra.mxu0 %v942
        %974 = vmatpush.msra.mxu0 %v941
        %975 = vmatpush.msra.mxu0 %v940
        %976 = vmatpush.msra.mxu0 %v939
        %977 = vmatpush.msra.mxu0 %v938
        %978 = vmatpush.msra.mxu0 %v937
        %979 = vmatpush.msra.mxu0 %v936
        %980 = vmatpush.msra.mxu0 %v935
        %981 = vmatpush.msra.mxu0 %v934
        %982 = vmatpush.msra.mxu0 %v933
        %983 = vmatpush.msra.mxu0 %v932
        %984 = vmatmul.f32.gmra.mxu0 %v928
        %v985 = vpop.f32.mrf.mxu0
        %v986 = vadd.f32 %v966, %v985
        %987 = vmatmul.f32.gmra.mxu0 %v930
        %v988 = vpop.f32.mrf.mxu0
        %v989 = vadd.f32 %v966, %v988
        %990 = vdwg.mxu0
        %991 = vmatpush.msra.mxu0 %v963
        %992 = vmatpush.msra.mxu0 %v962
        %993 = vmatpush.msra.mxu0 %v961
        %994 = vmatpush.msra.mxu0 %v960
        %995 = vmatpush.msra.mxu0 %v959
        %996 = vmatpush.msra.mxu0 %v958
        %997 = vmatpush.msra.mxu0 %v957
        %998 = vmatpush.msra.mxu0 %v956
        %999 = vmatpush.msra.mxu0 %v955
        %1000 = vmatpush.msra.mxu0 %v954
        %1001 = vmatpush.msra.mxu0 %v953
        %1002 = vmatpush.msra.mxu0 %v952
        %1003 = vmatpush.msra.mxu0 %v951
        %1004 = vmatpush.msra.mxu0 %v950
        %1005 = vmatpush.msra.mxu0 %v949
        %1006 = vmatpush.msra.mxu0 %v948
        %1007 = vmatmul.f32.gmra.mxu0 %v929
        %v1008 = vpop.f32.mrf.mxu0
        %v1009 = vadd.f32 %v986, %v1008
        %1010 = vmatmul.f32.gmra.mxu0 %v931
        %v1011 = vpop.f32.mrf.mxu0
        %v1012 = vadd.f32 %v989, %v1011
        %1013 = vdwg.mxu0
        %v1014 = vmax.f32 %v1009, 0.0
        %v1015 = vmax.f32 %v1012, 0.0
        %v1016 = vld [vmem:[#allocation10] sm:$0xff]
        %v1017 = vld [vmem:[#allocation10 + $0x8] sm:$0xff]
        %v1018 = vld [vmem:[#allocation10 + $0x10] sm:$0xff]
        %v1019 = vld [vmem:[#allocation10 + $0x18] sm:$0xff]
        %v1020 = vld [vmem:[#allocation10 + $0x20] sm:$0xff]
        %v1021 = vld [vmem:[#allocation10 + $0x28] sm:$0xff]
        %v1022 = vld [vmem:[#allocation10 + $0x30] sm:$0xff]
        %v1023 = vld [vmem:[#allocation10 + $0x38] sm:$0xff]
        %v1024 = vld [vmem:[#allocation10 + $0x40] sm:$0xff]
        %v1025 = vld [vmem:[#allocation10 + $0x48] sm:$0xff]
        %v1026 = vld [vmem:[#allocation10 + $0x50] sm:$0xff]
        %v1027 = vld [vmem:[#allocation10 + $0x58] sm:$0xff]
        %v1028 = vld [vmem:[#allocation10 + $0x60] sm:$0xff]
        %v1029 = vld [vmem:[#allocation10 + $0x68] sm:$0xff]
        %v1030 = vld [vmem:[#allocation10 + $0x70] sm:$0xff]
        %v1031 = vld [vmem:[#allocation10 + $0x78] sm:$0xff]
        %v1032 = vld [vmem:[%s6] sm:$0x1]
        %v1034 = vperm.slane %v1032, 0
        %1036 = vmatpush.msra.mxu0 %v1031
        %1037 = vmatpush.msra.mxu0 %v1030
        %1038 = vmatpush.msra.mxu0 %v1029
        %1039 = vmatpush.msra.mxu0 %v1028
        %1040 = vmatpush.msra.mxu0 %v1027
        %1041 = vmatpush.msra.mxu0 %v1026
        %1042 = vmatpush.msra.mxu0 %v1025
        %1043 = vmatpush.msra.mxu0 %v1024
        %1044 = vmatpush.msra.mxu0 %v1023
        %1045 = vmatpush.msra.mxu0 %v1022
        %1046 = vmatpush.msra.mxu0 %v1021
        %1047 = vmatpush.msra.mxu0 %v1020
        %1048 = vmatpush.msra.mxu0 %v1019
        %1049 = vmatpush.msra.mxu0 %v1018
        %1050 = vmatpush.msra.mxu0 %v1017
        %1051 = vmatpush.msra.mxu0 %v1016
        %1052 = vmatmul.f32.gmra.mxu0 %v1014
        %v1053 = vpop.f32.mrf.mxu0
        %v1054 = vadd.f32 %v1034, %v1053
        %1055 = vmatmul.f32.gmra.mxu0 %v1015
        %v1056 = vpop.f32.mrf.mxu0
        %v1057 = vadd.f32 %v1034, %v1056
        %1058 = vdwg.mxu0
        %v1059 = vmax.f32 %v1054, 0.0
        %v1060 = vmax.f32 %v1057, 0.0
        %v1061 = vld [vmem:[#allocation11] sm:$0xff]
        %v1062 = vld [vmem:[#allocation11 + $0x8] sm:$0xff]
        %v1063 = vld [vmem:[#allocation11 + $0x10] sm:$0xff]
        %v1064 = vld [vmem:[#allocation11 + $0x18] sm:$0xff]
        %v1065 = vld [vmem:[#allocation11 + $0x20] sm:$0xff]
        %v1066 = vld [vmem:[#allocation11 + $0x28] sm:$0xff]
        %v1067 = vld [vmem:[#allocation11 + $0x30] sm:$0xff]
        %v1068 = vld [vmem:[#allocation11 + $0x38] sm:$0xff]
        %v1069 = vld [vmem:[#allocation11 + $0x40] sm:$0xff]
        %v1070 = vld [vmem:[#allocation11 + $0x48] sm:$0xff]
        %v1071 = vld [vmem:[#allocation11 + $0x50] sm:$0xff]
        %v1072 = vld [vmem:[#allocation11 + $0x58] sm:$0xff]
        %v1073 = vld [vmem:[#allocation11 + $0x60] sm:$0xff]
        %v1074 = vld [vmem:[#allocation11 + $0x68] sm:$0xff]
        %v1075 = vld [vmem:[#allocation11 + $0x70] sm:$0xff]
        %v1076 = vld [vmem:[#allocation11 + $0x78] sm:$0xff]
        %v1077 = vld [vmem:[%s8] sm:$0x1]
        %v1079 = vperm.slane %v1077, 0
        %1081 = vmatpush.msra.mxu0 %v1076
        %1082 = vmatpush.msra.mxu0 %v1075
        %1083 = vmatpush.msra.mxu0 %v1074
        %1084 = vmatpush.msra.mxu0 %v1073
        %1085 = vmatpush.msra.mxu0 %v1072
        %1086 = vmatpush.msra.mxu0 %v1071
        %1087 = vmatpush.msra.mxu0 %v1070
        %1088 = vmatpush.msra.mxu0 %v1069
        %1089 = vmatpush.msra.mxu0 %v1068
        %1090 = vmatpush.msra.mxu0 %v1067
        %1091 = vmatpush.msra.mxu0 %v1066
        %1092 = vmatpush.msra.mxu0 %v1065
        %1093 = vmatpush.msra.mxu0 %v1064
        %1094 = vmatpush.msra.mxu0 %v1063
        %1095 = vmatpush.msra.mxu0 %v1062
        %1096 = vmatpush.msra.mxu0 %v1061
        %1097 = vmatmul.f32.gmra.mxu0 %v1059
        %v1098 = vpop.f32.mrf.mxu0
        %v1099 = vadd.f32 %v1079, %v1098
        %1100 = vmatmul.f32.gmra.mxu0 %v1060
        %v1101 = vpop.f32.mrf.mxu0
        %v1102 = vadd.f32 %v1079, %v1101
        %1103 = vdwg.mxu0
        %v1104 = vmax.f32 %v1099, 0.0
        %v1105 = vmax.f32 %v1102, 0.0
        %v1106 = vld [vmem:[#allocation13] sm:$0xff]
        %v1107 = vld [vmem:[#allocation13 + $0x8] sm:$0xff]
        %v1108 = vld [vmem:[#allocation13 + $0x10] sm:$0xff]
        %v1109 = vld [vmem:[#allocation13 + $0x18] sm:$0xff]
        %v1110 = vld [vmem:[#allocation13 + $0x20] sm:$0xff]
        %v1111 = vld [vmem:[#allocation13 + $0x28] sm:$0xff]
        %v1112 = vld [vmem:[#allocation13 + $0x30] sm:$0xff]
        %v1113 = vld [vmem:[#allocation13 + $0x38] sm:$0xff]
        %v1114 = vld [vmem:[#allocation13 + $0x40] sm:$0xff]
        %v1115 = vld [vmem:[#allocation13 + $0x48] sm:$0xff]
        %v1116 = vld [vmem:[#allocation13 + $0x50] sm:$0xff]
        %v1117 = vld [vmem:[#allocation13 + $0x58] sm:$0xff]
        %v1118 = vld [vmem:[#allocation13 + $0x60] sm:$0xff]
        %v1119 = vld [vmem:[#allocation13 + $0x68] sm:$0xff]
        %v1120 = vld [vmem:[#allocation13 + $0x70] sm:$0xff]
        %v1121 = vld [vmem:[#allocation13 + $0x78] sm:$0xff]
        %v1122 = vld [vmem:[%s10] sm:$0x1]
        %v1124 = vperm.slane %v1122, 0
        %1126 = vmatpush.msra.mxu0 %v1121
        %1127 = vmatpush.msra.mxu0 %v1120
        %1128 = vmatpush.msra.mxu0 %v1119
        %1129 = vmatpush.msra.mxu0 %v1118
        %1130 = vmatpush.msra.mxu0 %v1117
        %1131 = vmatpush.msra.mxu0 %v1116
        %1132 = vmatpush.msra.mxu0 %v1115
        %1133 = vmatpush.msra.mxu0 %v1114
        %1134 = vmatpush.msra.mxu0 %v1113
        %1135 = vmatpush.msra.mxu0 %v1112
        %1136 = vmatpush.msra.mxu0 %v1111
        %1137 = vmatpush.msra.mxu0 %v1110
        %1138 = vmatpush.msra.mxu0 %v1109
        %1139 = vmatpush.msra.mxu0 %v1108
        %1140 = vmatpush.msra.mxu0 %v1107
        %1141 = vmatpush.msra.mxu0 %v1106
        %1142 = vmatmul.f32.gmra.mxu0 %v1104
        %v1143 = vpop.f32.mrf.mxu0
        %v1144 = vadd.f32 %v1124, %v1143
        %1145 = vmatmul.f32.gmra.mxu0 %v1105
        %v1146 = vpop.f32.mrf.mxu0
        %v1147 = vadd.f32 %v1124, %v1146
        %1148 = vdwg.mxu0
        %v1149 = vmul.f32 %v1144, 0.5
        %v1150 = vmul.f32 %v1147, 0.5
        %v1151 = vtanh.pop %v1149
        %v1152 = vtanh.pop %v1150
        %v1153 = vadd.f32 %v1151, 1.0
        %v1154 = vadd.f32 %v1152, 1.0
        %v1155 = vmul.f32 %v1153, 0.5
        %v1156 = vmul.f32 %v1154, 0.5
        %v1157 = vadd.f32 %v1155, 0.0
        %v1158 = vadd.f32 %v1156, 0.0
        %v1159 = vld [vmem:[#allocation14] sm:$0xff]
        %v1160 = vld [vmem:[#allocation14 + $0x8] sm:$0xff]
        %v1161 = vld [vmem:[#allocation14 + $0x10] sm:$0xff]
        %v1162 = vld [vmem:[#allocation14 + $0x18] sm:$0xff]
        %v1163 = vld [vmem:[#allocation14 + $0x20] sm:$0xff]
        %v1164 = vld [vmem:[#allocation14 + $0x28] sm:$0xff]
        %v1165 = vld [vmem:[#allocation14 + $0x30] sm:$0xff]
        %v1166 = vld [vmem:[#allocation14 + $0x38] sm:$0xff]
        %v1167 = vld [vmem:[#allocation14 + $0x40] sm:$0xff]
        %v1168 = vld [vmem:[#allocation14 + $0x48] sm:$0xff]
        %v1169 = vld [vmem:[#allocation14 + $0x50] sm:$0xff]
        %v1170 = vld [vmem:[#allocation14 + $0x58] sm:$0xff]
        %v1171 = vld [vmem:[#allocation14 + $0x60] sm:$0xff]
        %v1172 = vld [vmem:[#allocation14 + $0x68] sm:$0xff]
        %v1173 = vld [vmem:[#allocation14 + $0x70] sm:$0xff]
        %v1174 = vld [vmem:[#allocation14 + $0x78] sm:$0xff]
        %v1175 = vld [vmem:[%s12] sm:$0x1]
        %v1177 = vperm.slane %v1175, 0
        %1179 = vmatpush.msra.mxu0 %v1174
        %1180 = vmatpush.msra.mxu0 %v1173
        %1181 = vmatpush.msra.mxu0 %v1172
        %1182 = vmatpush.msra.mxu0 %v1171
        %1183 = vmatpush.msra.mxu0 %v1170
        %1184 = vmatpush.msra.mxu0 %v1169
        %1185 = vmatpush.msra.mxu0 %v1168
        %1186 = vmatpush.msra.mxu0 %v1167
        %1187 = vmatpush.msra.mxu0 %v1166
        %1188 = vmatpush.msra.mxu0 %v1165
        %1189 = vmatpush.msra.mxu0 %v1164
        %1190 = vmatpush.msra.mxu0 %v1163
        %1191 = vmatpush.msra.mxu0 %v1162
        %1192 = vmatpush.msra.mxu0 %v1161
        %1193 = vmatpush.msra.mxu0 %v1160
        %1194 = vmatpush.msra.mxu0 %v1159
        %1195 = vmatmul.f32.gmra.mxu0 %v1157
        %v1196 = vpop.f32.mrf.mxu0
        %v1197 = vadd.f32 %v1177, %v1196
        %1198 = vmatmul.f32.gmra.mxu0 %v1158
        %v1199 = vpop.f32.mrf.mxu0
        %v1200 = vadd.f32 %v1177, %v1199
        %1201 = vdwg.mxu0
        %v1202 = vmax.f32 %v1197, 0.0
        %v1203 = vmax.f32 %v1200, 0.0
        %v1204 = vld [vmem:[#allocation16] sm:$0xff]
        %v1205 = vld [vmem:[#allocation16 + $0x8] sm:$0xff]
        %v1206 = vld [vmem:[#allocation16 + $0x10] sm:$0xff]
        %v1207 = vld [vmem:[#allocation16 + $0x18] sm:$0xff]
        %v1208 = vld [vmem:[#allocation16 + $0x20] sm:$0xff]
        %v1209 = vld [vmem:[#allocation16 + $0x28] sm:$0xff]
        %v1210 = vld [vmem:[#allocation16 + $0x30] sm:$0xff]
        %v1211 = vld [vmem:[#allocation16 + $0x38] sm:$0xff]
        %v1212 = vld [vmem:[#allocation16 + $0x40] sm:$0xff]
        %v1213 = vld [vmem:[#allocation16 + $0x48] sm:$0xff]
        %v1214 = vld [vmem:[#allocation16 + $0x50] sm:$0xff]
        %v1215 = vld [vmem:[#allocation16 + $0x58] sm:$0xff]
        %v1216 = vld [vmem:[#allocation16 + $0x60] sm:$0xff]
        %v1217 = vld [vmem:[#allocation16 + $0x68] sm:$0xff]
        %v1218 = vld [vmem:[#allocation16 + $0x70] sm:$0xff]
        %v1219 = vld [vmem:[#allocation16 + $0x78] sm:$0xff]
        %v1220 = vld [vmem:[%s14] sm:$0x1]
        %v1222 = vperm.slane %v1220, 0
        %1224 = vmatpush.msra.mxu0 %v1219
        %1225 = vmatpush.msra.mxu0 %v1218
        %1226 = vmatpush.msra.mxu0 %v1217
        %1227 = vmatpush.msra.mxu0 %v1216
        %1228 = vmatpush.msra.mxu0 %v1215
        %1229 = vmatpush.msra.mxu0 %v1214
        %1230 = vmatpush.msra.mxu0 %v1213
        %1231 = vmatpush.msra.mxu0 %v1212
        %1232 = vmatpush.msra.mxu0 %v1211
        %1233 = vmatpush.msra.mxu0 %v1210
        %1234 = vmatpush.msra.mxu0 %v1209
        %1235 = vmatpush.msra.mxu0 %v1208
        %1236 = vmatpush.msra.mxu0 %v1207
        %1237 = vmatpush.msra.mxu0 %v1206
        %1238 = vmatpush.msra.mxu0 %v1205
        %1239 = vmatpush.msra.mxu0 %v1204
        %1240 = vmatmul.f32.gmra.mxu0 %v1202
        %v1241 = vpop.f32.mrf.mxu0
        %v1242 = vadd.f32 %v1222, %v1241
        %1243 = vmatmul.f32.gmra.mxu0 %v1203
        %v1244 = vpop.f32.mrf.mxu0
        %v1245 = vadd.f32 %v1222, %v1244
        %1246 = vdwg.mxu0
        %v1247 = vmax.f32 %v1242, 0.0
        %v1248 = vmax.f32 %v1245, 0.0
        %v1249 = vld [vmem:[#allocation17] sm:$0xff]
        %v1250 = vld [vmem:[#allocation17 + $0x8] sm:$0xff]
        %v1251 = vld [vmem:[#allocation17 + $0x10] sm:$0xff]
        %v1252 = vld [vmem:[#allocation17 + $0x18] sm:$0xff]
        %v1253 = vld [vmem:[#allocation17 + $0x20] sm:$0xff]
        %v1254 = vld [vmem:[#allocation17 + $0x28] sm:$0xff]
        %v1255 = vld [vmem:[#allocation17 + $0x30] sm:$0xff]
        %v1256 = vld [vmem:[#allocation17 + $0x38] sm:$0xff]
        %v1257 = vld [vmem:[#allocation17 + $0x40] sm:$0xff]
        %v1258 = vld [vmem:[#allocation17 + $0x48] sm:$0xff]
        %v1259 = vld [vmem:[#allocation17 + $0x50] sm:$0xff]
        %v1260 = vld [vmem:[#allocation17 + $0x58] sm:$0xff]
        %v1261 = vld [vmem:[#allocation17 + $0x60] sm:$0xff]
        %v1262 = vld [vmem:[#allocation17 + $0x68] sm:$0xff]
        %v1263 = vld [vmem:[#allocation17 + $0x70] sm:$0xff]
        %v1264 = vld [vmem:[#allocation17 + $0x78] sm:$0xff]
        %v1265 = vld [vmem:[%s16] sm:$0x1]
        %v1267 = vperm.slane %v1265, 0
        %1269 = vmatpush.msra.mxu0 %v1264
        %1270 = vmatpush.msra.mxu0 %v1263
        %1271 = vmatpush.msra.mxu0 %v1262
        %1272 = vmatpush.msra.mxu0 %v1261
        %1273 = vmatpush.msra.mxu0 %v1260
        %1274 = vmatpush.msra.mxu0 %v1259
        %1275 = vmatpush.msra.mxu0 %v1258
        %1276 = vmatpush.msra.mxu0 %v1257
        %1277 = vmatpush.msra.mxu0 %v1256
        %1278 = vmatpush.msra.mxu0 %v1255
        %1279 = vmatpush.msra.mxu0 %v1254
        %1280 = vmatpush.msra.mxu0 %v1253
        %1281 = vmatpush.msra.mxu0 %v1252
        %1282 = vmatpush.msra.mxu0 %v1251
        %1283 = vmatpush.msra.mxu0 %v1250
        %1284 = vmatpush.msra.mxu0 %v1249
        %1285 = vmatmul.f32.gmra.mxu0 %v1247
        %v1286 = vpop.f32.mrf.mxu0
        %v1287 = vadd.f32 %v1267, %v1286
        %1288 = vmatmul.f32.gmra.mxu0 %v1248
        %v1289 = vpop.f32.mrf.mxu0
        %v1290 = vadd.f32 %v1267, %v1289
        %1291 = vdwg.mxu0
        %v1292 = vmax.f32 %v1287, 0.0
        %v1293 = vmax.f32 %v1290, 0.0
        %v1294 = vld [vmem:[#allocation19] sm:$0xff]
        %v1295 = vld [vmem:[#allocation19 + $0x8] sm:$0xff]
        %v1296 = vld [vmem:[#allocation19 + $0x10] sm:$0xff]
        %v1297 = vld [vmem:[#allocation19 + $0x18] sm:$0xff]
        %v1298 = vld [vmem:[#allocation19 + $0x20] sm:$0xff]
        %v1299 = vld [vmem:[#allocation19 + $0x28] sm:$0xff]
        %v1300 = vld [vmem:[#allocation19 + $0x30] sm:$0xff]
        %v1301 = vld [vmem:[#allocation19 + $0x38] sm:$0xff]
        %v1302 = vld [vmem:[#allocation19 + $0x40] sm:$0xff]
        %v1303 = vld [vmem:[#allocation19 + $0x48] sm:$0xff]
        %v1304 = vld [vmem:[#allocation19 + $0x50] sm:$0xff]
        %v1305 = vld [vmem:[#allocation19 + $0x58] sm:$0xff]
        %v1306 = vld [vmem:[#allocation19 + $0x60] sm:$0xff]
        %v1307 = vld [vmem:[#allocation19 + $0x68] sm:$0xff]
        %v1308 = vld [vmem:[#allocation19 + $0x70] sm:$0xff]
        %v1309 = vld [vmem:[#allocation19 + $0x78] sm:$0xff]
        %v1310 = vld [vmem:[#allocation19 + $0x80] sm:$0xff]
        %v1311 = vld [vmem:[#allocation19 + $0x88] sm:$0xff]
        %v1312 = vld [vmem:[#allocation19 + $0x90] sm:$0xff]
        %v1313 = vld [vmem:[#allocation19 + $0x98] sm:$0xff]
        %v1314 = vld [vmem:[#allocation19 + $0xa0] sm:$0xff]
        %v1315 = vld [vmem:[#allocation19 + $0xa8] sm:$0xff]
        %v1316 = vld [vmem:[#allocation19 + $0xb0] sm:$0xff]
        %v1317 = vld [vmem:[#allocation19 + $0xb8] sm:$0xff]
        %v1318 = vld [vmem:[#allocation19 + $0xc0] sm:$0xff]
        %v1319 = vld [vmem:[#allocation19 + $0xc8] sm:$0xff]
        %v1320 = vld [vmem:[#allocation19 + $0xd0] sm:$0xff]
        %v1321 = vld [vmem:[#allocation19 + $0xd8] sm:$0xff]
        %v1322 = vld [vmem:[#allocation19 + $0xe0] sm:$0xff]
        %v1323 = vld [vmem:[#allocation19 + $0xe8] sm:$0xff]
        %v1324 = vld [vmem:[#allocation19 + $0xf0] sm:$0xff]
        %v1325 = vld [vmem:[#allocation19 + $0xf8] sm:$0xff]
        %v1326 = vld [vmem:[%s18] sm:$0x3]
        %v1328 = vperm.slane %v1326, 0
        %v1329 = vperm.slane %v1326, 1
        %1332 = vmatpush.msra.mxu0 %v1324
        %1333 = vmatpush.msra.mxu0 %v1322
        %1334 = vmatpush.msra.mxu0 %v1320
        %1335 = vmatpush.msra.mxu0 %v1318
        %1336 = vmatpush.msra.mxu0 %v1316
        %1337 = vmatpush.msra.mxu0 %v1314
        %1338 = vmatpush.msra.mxu0 %v1312
        %1339 = vmatpush.msra.mxu0 %v1310
        %1340 = vmatpush.msra.mxu0 %v1308
        %1341 = vmatpush.msra.mxu0 %v1306
        %1342 = vmatpush.msra.mxu0 %v1304
        %1343 = vmatpush.msra.mxu0 %v1302
        %1344 = vmatpush.msra.mxu0 %v1300
        %1345 = vmatpush.msra.mxu0 %v1298
        %1346 = vmatpush.msra.mxu0 %v1296
        %1347 = vmatpush.msra.mxu0 %v1294
        %1348 = vmatmul.f32.gmra.mxu0 %v1292
        %v1349 = vpop.f32.mrf.mxu0
        %v1350 = vadd.f32 %v1328, %v1349
        %1351 = vmatmul.f32.gmra.mxu0 %v1293
        %v1352 = vpop.f32.mrf.mxu0
        %v1353 = vadd.f32 %v1328, %v1352
        %1354 = vdwg.mxu0
        %1355 = vmatpush.msra.mxu0 %v1325
        %1356 = vmatpush.msra.mxu0 %v1323
        %1357 = vmatpush.msra.mxu0 %v1321
        %1358 = vmatpush.msra.mxu0 %v1319
        %1359 = vmatpush.msra.mxu0 %v1317
        %1360 = vmatpush.msra.mxu0 %v1315
        %1361 = vmatpush.msra.mxu0 %v1313
        %1362 = vmatpush.msra.mxu0 %v1311
        %1363 = vmatpush.msra.mxu0 %v1309
        %1364 = vmatpush.msra.mxu0 %v1307
        %1365 = vmatpush.msra.mxu0 %v1305
        %1366 = vmatpush.msra.mxu0 %v1303
        %1367 = vmatpush.msra.mxu0 %v1301
        %1368 = vmatpush.msra.mxu0 %v1299
        %1369 = vmatpush.msra.mxu0 %v1297
        %1370 = vmatpush.msra.mxu0 %v1295
        %1371 = vmatmul.f32.gmra.mxu0 %v1292
        %v1372 = vpop.f32.mrf.mxu0
        %v1373 = vadd.f32 %v1329, %v1372
        %1374 = vmatmul.f32.gmra.mxu0 %v1293
        %v1375 = vpop.f32.mrf.mxu0
        %v1376 = vadd.f32 %v1329, %v1375
        %1377 = vdwg.mxu0
        %v1378 = vmax.f32 %v1350, 0.0
        %v1379 = vmax.f32 %v1373, 0.0
        %v1380 = vmax.f32 %v1353, 0.0
        %v1381 = vmax.f32 %v1376, 0.0
        %v1382 = vld [vmem:[#allocation20] sm:$0xff]
        %v1383 = vld [vmem:[#allocation20 + $0x8] sm:$0xff]
        %v1384 = vld [vmem:[#allocation20 + $0x10] sm:$0xff]
        %v1385 = vld [vmem:[#allocation20 + $0x18] sm:$0xff]
        %v1386 = vld [vmem:[#allocation20 + $0x20] sm:$0xff]
        %v1387 = vld [vmem:[#allocation20 + $0x28] sm:$0xff]
        %v1388 = vld [vmem:[#allocation20 + $0x30] sm:$0xff]
        %v1389 = vld [vmem:[#allocation20 + $0x38] sm:$0xff]
        %v1390 = vld [vmem:[#allocation20 + $0x40] sm:$0xff]
        %v1391 = vld [vmem:[#allocation20 + $0x48] sm:$0xff]
        %v1392 = vld [vmem:[#allocation20 + $0x50] sm:$0xff]
        %v1393 = vld [vmem:[#allocation20 + $0x58] sm:$0xff]
        %v1394 = vld [vmem:[#allocation20 + $0x60] sm:$0xff]
        %v1395 = vld [vmem:[#allocation20 + $0x68] sm:$0xff]
        %v1396 = vld [vmem:[#allocation20 + $0x70] sm:$0xff]
        %v1397 = vld [vmem:[#allocation20 + $0x78] sm:$0xff]
        %v1398 = vld [vmem:[#allocation20 + $0x80] sm:$0xff]
        %v1399 = vld [vmem:[#allocation20 + $0x88] sm:$0xff]
        %v1400 = vld [vmem:[#allocation20 + $0x90] sm:$0xff]
        %v1401 = vld [vmem:[#allocation20 + $0x98] sm:$0xff]
        %v1402 = vld [vmem:[#allocation20 + $0xa0] sm:$0xff]
        %v1403 = vld [vmem:[#allocation20 + $0xa8] sm:$0xff]
        %v1404 = vld [vmem:[#allocation20 + $0xb0] sm:$0xff]
        %v1405 = vld [vmem:[#allocation20 + $0xb8] sm:$0xff]
        %v1406 = vld [vmem:[#allocation20 + $0xc0] sm:$0xff]
        %v1407 = vld [vmem:[#allocation20 + $0xc8] sm:$0xff]
        %v1408 = vld [vmem:[#allocation20 + $0xd0] sm:$0xff]
        %v1409 = vld [vmem:[#allocation20 + $0xd8] sm:$0xff]
        %v1410 = vld [vmem:[#allocation20 + $0xe0] sm:$0xff]
        %v1411 = vld [vmem:[#allocation20 + $0xe8] sm:$0xff]
        %v1412 = vld [vmem:[#allocation20 + $0xf0] sm:$0xff]
        %v1413 = vld [vmem:[#allocation20 + $0xf8] sm:$0xff]
        %v1414 = vld [vmem:[%s20] sm:$0x1]
        %v1416 = vperm.slane %v1414, 0
        %1418 = vmatpush.msra.mxu0 %v1397
        %1419 = vmatpush.msra.mxu0 %v1396
        %1420 = vmatpush.msra.mxu0 %v1395
        %1421 = vmatpush.msra.mxu0 %v1394
        %1422 = vmatpush.msra.mxu0 %v1393
        %1423 = vmatpush.msra.mxu0 %v1392
        %1424 = vmatpush.msra.mxu0 %v1391
        %1425 = vmatpush.msra.mxu0 %v1390
        %1426 = vmatpush.msra.mxu0 %v1389
        %1427 = vmatpush.msra.mxu0 %v1388
        %1428 = vmatpush.msra.mxu0 %v1387
        %1429 = vmatpush.msra.mxu0 %v1386
        %1430 = vmatpush.msra.mxu0 %v1385
        %1431 = vmatpush.msra.mxu0 %v1384
        %1432 = vmatpush.msra.mxu0 %v1383
        %1433 = vmatpush.msra.mxu0 %v1382
        %1434 = vmatmul.f32.gmra.mxu0 %v1378
        %v1435 = vpop.f32.mrf.mxu0
        %v1436 = vadd.f32 %v1416, %v1435
        %1437 = vmatmul.f32.gmra.mxu0 %v1380
        %v1438 = vpop.f32.mrf.mxu0
        %v1439 = vadd.f32 %v1416, %v1438
        %1440 = vdwg.mxu0
        %1441 = vmatpush.msra.mxu0 %v1413
        %1442 = vmatpush.msra.mxu0 %v1412
        %1443 = vmatpush.msra.mxu0 %v1411
        %1444 = vmatpush.msra.mxu0 %v1410
        %1445 = vmatpush.msra.mxu0 %v1409
        %1446 = vmatpush.msra.mxu0 %v1408
        %1447 = vmatpush.msra.mxu0 %v1407
        %1448 = vmatpush.msra.mxu0 %v1406
        %1449 = vmatpush.msra.mxu0 %v1405
        %1450 = vmatpush.msra.mxu0 %v1404
        %1451 = vmatpush.msra.mxu0 %v1403
        %1452 = vmatpush.msra.mxu0 %v1402
        %1453 = vmatpush.msra.mxu0 %v1401
        %1454 = vmatpush.msra.mxu0 %v1400
        %1455 = vmatpush.msra.mxu0 %v1399
        %1456 = vmatpush.msra.mxu0 %v1398
        %1457 = vmatmul.f32.gmra.mxu0 %v1379
        %v1458 = vpop.f32.mrf.mxu0
        %v1459 = vadd.f32 %v1436, %v1458
        %1460 = vmatmul.f32.gmra.mxu0 %v1381
        %v1461 = vpop.f32.mrf.mxu0
        %v1462 = vadd.f32 %v1439, %v1461
        %1463 = vdwg.mxu0
        %1464 = vst [vmem:[%s856] sm:$0xff] %v1459
        %1465 = vst [vmem:[%s856 + $0x8] sm:$0xff] %v1462
        %s1466 = sand.u32 %s498, 1
        %s1467 = scalar_lea.sflag [#allocation4], %s1466
        %s1468 = sand.u32 %s498, 1
        %s1469 = smul.addr %s1468, 16
        %s1470 = scalar_lea.vmem [#allocation22], %s1469
        // Predicated region
        $region153: #{tpu_custom_call.1} parent=103 // pred_check
          %p1471 = pneg %p508
        $region154: #{tpu_custom_call.1} parent=103 // pred_check_branch
          %1473 = sbr.rel (%p1471) target = $region156
        $region155: #{tpu_custom_call.1} parent=103 // pred_region
          %s1474 = smul.u32 2, %s44
          %1476 = vsyncadd %s1467, 0
          %s1477 = smul.addr %s1474, 8
          %s1478 = scalar_lea.hbm %s21, %s1477
          %s1479 = sshll.u32 %s1470, 4
          %s1480 = int_to_ptr.vmem [resolvable:$true] %s1479
          %s1481 = sshll.u32 %s1478, 4
          %s1482 = int_to_ptr.hbm [resolvable:$true] %s1481
          %1487 = dma.vmem_to_hbm [thread:$0]  %s1480, 256, %s1482, %s1467, 128, 128, 8
        $region156: #{tpu_custom_call.1} parent=103 // pred_fallthru
          _
      $region104: #{tpu_custom_call.1} parent=5 // pred_fallthru
        _
      %p1488 = scmp.le.s32.totalorder 2, %s39
      // Predicated region
      $region157: #{tpu_custom_call.1} parent=5 // pred_check
        %p1489 = pneg %p1488
      $region158: #{tpu_custom_call.1} parent=5 // pred_check_branch
        %1491 = sbr.rel (%p1489) target = $region160
      $region159: #{tpu_custom_call.1} parent=5 // pred_region
        %s1492 = ssub.s32 %s39, 2
        // Predicated region
        $region161: #{tpu_custom_call.1} parent=159 // pred_check
          %p1493 = pneg %p514
        $region162: #{tpu_custom_call.1} parent=159 // pred_check_branch
          %1495 = sbr.rel (%p1493) target = $region164
        $region163: #{tpu_custom_call.1} parent=159 // pred_region
          %s1496 = sand.u32 %s499, 1
          %s1497 = scalar_lea.sflag [#allocation4], %s1496
          %s1498 = sand.u32 %s499, 1
          %s1499 = smul.addr %s1498, 16
          %s1500 = scalar_lea.vmem [#allocation22], %s1499
          %1502 = dma.done %s1497, 256
        $region164: #{tpu_custom_call.1} parent=159 // pred_fallthru
          _
      $region160: #{tpu_custom_call.1} parent=5 // pred_fallthru
        _
    $region6: #{tpu_custom_call.1} parent=1 // loop_footer
      %s43 = sadd.s32 1, %s39
    $region7: #{tpu_custom_call.1} parent=1 // loop_footer_branch
      %38 = sbr.rel target = $region3
    $region8: #{tpu_custom_call.1} parent=1 // loop_exit
      _
    %1503 = vsyncpa [#allocation3], 1
    %s1504 = scalar_lea.sflag [#allocation3], 1
    %1505 = vsyncpa %s1504, 1
    %1506 = vsyncpa [#allocation6], 1
    %1507 = vsyncpa [#allocation9], 1
    %1508 = vsyncpa [#allocation12], 1
    %1509 = vsyncpa [#allocation15], 1
    %1510 = vsyncpa [#allocation18], 1
    %1511 = vsyncpa [#allocation21], 1
    %1512 = vsyncpa [#allocation4], 1
    %s1513 = scalar_lea.sflag [#allocation4], 1
    %1514 = vsyncpa %s1513, 1

</llo_original>
